<compile_context>
chip_gen: v7x
topology: tpu7x:2x2x1
jax: 0.10.0
libtpu: 0.0.40
codegen_flags: <defaults>
</compile_context>

<pallas_src>
import functools

import jax
import jax.numpy as jnp
from jax import lax
from jax.experimental import pallas as pl
from jax.experimental.pallas import tpu as pltpu


# ----------------------------------------------------------------------------
# small helpers
# ----------------------------------------------------------------------------
def _round_up(v, m):
    return ((v + m - 1) // m) * m


def _pad_to(a, axis, size):
    pad = size - a.shape[axis]
    if pad <= 0:
        return a
    widths = [(0, 0)] * a.ndim
    widths[axis] = (0, pad)
    return jnp.pad(a, widths)


def _scoped_vmem_limit():
    """Per-generation scoped-VMEM limit: physical VMEM minus ~16 MiB headroom."""
    phys = 64 * 1024 * 1024          # conservative default (v7x per-TensorCore)
    try:
        info = pltpu.get_tpu_info()
        for name in ("vmem_capacity_bytes", "vmem_size_bytes", "vmem_bytes"):
            v = getattr(info, name, None)
            if v:
                phys = int(v)
                break
    except Exception:
        pass
    # 128 MiB parts (v5e/v6e) -> ~112 MiB scoped; 64 MiB parts (v7x) -> ~48 MiB.
    return max(32 * 1024 * 1024, phys - 16 * 1024 * 1024)


def _resident_vmem_bytes(tm, d, h, e, isz, out_isz):
    weights = e * 2 * d * h * isz + e * (h + d) * 4      # W1/W2 + f32 b1/b2
    gating = 2 * d * e * isz + 4 * e * 4
    act = 2 * tm * (d + e) * isz + 2 * tm * d * out_isz  # x/eps/out double-buffered
    temps = 4 * tm * (h + 2 * d + 2 * e)                 # f32 h1 / acc / contrib / scores
    return weights + gating + act + temps


def _streamed_vmem_bytes(tm, d, ht, e, isz, out_isz, need_acc):
    wblocks = 2 * (2 * d * ht * isz + (ht + d) * 4)      # double-buffered W1/b1/W2/b2 blocks
    resident = 2 * d * e * isz + 4 * e * 4               # gating weights
    act = 2 * tm * (d + e) * isz + 2 * tm * d * out_isz
    scratch = tm * e * 4 + (tm * d * 4 if need_acc else 0)
    temps = 4 * tm * (ht + 2 * d + 2 * e)
    return wblocks + resident + act + scratch + temps


def _choose_config(n_tokens, d, h, e, isz, out_isz, vmem_cap, *,
                   token_tile=None, h_tile=None, force_mode=None):
    """Pick (mode, token_tile, h_tile) under the scoped-VMEM budget."""
    budget = int(vmem_cap * 0.8)
    need_acc = out_isz != 4

    max_tm = max(256, _round_up(n_tokens, 256))
    if token_tile is not None:
        tms = [max(8, _round_up(int(token_tile), 8))]
    else:
        # multiples of 256: full MXU column occupancy on v5e/v6e/v7x
        tms = [t for t in (1024, 768, 512, 256) if t <= max_tm] or [256]

    if force_mode in (None, "resident"):
        for tm in tms:
            if _resident_vmem_bytes(tm, d, h, e, isz, out_isz) <= budget:
                return "resident", tm, None
        if force_mode == "resident":
            return "resident", tms[-1], None

    # streamed / H-tiled fallback: prefer the biggest token tile (intensity
    # = 2*TM/isz flop/byte of weight traffic), then the biggest H chunk.
    if h_tile is not None:
        ht = max(128, _round_up(int(h_tile), 128))
        if h % ht != 0:
            ht = 128
        h_chunks = [ht]
    else:
        h_chunks = [k * 128 for k in range(h // 128, 0, -1) if (h // 128) % k == 0]

    stream_tms = tms if token_tile is not None else tms + [128]
    for tm in stream_tms:
        for ht in h_chunks:
            if _streamed_vmem_bytes(tm, d, ht, e, isz, out_isz, need_acc) <= budget:
                return "streamed", tm, ht
    return "streamed", stream_tms[-1], h_chunks[-1]


# ----------------------------------------------------------------------------
# gating: noisy top-k + masked softmax on a (TM, E) tile, fully vectorized.
# ----------------------------------------------------------------------------
def _gating_scores(x, eps, wg, bg, wn, bn, *, top_k, n_experts):
    # Two separate (TM, D) @ (D, E) gating matmuls (a fused (D, 2E) weight would
    # force a cross-lane split of the result at a non-128 lane boundary).
    gate = jnp.dot(x, wg, preferred_element_type=jnp.float32) + bg
    zn = jnp.dot(x, wn, preferred_element_type=jnp.float32) + bn
    # numerically stable softplus, f32 elementwise math
    softplus = jnp.maximum(zn, 0.0) + jnp.log1p(jnp.exp(-jnp.abs(zn)))
    h = gate + eps.astype(jnp.float32) * softplus                    # (TM, E)

    # vectorized iterative top-k; tie-break = lowest expert index (torch.topk).
    col = lax.broadcasted_iota(jnp.int32, h.shape, 1)
    neg_inf = jnp.float32(-jnp.inf)
    keep = jnp.zeros(h.shape, jnp.bool_)
    for _ in range(top_k):
        masked = jnp.where(keep, neg_inf, h)
        cur_max = jnp.max(masked, axis=-1, keepdims=True)
        first = jnp.min(jnp.where(masked == cur_max, col, n_experts),
                        axis=-1, keepdims=True)
        keep = keep | (col == first)

    # masked softmax; non-kept entries are exactly 0.0
    m = jnp.max(jnp.where(keep, h, neg_inf), axis=-1, keepdims=True)
    ex = jnp.where(keep, jnp.exp(h - m), 0.0)
    denom = jnp.sum(ex, axis=-1, keepdims=True)
    inv = pl.reciprocal(denom, approx=True)        # EUP slot (otherwise idle)
    inv = inv * (2.0 - denom * inv)                # one Newton step -> ~f32 accuracy
    return ex * inv                                # (TM, E) f32


# ----------------------------------------------------------------------------
# Mode R: expert weights fully resident in VMEM, grid = (token_tiles,)
# ----------------------------------------------------------------------------
def _moe_resident_kernel(x_ref, eps_ref, wg_ref, bg_ref, wn_ref, bn_ref,
                         w1_ref, b1_ref, w2_ref, b2_ref, out_ref,
                         *, top_k, n_experts):
    x = x_ref[...]
    scores = _gating_scores(x, eps_ref[...], wg_ref[...], bg_ref[...],
                            wn_ref[...], bn_ref[...],
                            top_k=top_k, n_experts=n_experts)
    col = lax.broadcasted_iota(jnp.int32, scores.shape, 1)   # hoisted (loop-invariant)

    def expert_contrib(e):
        score_e = jnp.sum(jnp.where(col == e, scores, 0.0),
                          axis=-1, keepdims=True)            # (TM, 1) f32
        h1 = jnp.maximum(
            jnp.dot(x, w1_ref[e], preferred_element_type=jnp.float32) + b1_ref[e],
            0.0)
        out_e = jnp.dot(h1.astype(x.dtype), w2_ref[e],
                        preferred_element_type=jnp.float32) + b2_ref[e]
        return score_e * out_e                               # (TM, D) f32

    if out_ref.dtype == jnp.float32:
        # accumulate straight into the (resident) output VMEM block:
        # no accumulator scratch, no final cast/copy.
        out_ref[...] = jnp.zeros_like(out_ref)

        @pl.loop(0, n_experts)
        def _(e):
            out_ref[...] += expert_contrib(e)
    else:
        def body(e, acc):
            return acc + expert_contrib(e)
        acc = lax.fori_loop(0, n_experts, body,
                            jnp.zeros(out_ref.shape, jnp.float32))
        out_ref[...] = acc.astype(out_ref.dtype)


# ----------------------------------------------------------------------------
# Mode S: streamed / H-tiled fallback, grid = (token_tiles, E * n_h)
# ----------------------------------------------------------------------------
def _moe_streamed_kernel(x_ref, eps_ref, wg_ref, bg_ref, wn_ref, bn_ref,
                         w1_ref, b1_ref, w2_ref, b2_ref, out_ref,
                         scores_ref, *acc_scratch, top_k, n_experts, n_h):
    # acc_scratch is empty when the output dtype is f32: accumulate in-place.
    acc_ref = acc_scratch[0] if acc_scratch else out_ref
    c = pl.program_id(1)
    e = c // n_h            # expert index
    hc = c % n_h            # H-chunk index within the expert

    @pl.when(c == 0)
    def _init():
        scores_ref[...] = _gating_scores(
            x_ref[...], eps_ref[...], wg_ref[...], bg_ref[...], wn_ref[...],
            bn_ref[...], top_k=top_k, n_experts=n_experts)
        acc_ref[...] = jnp.zeros_like(acc_ref)

    x = x_ref[...]
    col = lax.broadcasted_iota(jnp.int32, scores_ref.shape, 1)
    score_e = jnp.sum(jnp.where(col == e, scores_ref[...], 0.0),
                      axis=-1, keepdims=True)                     # (TM, 1) f32

    h1 = jnp.maximum(
        jnp.dot(x, w1_ref[0], preferred_element_type=jnp.float32) + b1_ref[0],
        0.0)                                                      # (TM, Ht)
    contrib = jnp.dot(h1.astype(x.dtype), w2_ref[0],
                      preferred_element_type=jnp.float32)         # (TM, D)
    acc_ref[...] += (score_e * contrib).astype(acc_ref.dtype)

    @pl.when(hc == 0)
    def _bias():    # the expert's output bias is added exactly once per expert
        acc_ref[...] += (score_e * b2_ref[0]).astype(acc_ref.dtype)

    if acc_scratch:
        @pl.when(c == n_experts * n_h - 1)
        def _finalize():
            out_ref[...] = acc_ref[...].astype(out_ref.dtype)


# ----------------------------------------------------------------------------
# wrapper
# ----------------------------------------------------------------------------
def moe_forward(x, eps, params, *, top_k, token_tile=None, h_tile=None,
                force_mode=None):
    """MoE forward. x: (B, T, D); eps: (B, T, E) gaussian noise (randn_like)."""
    B, T, D = x.shape
    E = params["Wg"].shape[-1]
    H = params["W1"].shape[-1]
    N = B * T
    out_dtype = x.dtype
    isz = jnp.dtype(x.dtype).itemsize
    out_isz = jnp.dtype(out_dtype).itemsize

    # lane-align D and H (multiples of 128).  Zero padding is exact: padded x
    # columns hit zero weight rows; padded hidden/out columns stay 0 and are
    # sliced off below.
    Dp = _round_up(D, 128)
    Hp = _round_up(H, 128)

    wdt = x.dtype
    wg = _pad_to(params["Wg"].astype(wdt), 0, Dp)                      # (Dp, E)
    wn = _pad_to(params["Wn"].astype(wdt), 0, Dp)
    bg = params["bg"].astype(jnp.float32).reshape(1, E)
    bn = params["bn"].astype(jnp.float32).reshape(1, E)
    w1 = _pad_to(_pad_to(params["W1"].astype(wdt), 1, Dp), 2, Hp)      # (E, Dp, Hp)
    w2 = _pad_to(_pad_to(params["W2"].astype(wdt), 1, Hp), 2, Dp)      # (E, Hp, Dp)
    b1 = _pad_to(params["b1"].astype(jnp.float32), 1, Hp).reshape(E, 1, Hp)
    b2 = _pad_to(params["b2"].astype(jnp.float32), 1, Dp).reshape(E, 1, Dp)

    vmem_cap = _scoped_vmem_limit()
    mode, tm, ht = _choose_config(N, Dp, Hp, E, isz, out_isz, vmem_cap,
                                  token_tile=token_tile, h_tile=h_tile,
                                  force_mode=force_mode)

    # flatten tokens and pad to a multiple of the token tile
    x2 = _pad_to(x.reshape(N, D), 1, Dp)
    eps2 = eps.reshape(N, E)
    N_pad = _round_up(N, tm)
    if N_pad != N:
        x2 = jnp.pad(x2, ((0, N_pad - N), (0, 0)))
        eps2 = jnp.pad(eps2, ((0, N_pad - N), (0, 0)))
    n_tiles = N_pad // tm

    # advisory cost estimate (lets XLA schedule the surrounding pads/reshapes)
    flops = int(4 * N_pad * Dp * E + 4 * N_pad * Dp * Hp * E)
    wbytes = int((w1.size + w2.size) * isz + (b1.size + b2.size) * 4)
    if mode == "streamed":
        wbytes *= n_tiles        # streamed weights are re-fetched per token tile
    bytes_accessed = int((x2.size + eps2.size) * isz + N_pad * Dp * out_isz
                         + wbytes + (wg.size + wn.size) * isz)
    cost = pl.CostEstimate(flops=flops, transcendentals=int(3 * N_pad * E),
                           bytes_accessed=bytes_accessed)

    whole_vmem = pl.BlockSpec(memory_space=pltpu.MemorySpace.VMEM)
    args = (x2, eps2, wg, bg, wn, bn, w1, b1, w2, b2)

    if mode == "resident":
        # All expert weights live in VMEM for the whole kernel (fetched once);
        # the grid iterates token tiles only (megacore-friendly on v7x: each
        # TensorCore fetches the weights once, not once per tile).
        kernel = functools.partial(_moe_resident_kernel, top_k=top_k, n_experts=E)
        grid_spec = pltpu.PrefetchScalarGridSpec(
            num_scalar_prefetch=0,
            grid=(n_tiles,),
            in_specs=[
                pl.BlockSpec((tm, Dp), lambda i: (i, 0)),     # x tokens
                pl.BlockSpec((tm, E), lambda i: (i, 0)),      # gaussian noise
                whole_vmem, whole_vmem, whole_vmem, whole_vmem,   # Wg, bg, Wn, bn
                whole_vmem, whole_vmem, whole_vmem, whole_vmem,   # W1, b1, W2, b2
            ],
            out_specs=pl.BlockSpec((tm, Dp), lambda i: (i, 0)),
            scratch_shapes=[],
        )
        dims = ("parallel",)
    else:
        n_h = Hp // ht
        need_acc = out_dtype != jnp.float32
        kernel = functools.partial(_moe_streamed_kernel, top_k=top_k,
                                   n_experts=E, n_h=n_h)
        scratch = [pltpu.VMEM((tm, E), jnp.float32)]          # gating scores
        if need_acc:
            scratch.append(pltpu.VMEM((tm, Dp), jnp.float32))  # f32 accumulator
        grid_spec = pltpu.PrefetchScalarGridSpec(
            num_scalar_prefetch=0,
            grid=(n_tiles, E * n_h),
            in_specs=[
                pl.BlockSpec((tm, Dp), lambda i, c: (i, 0)),
                pl.BlockSpec((tm, E), lambda i, c: (i, 0)),
                whole_vmem, whole_vmem, whole_vmem, whole_vmem,   # gating weights
                # W1[e, :, hc] / b1[e, hc] / W2[e, hc, :] / b2[e] streamed per step
                pl.BlockSpec((1, Dp, ht), lambda i, c: (c // n_h, 0, c % n_h)),
                pl.BlockSpec((1, 1, ht), lambda i, c: (c // n_h, 0, c % n_h)),
                pl.BlockSpec((1, ht, Dp), lambda i, c: (c // n_h, c % n_h, 0)),
                pl.BlockSpec((1, 1, Dp), lambda i, c: (c // n_h, 0, 0)),
            ],
            out_specs=pl.BlockSpec((tm, Dp), lambda i, c: (i, 0)),
            scratch_shapes=scratch,
        )
        dims = ("parallel", "arbitrary")

    out = pl.pallas_call(
        kernel,
        out_shape=jax.ShapeDtypeStruct((N_pad, Dp), out_dtype),
        grid_spec=grid_spec,
        compiler_params=pltpu.CompilerParams(
            dimension_semantics=dims,
            vmem_limit_bytes=int(vmem_cap)),
        cost_estimate=cost,
    )(*args)
    return out[:N, :D].reshape(B, T, D)


# ----------------------------------------------------------------------------
# pure-JAX reference (matches the PyTorch module in eval mode) + param init
# ----------------------------------------------------------------------------
def moe_reference(x, eps, params, *, top_k):
    gate = x @ params["Wg"] + params["bg"]
    zn = x @ params["Wn"] + params["bn"]
    h = gate + eps * jax.nn.softplus(zn)
    E = h.shape[-1]
    _, idxs = jax.lax.top_k(h, top_k)
    keep = jnp.sum(jax.nn.one_hot(idxs, E, dtype=jnp.float32), axis=-2) > 0
    g = jnp.where(keep, h, -jnp.inf)
    scores = jax.nn.softmax(g, axis=-1)
    out = jnp.zeros_like(x)
    for i in range(E):
        h1 = jax.nn.relu(x @ params["W1"][i] + params["b1"][i])
        e_out = h1 @ params["W2"][i] + params["b2"][i]
        out = out + scores[..., i:i + 1] * e_out
    return out


def init_params(key, n_embed, n_experts, n_hidden):
    ks = jax.random.split(key, 8)
    s_e = 1.0 / jnp.sqrt(n_embed)
    s_h = 1.0 / jnp.sqrt(n_hidden)
    return {
        "Wg": jax.random.normal(ks[0], (n_embed, n_experts), jnp.float32) * s_e,
        "bg": jax.random.normal(ks[1], (n_experts,), jnp.float32) * 0.01,
        "Wn": jax.random.normal(ks[2], (n_embed, n_experts), jnp.float32) * s_e,
        "bn": jax.random.normal(ks[3], (n_experts,), jnp.float32) * 0.01,
        "W1": jax.random.normal(ks[4], (n_experts, n_embed, n_hidden), jnp.float32) * s_e,
        "b1": jax.random.normal(ks[5], (n_experts, n_hidden), jnp.float32) * 0.01,
        "W2": jax.random.normal(ks[6], (n_experts, n_hidden, n_embed), jnp.float32) * s_h,
        "b2": jax.random.normal(ks[7], (n_experts, n_embed), jnp.float32) * 0.01,
    }


if __name__ == "__main__":
    # small, lane-dense shapes; N=192 exercises token-tile padding.
    B, T = 2, 96
    n_embed, n_experts, n_hidden, top_k = 128, 8, 256, 2

    key = jax.random.PRNGKey(0)
    k_x, k_eps, k_p = jax.random.split(key, 3)
    x = jax.random.normal(k_x, (B, T, n_embed), jnp.float32)
    eps = jax.random.normal(k_eps, (B, T, n_experts), jnp.float32)  # randn_like
    params = init_params(k_p, n_embed, n_experts, n_hidden)

    ref = moe_reference(x, eps, params, top_k=top_k)

    # default path: expert weights fully VMEM-resident, fetched once per kernel.
    out = jax.block_until_ready(moe_forward(x, eps, params, top_k=top_k))
    assert out.shape == (B, T, n_embed)
    assert jnp.allclose(out, ref, atol=2e-3, rtol=2e-3), "resident path mismatch"

    # forced streamed / H-tiled fallback (used when expert weights exceed the
    # per-generation VMEM budget); exercises grid=(tiles, E*n_h) accumulation.
    out_s = jax.block_until_ready(
        moe_forward(x, eps, params, top_k=top_k, force_mode="streamed",
                    token_tile=128, h_tile=128))
    assert jnp.allclose(out_s, ref, atol=2e-3, rtol=2e-3), "streamed path mismatch"

    # non-128-aligned D/H exercise the zero-padding path.
    B2, T2 = 1, 16
    d2, e2, h2, k2 = 96, 4, 192, 2
    kx2, ke2, kp2 = jax.random.split(jax.random.PRNGKey(1), 3)
    x_small = jax.random.normal(kx2, (B2, T2, d2), jnp.float32)
    eps_small = jax.random.normal(ke2, (B2, T2, e2), jnp.float32)
    params_small = init_params(kp2, d2, e2, h2)
    out2 = jax.block_until_ready(moe_forward(x_small, eps_small, params_small, top_k=k2))
    ref2 = moe_reference(x_small, eps_small, params_small, top_k=k2)
    assert jnp.allclose(out2, ref2, atol=2e-3, rtol=2e-3), "padded path mismatch"

    print("KERNEL_OK")
</pallas_src>

<mosaic_0001>
module attributes {stable_mosaic.version = 11 : i64} {
  func.func @_moe_resident_kernel(%arg0: i32, %arg1: memref<256x128xf32, #tpu.memory_space<vmem>>, %arg2: memref<256x8xf32, #tpu.memory_space<vmem>>, %arg3: memref<128x8xf32, #tpu.memory_space<vmem>>, %arg4: memref<1x8xf32, #tpu.memory_space<vmem>>, %arg5: memref<128x8xf32, #tpu.memory_space<vmem>>, %arg6: memref<1x8xf32, #tpu.memory_space<vmem>>, %arg7: memref<8x128x256xf32, #tpu.memory_space<vmem>>, %arg8: memref<8x1x256xf32, #tpu.memory_space<vmem>>, %arg9: memref<8x256x128xf32, #tpu.memory_space<vmem>>, %arg10: memref<8x1x128xf32, #tpu.memory_space<vmem>>, %arg11: memref<256x128xf32, #tpu.memory_space<vmem>>) attributes {dimension_semantics = [#tpu.dimension_semantics<parallel>], iteration_bounds = array<i64: 1>, scalar_prefetch = 0 : i64, scratch_operands = 0 : i64, tpu.core_type = #tpu.core_type<tc>, window_params = [{transform_indices = @transform_0, window_bounds = array<i64: 256, 128>}, {transform_indices = @transform_1, window_bounds = array<i64: 256, 8>}, {pipeline_mode = #tpu.pipeline_mode<synchronous>, transform_indices = @transform_2, window_bounds = array<i64: 128, 8>}, {pipeline_mode = #tpu.pipeline_mode<synchronous>, transform_indices = @transform_3, window_bounds = array<i64: 1, 8>}, {pipeline_mode = #tpu.pipeline_mode<synchronous>, transform_indices = @transform_4, window_bounds = array<i64: 128, 8>}, {pipeline_mode = #tpu.pipeline_mode<synchronous>, transform_indices = @transform_5, window_bounds = array<i64: 1, 8>}, {pipeline_mode = #tpu.pipeline_mode<synchronous>, transform_indices = @transform_6, window_bounds = array<i64: 8, 128, 256>}, {pipeline_mode = #tpu.pipeline_mode<synchronous>, transform_indices = @transform_7, window_bounds = array<i64: 8, 1, 256>}, {pipeline_mode = #tpu.pipeline_mode<synchronous>, transform_indices = @transform_8, window_bounds = array<i64: 8, 256, 128>}, {pipeline_mode = #tpu.pipeline_mode<synchronous>, transform_indices = @transform_9, window_bounds = array<i64: 8, 1, 128>}, {transform_indices = @transform_10, window_bounds = array<i64: 256, 128>}]} {
    %c0 = arith.constant 0 : index
    %c0_0 = arith.constant 0 : index
    %0 = vector.load %arg1[%c0, %c0_0] : memref<256x128xf32, #tpu.memory_space<vmem>>, vector<256x128xf32>
    %c0_1 = arith.constant 0 : index
    %c0_2 = arith.constant 0 : index
    %1 = vector.load %arg2[%c0_1, %c0_2] : memref<256x8xf32, #tpu.memory_space<vmem>>, vector<256x8xf32>
    %c0_3 = arith.constant 0 : index
    %c0_4 = arith.constant 0 : index
    %2 = vector.load %arg3[%c0_3, %c0_4] : memref<128x8xf32, #tpu.memory_space<vmem>>, vector<128x8xf32>
    %c0_5 = arith.constant 0 : index
    %c0_6 = arith.constant 0 : index
    %3 = vector.load %arg4[%c0_5, %c0_6] : memref<1x8xf32, #tpu.memory_space<vmem>>, vector<1x8xf32>
    %c0_7 = arith.constant 0 : index
    %c0_8 = arith.constant 0 : index
    %4 = vector.load %arg5[%c0_7, %c0_8] : memref<128x8xf32, #tpu.memory_space<vmem>>, vector<128x8xf32>
    %c0_9 = arith.constant 0 : index
    %c0_10 = arith.constant 0 : index
    %5 = vector.load %arg6[%c0_9, %c0_10] : memref<1x8xf32, #tpu.memory_space<vmem>>, vector<1x8xf32>
    %cst = arith.constant dense<0.000000e+00> : vector<256x8xf32>
    %6 = tpu.matmul %0, %2, %cst {dimension_numbers = #tpu.dot_dimension_numbers<[1], [0], [0], [1], [0, 0, 1, 1], [], []>} : vector<256x128xf32>, vector<128x8xf32>, vector<256x8xf32> -> vector<256x8xf32>
    %7 = vector.broadcast %3 : vector<1x8xf32> to vector<256x8xf32>
    %8 = arith.addf %6, %7 : vector<256x8xf32>
    %cst_11 = arith.constant dense<0.000000e+00> : vector<256x8xf32>
    %9 = tpu.matmul %0, %4, %cst_11 {dimension_numbers = #tpu.dot_dimension_numbers<[1], [0], [0], [1], [0, 0, 1, 1], [], []>} : vector<256x128xf32>, vector<128x8xf32>, vector<256x8xf32> -> vector<256x8xf32>
    %10 = vector.broadcast %5 : vector<1x8xf32> to vector<256x8xf32>
    %11 = arith.addf %9, %10 : vector<256x8xf32>
    %cst_12 = arith.constant 0.000000e+00 : f32
    %12 = vector.broadcast %cst_12 : f32 to vector<256x8xf32>
    %13 = arith.maximumf %11, %12 : vector<256x8xf32>
    %14 = math.absf %11 : vector<256x8xf32>
    %cst_13 = arith.constant 0.000000e+00 : f32
    %15 = vector.broadcast %cst_13 : f32 to vector<256x8xf32>
    %16 = arith.subf %15, %14 : vector<256x8xf32>
    %17 = math.exp %16 : vector<256x8xf32>
    %18 = math.log1p %17 : vector<256x8xf32>
    %19 = arith.addf %13, %18 : vector<256x8xf32>
    %20 = arith.mulf %1, %19 : vector<256x8xf32>
    %21 = arith.addf %8, %20 : vector<256x8xf32>
    %22 = tpu.iota {dimensions = array<i32: 1>} : vector<256x8xi32>
    %false = arith.constant false
    %23 = vector.broadcast %false : i1 to vector<256x8xi1>
    %cst_14 = arith.constant 0xFF800000 : f32
    %24 = vector.broadcast %cst_14 : f32 to vector<256x8xf32>
    %25 = arith.select %23, %24, %21 : vector<256x8xi1>, vector<256x8xf32>
    %cst_15 = arith.constant dense<0xFF800000> : vector<256xf32>
    %26 = vector.multi_reduction <maximumf>, %25, %cst_15 [1] : vector<256x8xf32> to vector<256xf32>
    %27 = vector.shape_cast %26 : vector<256xf32> to vector<256x1xf32>
    %28 = vector.broadcast %27 : vector<256x1xf32> to vector<256x8xf32>
    %29 = arith.cmpf oeq, %25, %28 : vector<256x8xf32>
    %c8_i32 = arith.constant 8 : i32
    %30 = vector.broadcast %c8_i32 : i32 to vector<256x8xi32>
    %31 = arith.select %29, %22, %30 : vector<256x8xi1>, vector<256x8xi32>
    %cst_16 = arith.constant dense<2147483647> : vector<256xi32>
    %32 = vector.multi_reduction <minsi>, %31, %cst_16 [1] : vector<256x8xi32> to vector<256xi32>
    %33 = vector.shape_cast %32 : vector<256xi32> to vector<256x1xi32>
    %34 = vector.broadcast %33 : vector<256x1xi32> to vector<256x8xi32>
    %35 = arith.cmpi eq, %22, %34 : vector<256x8xi32>
    %36 = arith.ori %23, %35 : vector<256x8xi1>
    %cst_17 = arith.constant 0xFF800000 : f32
    %37 = vector.broadcast %cst_17 : f32 to vector<256x8xf32>
    %38 = arith.select %36, %37, %21 : vector<256x8xi1>, vector<256x8xf32>
    %cst_18 = arith.constant dense<0xFF800000> : vector<256xf32>
    %39 = vector.multi_reduction <maximumf>, %38, %cst_18 [1] : vector<256x8xf32> to vector<256xf32>
    %40 = vector.shape_cast %39 : vector<256xf32> to vector<256x1xf32>
    %41 = vector.broadcast %40 : vector<256x1xf32> to vector<256x8xf32>
    %42 = arith.cmpf oeq, %38, %41 : vector<256x8xf32>
    %c8_i32_19 = arith.constant 8 : i32
    %43 = vector.broadcast %c8_i32_19 : i32 to vector<256x8xi32>
    %44 = arith.select %42, %22, %43 : vector<256x8xi1>, vector<256x8xi32>
    %cst_20 = arith.constant dense<2147483647> : vector<256xi32>
    %45 = vector.multi_reduction <minsi>, %44, %cst_20 [1] : vector<256x8xi32> to vector<256xi32>
    %46 = vector.shape_cast %45 : vector<256xi32> to vector<256x1xi32>
    %47 = vector.broadcast %46 : vector<256x1xi32> to vector<256x8xi32>
    %48 = arith.cmpi eq, %22, %47 : vector<256x8xi32>
    %49 = arith.ori %36, %48 : vector<256x8xi1>
    %cst_21 = arith.constant 0xFF800000 : f32
    %50 = vector.broadcast %cst_21 : f32 to vector<256x8xf32>
    %51 = arith.select %49, %21, %50 : vector<256x8xi1>, vector<256x8xf32>
    %cst_22 = arith.constant dense<0xFF800000> : vector<256xf32>
    %52 = vector.multi_reduction <maximumf>, %51, %cst_22 [1] : vector<256x8xf32> to vector<256xf32>
    %53 = vector.shape_cast %52 : vector<256xf32> to vector<256x1xf32>
    %54 = vector.broadcast %53 : vector<256x1xf32> to vector<256x8xf32>
    %55 = arith.subf %21, %54 : vector<256x8xf32>
    %56 = math.exp %55 : vector<256x8xf32>
    %cst_23 = arith.constant 0.000000e+00 : f32
    %57 = vector.broadcast %cst_23 : f32 to vector<256x8xf32>
    %58 = arith.select %49, %56, %57 : vector<256x8xi1>, vector<256x8xf32>
    %cst_24 = arith.constant dense<0.000000e+00> : vector<256xf32>
    %59 = vector.multi_reduction <add>, %58, %cst_24 [1] : vector<256x8xf32> to vector<256xf32>
    %60 = vector.shape_cast %59 : vector<256xf32> to vector<256x1xf32>
    %61 = tpu.reciprocal %60 {approx = true} : vector<256x1xf32> -> vector<256x1xf32>
    %62 = arith.mulf %60, %61 : vector<256x1xf32>
    %cst_25 = arith.constant 2.000000e+00 : f32
    %63 = vector.broadcast %cst_25 : f32 to vector<256x1xf32>
    %64 = arith.subf %63, %62 : vector<256x1xf32>
    %65 = arith.mulf %61, %64 : vector<256x1xf32>
    %66 = vector.broadcast %65 : vector<256x1xf32> to vector<256x8xf32>
    %67 = arith.mulf %58, %66 : vector<256x8xf32>
    %68 = tpu.iota {dimensions = array<i32: 1>} : vector<256x8xi32>
    %cst_26 = arith.constant 0.000000e+00 : f32
    %69 = vector.broadcast %cst_26 : f32 to vector<256x128xf32>
    %c0_27 = arith.constant 0 : index
    %c0_28 = arith.constant 0 : index
    %70 = vector.load %arg11[%c0_27, %c0_28] : memref<256x128xf32, #tpu.memory_space<vmem>>, vector<256x128xf32>
    tpu.vector_store %arg11[%c0_27, %c0_28], %69 {strides = array<i32>} : memref<256x128xf32, #tpu.memory_space<vmem>>, vector<256x128xf32>,
    %c0_i32 = arith.constant 0 : i32
    %c8_i32_29 = arith.constant 8 : i32
    %71 = arith.addi %c0_i32, %c8_i32_29 : i32
    %c1_i32 = arith.constant 1 : i32
    scf.for %arg12 = %c0_i32 to %71 step %c1_i32  : i32 {
      %c1_i32_31 = arith.constant 1 : i32
      %72 = arith.muli %arg12, %c1_i32_31 : i32
      %c0_i32_32 = arith.constant 0 : i32
      %73 = arith.addi %c0_i32_32, %72 : i32
      %c0_33 = arith.constant 0 : index
      %c0_34 = arith.constant 0 : index
      %74 = vector.load %arg11[%c0_33, %c0_34] : memref<256x128xf32, #tpu.memory_space<vmem>>, vector<256x128xf32>
      %75 = vector.broadcast %73 : i32 to vector<256x8xi32>
      %76 = arith.cmpi eq, %68, %75 : vector<256x8xi32>
      %cst_35 = arith.constant 0.000000e+00 : f32
      %77 = vector.broadcast %cst_35 : f32 to vector<256x8xf32>
      %78 = arith.select %76, %67, %77 : vector<256x8xi1>, vector<256x8xf32>
      %cst_36 = arith.constant dense<0.000000e+00> : vector<256xf32>
      %79 = vector.multi_reduction <add>, %78, %cst_36 [1] : vector<256x8xf32> to vector<256xf32>
      %80 = vector.shape_cast %79 : vector<256xf32> to vector<256x1xf32>
      %81 = arith.index_cast %73 : i32 to index
      %c0_37 = arith.constant 0 : index
      %c0_38 = arith.constant 0 : index
      %82 = vector.load %arg7[%81, %c0_37, %c0_38] : memref<8x128x256xf32, #tpu.memory_space<vmem>>, vector<1x128x256xf32>
      %83 = vector.shape_cast %82 : vector<1x128x256xf32> to vector<128x256xf32>
      %cst_39 = arith.constant dense<0.000000e+00> : vector<256x256xf32>
      %84 = tpu.matmul %0, %83, %cst_39 {dimension_numbers = #tpu.dot_dimension_numbers<[1], [0], [0], [1], [0, 0, 1, 1], [], []>} : vector<256x128xf32>, vector<128x256xf32>, vector<256x256xf32> -> vector<256x256xf32>
      %85 = arith.index_cast %73 : i32 to index
      %c0_40 = arith.constant 0 : index
      %c0_41 = arith.constant 0 : index
      %86 = vector.load %arg8[%85, %c0_40, %c0_41] : memref<8x1x256xf32, #tpu.memory_space<vmem>>, vector<1x1x256xf32>
      %87 = vector.shape_cast %86 : vector<1x1x256xf32> to vector<1x256xf32>
      %88 = vector.broadcast %87 : vector<1x256xf32> to vector<256x256xf32>
      %89 = arith.addf %84, %88 : vector<256x256xf32>
      %cst_42 = arith.constant 0.000000e+00 : f32
      %90 = vector.broadcast %cst_42 : f32 to vector<256x256xf32>
      %91 = arith.maximumf %89, %90 : vector<256x256xf32>
      %92 = arith.index_cast %73 : i32 to index
      %c0_43 = arith.constant 0 : index
      %c0_44 = arith.constant 0 : index
      %93 = vector.load %arg9[%92, %c0_43, %c0_44] : memref<8x256x128xf32, #tpu.memory_space<vmem>>, vector<1x256x128xf32>
      %94 = vector.shape_cast %93 : vector<1x256x128xf32> to vector<256x128xf32>
      %cst_45 = arith.constant dense<0.000000e+00> : vector<256x128xf32>
      %95 = tpu.matmul %91, %94, %cst_45 {dimension_numbers = #tpu.dot_dimension_numbers<[1], [0], [0], [1], [0, 0, 1, 1], [], []>} : vector<256x256xf32>, vector<256x128xf32>, vector<256x128xf32> -> vector<256x128xf32>
      %96 = arith.index_cast %73 : i32 to index
      %c0_46 = arith.constant 0 : index
      %c0_47 = arith.constant 0 : index
      %97 = vector.load %arg10[%96, %c0_46, %c0_47] : memref<8x1x128xf32, #tpu.memory_space<vmem>>, vector<1x1x128xf32>
      %98 = vector.shape_cast %97 : vector<1x1x128xf32> to vector<1x128xf32>
      %99 = vector.broadcast %98 : vector<1x128xf32> to vector<256x128xf32>
      %100 = arith.addf %95, %99 : vector<256x128xf32>
      %101 = vector.broadcast %80 : vector<256x1xf32> to vector<256x128xf32>
      %102 = arith.mulf %101, %100 : vector<256x128xf32>
      %103 = arith.addf %74, %102 : vector<256x128xf32>
      %c0_48 = arith.constant 0 : index
      %c0_49 = arith.constant 0 : index
      %104 = vector.load %arg11[%c0_48, %c0_49] : memref<256x128xf32, #tpu.memory_space<vmem>>, vector<256x128xf32>
      tpu.vector_store %arg11[%c0_48, %c0_49], %103 {strides = array<i32>} : memref<256x128xf32, #tpu.memory_space<vmem>>, vector<256x128xf32>,
    }
    %c8_i32_30 = arith.constant 8 : i32
    return
  }
  func.func @transform_0(%arg0: i32) -> (i32, i32) {
    %c0_i32 = arith.constant 0 : i32
    %c0_i32_0 = arith.constant 0 : i32
    return %arg0, %c0_i32 : i32, i32
  }
  func.func @transform_1(%arg0: i32) -> (i32, i32) {
    %c0_i32 = arith.constant 0 : i32
    %c0_i32_0 = arith.constant 0 : i32
    return %arg0, %c0_i32 : i32, i32
  }
  func.func @transform_2(%arg0: i32) -> (i32, i32) {
    %c0_i32 = arith.constant 0 : i32
    %c0_i32_0 = arith.constant 0 : i32
    %c0_i32_1 = arith.constant 0 : i32
    return %c0_i32, %c0_i32_0 : i32, i32
  }
  func.func @transform_3(%arg0: i32) -> (i32, i32) {
    %c0_i32 = arith.constant 0 : i32
    %c0_i32_0 = arith.constant 0 : i32
    %c0_i32_1 = arith.constant 0 : i32
    return %c0_i32, %c0_i32_0 : i32, i32
  }
  func.func @transform_4(%arg0: i32) -> (i32, i32) {
    %c0_i32 = arith.constant 0 : i32
    %c0_i32_0 = arith.constant 0 : i32
    %c0_i32_1 = arith.constant 0 : i32
    return %c0_i32, %c0_i32_0 : i32, i32
  }
  func.func @transform_5(%arg0: i32) -> (i32, i32) {
    %c0_i32 = arith.constant 0 : i32
    %c0_i32_0 = arith.constant 0 : i32
    %c0_i32_1 = arith.constant 0 : i32
    return %c0_i32, %c0_i32_0 : i32, i32
  }
  func.func @transform_6(%arg0: i32) -> (i32, i32, i32) {
    %c0_i32 = arith.constant 0 : i32
    %c0_i32_0 = arith.constant 0 : i32
    %c0_i32_1 = arith.constant 0 : i32
    %c0_i32_2 = arith.constant 0 : i32
    return %c0_i32, %c0_i32_0, %c0_i32_1 : i32, i32, i32
  }
  func.func @transform_7(%arg0: i32) -> (i32, i32, i32) {
    %c0_i32 = arith.constant 0 : i32
    %c0_i32_0 = arith.constant 0 : i32
    %c0_i32_1 = arith.constant 0 : i32
    %c0_i32_2 = arith.constant 0 : i32
    return %c0_i32, %c0_i32_0, %c0_i32_1 : i32, i32, i32
  }
  func.func @transform_8(%arg0: i32) -> (i32, i32, i32) {
    %c0_i32 = arith.constant 0 : i32
    %c0_i32_0 = arith.constant 0 : i32
    %c0_i32_1 = arith.constant 0 : i32
    %c0_i32_2 = arith.constant 0 : i32
    return %c0_i32, %c0_i32_0, %c0_i32_1 : i32, i32, i32
  }
  func.func @transform_9(%arg0: i32) -> (i32, i32, i32) {
    %c0_i32 = arith.constant 0 : i32
    %c0_i32_0 = arith.constant 0 : i32
    %c0_i32_1 = arith.constant 0 : i32
    %c0_i32_2 = arith.constant 0 : i32
    return %c0_i32, %c0_i32_0, %c0_i32_1 : i32, i32, i32
  }
  func.func @transform_10(%arg0: i32) -> (i32, i32) {
    %c0_i32 = arith.constant 0 : i32
    %c0_i32_0 = arith.constant 0 : i32
    return %arg0, %c0_i32 : i32, i32
  }
}

</mosaic_0001>

<llo_original>
// kernel: tpu_custom_call.1
$region0: #{tpu_custom_call.1}
  #allocation0 [shape = 'u32[]', space=smem, size = 0x4, offset = 0x4, fixed_abs, tag = 'smem constant byte address 0x4 - core index']
  #allocation1 [shape = 'u32[144,128]{1,0:T(1,128)}', space=vmem, size = 0x12000, scoped, tag = 'internal scratch']
  %s0 = inlined_call_operand.vmem [shape: f32[256,128], index: 0, kind: input, shape index: {}]
  %s1 = inlined_call_operand.vmem [shape: f32[256,8], index: 1, kind: input, shape index: {}]
  %s2 = inlined_call_operand.vmem [shape: f32[128,8], index: 2, kind: input, shape index: {}]
  %s3 = inlined_call_operand.vmem [shape: f32[1,8], index: 3, kind: input, shape index: {}]
  %s4 = inlined_call_operand.vmem [shape: f32[128,8], index: 4, kind: input, shape index: {}]
  %s5 = inlined_call_operand.vmem [shape: f32[1,8], index: 5, kind: input, shape index: {}]
  %s6 = inlined_call_operand.hbm [shape: f32[8,128,256], index: 6, kind: input, shape index: {}]
  %s7 = inlined_call_operand.vmem [shape: f32[8,1,256], index: 7, kind: input, shape index: {}]
  %s8 = inlined_call_operand.hbm [shape: f32[8,256,128], index: 8, kind: input, shape index: {}]
  %s9 = inlined_call_operand.vmem [shape: f32[8,1,128], index: 9, kind: input, shape index: {}]
  %s10 = inlined_call_operand.hbm [shape: f32[256,128], index: 10, kind: output, shape index: {}]
  %s11 = sld [smem:[#allocation0]]
  $region65: #{tpu_custom_call.1} parent=0
    _
  %s13 = ssub.s32 1, %s11
  %s14 = scalar_select 0, %s13, %s11
  $region1: #{tpu_custom_call.1} parent=0
    #allocation2 [shape = 'u8[1048576]{0}', space=vmem, size = 0x100000, scoped, tag = 'input window, operand 6, single buffered']
    #allocation3 [shape = 's32[1]{0}', space=sflag, size = 0x4, scoped, tag = 'scoped memory for tpu_custom_call.1']
    #allocation4 [shape = 's32[1]{0}', space=sflag, size = 0x4, scoped, tag = 'scoped memory for tpu_custom_call.1']
    #allocation5 [shape = 'u8[1048576]{0}', space=vmem, size = 0x100000, scoped, tag = 'input window, operand 8, single buffered']
    #allocation6 [shape = 's32[1]{0}', space=sflag, size = 0x4, scoped, tag = 'scoped memory for tpu_custom_call.1']
    #allocation7 [shape = 'u8[131072]{0}', space=vmem, size = 0x20000, scoped, tag = 'output window, operand 0, single buffered']
    %15 = vsyncpa [#allocation3], 0
    %16 = vsyncpa [#allocation6], 0
    %17 = vsyncpa [#allocation4], 0
    // Predicated region
    $region2: #{tpu_custom_call.1} parent=1 // pred_check
      _
    $region3: #{tpu_custom_call.1} parent=1 // pred_check_branch
      %19 = sbr.rel (0) target = $region5
    $region4: #{tpu_custom_call.1} parent=1 // pred_region
      _
    $region5: #{tpu_custom_call.1} parent=1 // pred_fallthru
      _
    // Predicated region
    $region6: #{tpu_custom_call.1} parent=1 // pred_check
      _
    $region7: #{tpu_custom_call.1} parent=1 // pred_check_branch
      %21 = sbr.rel (0) target = $region9
    $region8: #{tpu_custom_call.1} parent=1 // pred_region
      _
    $region9: #{tpu_custom_call.1} parent=1 // pred_fallthru
      _
    // Predicated region
    $region10: #{tpu_custom_call.1} parent=1 // pred_check
      _
    $region11: #{tpu_custom_call.1} parent=1 // pred_check_branch
      %23 = sbr.rel (0) target = $region13
    $region12: #{tpu_custom_call.1} parent=1 // pred_region
      _
    $region13: #{tpu_custom_call.1} parent=1 // pred_fallthru
      _
    // Predicated region
    $region14: #{tpu_custom_call.1} parent=1 // pred_check
      _
    $region15: #{tpu_custom_call.1} parent=1 // pred_check_branch
      %25 = sbr.rel (0) target = $region17
    $region16: #{tpu_custom_call.1} parent=1 // pred_region
      _
    $region17: #{tpu_custom_call.1} parent=1 // pred_fallthru
      _
    // Predicated region
    $region18: #{tpu_custom_call.1} parent=1 // pred_check
      _
    $region19: #{tpu_custom_call.1} parent=1 // pred_check_branch
      %27 = sbr.rel (0) target = $region21
    $region20: #{tpu_custom_call.1} parent=1 // pred_region
      _
    $region21: #{tpu_custom_call.1} parent=1 // pred_fallthru
      _
    // Predicated region
    $region22: #{tpu_custom_call.1} parent=1 // pred_check
      _
    $region23: #{tpu_custom_call.1} parent=1 // pred_check_branch
      %29 = sbr.rel (0) target = $region25
    $region24: #{tpu_custom_call.1} parent=1 // pred_region
      _
    $region25: #{tpu_custom_call.1} parent=1 // pred_fallthru
      _
    // Predicated region
    $region26: #{tpu_custom_call.1} parent=1 // pred_check
      _
    $region27: #{tpu_custom_call.1} parent=1 // pred_check_branch
      %31 = sbr.rel (0) target = $region29
    $region28: #{tpu_custom_call.1} parent=1 // pred_region
      %s33 = ssub.s32 32768, 32768
      %34 = vsyncadd [#allocation3], %s33
      %s35 = sshll.u32 [#allocation2], 4
      %s36 = int_to_ptr.vmem [resolvable:$true] %s35
      %41 = dma.hbm_to_vmem [thread:$0]  %s6, 32768, %s36, [#allocation3], 256, 256, 16
    $region29: #{tpu_custom_call.1} parent=1 // pred_fallthru
      _
    // Predicated region
    $region30: #{tpu_custom_call.1} parent=1 // pred_check
      _
    $region31: #{tpu_custom_call.1} parent=1 // pred_check_branch
      %43 = sbr.rel (0) target = $region33
    $region32: #{tpu_custom_call.1} parent=1 // pred_region
      _
    $region33: #{tpu_custom_call.1} parent=1 // pred_fallthru
      _
    // Predicated region
    $region34: #{tpu_custom_call.1} parent=1 // pred_check
      _
    $region35: #{tpu_custom_call.1} parent=1 // pred_check_branch
      %45 = sbr.rel (0) target = $region37
    $region36: #{tpu_custom_call.1} parent=1 // pred_region
      %s47 = ssub.s32 32768, 32768
      %48 = vsyncadd [#allocation6], %s47
      %s49 = sshll.u32 [#allocation5], 4
      %s50 = int_to_ptr.vmem [resolvable:$true] %s49
      %55 = dma.hbm_to_vmem [thread:$0]  %s8, 32768, %s50, [#allocation6], 128, 128, 8
    $region37: #{tpu_custom_call.1} parent=1 // pred_fallthru
      _
    // Predicated region
    $region38: #{tpu_custom_call.1} parent=1 // pred_check
      _
    $region39: #{tpu_custom_call.1} parent=1 // pred_check_branch
      %57 = sbr.rel (0) target = $region41
    $region40: #{tpu_custom_call.1} parent=1 // pred_region
      _
    $region41: #{tpu_custom_call.1} parent=1 // pred_fallthru
      _
    // Predicated region
    $region42: #{tpu_custom_call.1} parent=1 // pred_check
      _
    $region43: #{tpu_custom_call.1} parent=1 // pred_check_branch
      %59 = sbr.rel (0) target = $region45
    $region44: #{tpu_custom_call.1} parent=1 // pred_region
      %60 = dma.done [#allocation3], 32768
    $region45: #{tpu_custom_call.1} parent=1 // pred_fallthru
      _
    // Predicated region
    $region46: #{tpu_custom_call.1} parent=1 // pred_check
      _
    $region47: #{tpu_custom_call.1} parent=1 // pred_check_branch
      %62 = sbr.rel (0) target = $region49
    $region48: #{tpu_custom_call.1} parent=1 // pred_region
      %63 = dma.done [#allocation6], 32768
    $region49: #{tpu_custom_call.1} parent=1 // pred_fallthru
      _
    %v64 = vld [vmem:[%s0] sm:$0xff]
    %v65 = vld [vmem:[%s0 + $0x8] sm:$0xff]
    %v66 = vld [vmem:[%s0 + $0x10] sm:$0xff]
    %v67 = vld [vmem:[%s0 + $0x18] sm:$0xff]
    %v68 = vld [vmem:[%s0 + $0x20] sm:$0xff]
    %v69 = vld [vmem:[%s0 + $0x28] sm:$0xff]
    %v70 = vld [vmem:[%s0 + $0x30] sm:$0xff]
    %v71 = vld [vmem:[%s0 + $0x38] sm:$0xff]
    %v72 = vld [vmem:[%s0 + $0x40] sm:$0xff]
    %v73 = vld [vmem:[%s0 + $0x48] sm:$0xff]
    %v74 = vld [vmem:[%s0 + $0x50] sm:$0xff]
    %v75 = vld [vmem:[%s0 + $0x58] sm:$0xff]
    %v76 = vld [vmem:[%s0 + $0x60] sm:$0xff]
    %v77 = vld [vmem:[%s0 + $0x68] sm:$0xff]
    %v78 = vld [vmem:[%s0 + $0x70] sm:$0xff]
    %v79 = vld [vmem:[%s0 + $0x78] sm:$0xff]
    %v80 = vld [vmem:[%s0 + $0x80] sm:$0xff]
    %v81 = vld [vmem:[%s0 + $0x88] sm:$0xff]
    %v82 = vld [vmem:[%s0 + $0x90] sm:$0xff]
    %v83 = vld [vmem:[%s0 + $0x98] sm:$0xff]
    %v84 = vld [vmem:[%s0 + $0xa0] sm:$0xff]
    %v85 = vld [vmem:[%s0 + $0xa8] sm:$0xff]
    %v86 = vld [vmem:[%s0 + $0xb0] sm:$0xff]
    %v87 = vld [vmem:[%s0 + $0xb8] sm:$0xff]
    %v88 = vld [vmem:[%s0 + $0xc0] sm:$0xff]
    %v89 = vld [vmem:[%s0 + $0xc8] sm:$0xff]
    %v90 = vld [vmem:[%s0 + $0xd0] sm:$0xff]
    %v91 = vld [vmem:[%s0 + $0xd8] sm:$0xff]
    %v92 = vld [vmem:[%s0 + $0xe0] sm:$0xff]
    %v93 = vld [vmem:[%s0 + $0xe8] sm:$0xff]
    %v94 = vld [vmem:[%s0 + $0xf0] sm:$0xff]
    %v95 = vld [vmem:[%s0 + $0xf8] sm:$0xff]
    %v96 = vld [vmem:[%s1] sm:$0xff]
    %v97 = vld [vmem:[%s1 + $0x8] sm:$0xff]
    %v98 = vld [vmem:[%s1 + $0x10] sm:$0xff]
    %v99 = vld [vmem:[%s1 + $0x18] sm:$0xff]
    %v100 = vld [vmem:[%s1 + $0x20] sm:$0xff]
    %v101 = vld [vmem:[%s1 + $0x28] sm:$0xff]
    %v102 = vld [vmem:[%s1 + $0x30] sm:$0xff]
    %v103 = vld [vmem:[%s1 + $0x38] sm:$0xff]
    %v104 = vld [vmem:[%s1 + $0x40] sm:$0xff]
    %v105 = vld [vmem:[%s1 + $0x48] sm:$0xff]
    %v106 = vld [vmem:[%s1 + $0x50] sm:$0xff]
    %v107 = vld [vmem:[%s1 + $0x58] sm:$0xff]
    %v108 = vld [vmem:[%s1 + $0x60] sm:$0xff]
    %v109 = vld [vmem:[%s1 + $0x68] sm:$0xff]
    %v110 = vld [vmem:[%s1 + $0x70] sm:$0xff]
    %v111 = vld [vmem:[%s1 + $0x78] sm:$0xff]
    %v112 = vld [vmem:[%s1 + $0x80] sm:$0xff]
    %v113 = vld [vmem:[%s1 + $0x88] sm:$0xff]
    %v114 = vld [vmem:[%s1 + $0x90] sm:$0xff]
    %v115 = vld [vmem:[%s1 + $0x98] sm:$0xff]
    %v116 = vld [vmem:[%s1 + $0xa0] sm:$0xff]
    %v117 = vld [vmem:[%s1 + $0xa8] sm:$0xff]
    %v118 = vld [vmem:[%s1 + $0xb0] sm:$0xff]
    %v119 = vld [vmem:[%s1 + $0xb8] sm:$0xff]
    %v120 = vld [vmem:[%s1 + $0xc0] sm:$0xff]
    %v121 = vld [vmem:[%s1 + $0xc8] sm:$0xff]
    %v122 = vld [vmem:[%s1 + $0xd0] sm:$0xff]
    %v123 = vld [vmem:[%s1 + $0xd8] sm:$0xff]
    %v124 = vld [vmem:[%s1 + $0xe0] sm:$0xff]
    %v125 = vld [vmem:[%s1 + $0xe8] sm:$0xff]
    %v126 = vld [vmem:[%s1 + $0xf0] sm:$0xff]
    %v127 = vld [vmem:[%s1 + $0xf8] sm:$0xff]
    %v128 = vld [vmem:[%s2] sm:$0xff]
    %v129 = vld [vmem:[%s2 + $0x8] sm:$0xff]
    %v130 = vld [vmem:[%s2 + $0x10] sm:$0xff]
    %v131 = vld [vmem:[%s2 + $0x18] sm:$0xff]
    %v132 = vld [vmem:[%s2 + $0x20] sm:$0xff]
    %v133 = vld [vmem:[%s2 + $0x28] sm:$0xff]
    %v134 = vld [vmem:[%s2 + $0x30] sm:$0xff]
    %v135 = vld [vmem:[%s2 + $0x38] sm:$0xff]
    %v136 = vld [vmem:[%s2 + $0x40] sm:$0xff]
    %v137 = vld [vmem:[%s2 + $0x48] sm:$0xff]
    %v138 = vld [vmem:[%s2 + $0x50] sm:$0xff]
    %v139 = vld [vmem:[%s2 + $0x58] sm:$0xff]
    %v140 = vld [vmem:[%s2 + $0x60] sm:$0xff]
    %v141 = vld [vmem:[%s2 + $0x68] sm:$0xff]
    %v142 = vld [vmem:[%s2 + $0x70] sm:$0xff]
    %v143 = vld [vmem:[%s2 + $0x78] sm:$0xff]
    %v144 = vld [vmem:[%s3] sm:$0x1]
    %v145 = vld [vmem:[%s4] sm:$0xff]
    %v146 = vld [vmem:[%s4 + $0x8] sm:$0xff]
    %v147 = vld [vmem:[%s4 + $0x10] sm:$0xff]
    %v148 = vld [vmem:[%s4 + $0x18] sm:$0xff]
    %v149 = vld [vmem:[%s4 + $0x20] sm:$0xff]
    %v150 = vld [vmem:[%s4 + $0x28] sm:$0xff]
    %v151 = vld [vmem:[%s4 + $0x30] sm:$0xff]
    %v152 = vld [vmem:[%s4 + $0x38] sm:$0xff]
    %v153 = vld [vmem:[%s4 + $0x40] sm:$0xff]
    %v154 = vld [vmem:[%s4 + $0x48] sm:$0xff]
    %v155 = vld [vmem:[%s4 + $0x50] sm:$0xff]
    %v156 = vld [vmem:[%s4 + $0x58] sm:$0xff]
    %v157 = vld [vmem:[%s4 + $0x60] sm:$0xff]
    %v158 = vld [vmem:[%s4 + $0x68] sm:$0xff]
    %v159 = vld [vmem:[%s4 + $0x70] sm:$0xff]
    %v160 = vld [vmem:[%s4 + $0x78] sm:$0xff]
    %v161 = vld [vmem:[%s5] sm:$0x1]
    %v163 = vlaneseq
    %v164 = vshrl.u32 %v163, 7
    %v165 = vsub.s32 0, %v164
    %v166 = vrot.slane %v144, %v165
    %168 = vmatprep.subr.mxu0 0.0
    %169 = vmatpush1.msra.mxu0 %v128
    %170 = vmatprep.subr.mxu0 0.0
    %171 = vmatpush1.msra.mxu0 %v129
    %172 = vmatprep.subr.mxu0 0.0
    %173 = vmatpush1.msra.mxu0 %v130
    %174 = vmatprep.subr.mxu0 0.0
    %175 = vmatpush1.msra.mxu0 %v131
    %176 = vmatprep.subr.mxu0 0.0
    %177 = vmatpush1.msra.mxu0 %v132
    %178 = vmatprep.subr.mxu0 0.0
    %179 = vmatpush1.msra.mxu0 %v133
    %180 = vmatprep.subr.mxu0 0.0
    %181 = vmatpush1.msra.mxu0 %v134
    %182 = vmatprep.subr.mxu0 0.0
    %183 = vmatpush1.msra.mxu0 %v135
    %184 = vmatprep.subr.mxu0 0.0
    %185 = vmatpush1.msra.mxu0 %v136
    %186 = vmatprep.subr.mxu0 0.0
    %187 = vmatpush1.msra.mxu0 %v137
    %188 = vmatprep.subr.mxu0 0.0
    %189 = vmatpush1.msra.mxu0 %v138
    %190 = vmatprep.subr.mxu0 0.0
    %191 = vmatpush1.msra.mxu0 %v139
    %192 = vmatprep.subr.mxu0 0.0
    %193 = vmatpush1.msra.mxu0 %v140
    %194 = vmatprep.subr.mxu0 0.0
    %195 = vmatpush1.msra.mxu0 %v141
    %196 = vmatprep.subr.mxu0 0.0
    %197 = vmatpush1.msra.mxu0 %v142
    %198 = vmatprep.subr.mxu0 0.0
    %199 = vmatpush1.msra.mxu0 %v143
    %200 = vmatprep.subr.mxu0 0.0
    %201 = vmatpush1.msra.mxu0 0.0
    %202 = vmatprep.subr.mxu0 0.0
    %203 = vmatpush1.msra.mxu0 0.0
    %204 = vmatprep.subr.mxu0 0.0
    %205 = vmatpush1.msra.mxu0 0.0
    %206 = vmatprep.subr.mxu0 0.0
    %207 = vmatpush1.msra.mxu0 0.0
    %208 = vmatprep.subr.mxu0 0.0
    %209 = vmatpush1.msra.mxu0 0.0
    %210 = vmatprep.subr.mxu0 0.0
    %211 = vmatpush1.msra.mxu0 0.0
    %212 = vmatprep.subr.mxu0 0.0
    %213 = vmatpush1.msra.mxu0 0.0
    %214 = vmatprep.subr.mxu0 0.0
    %215 = vmatpush1.msra.mxu0 0.0
    %216 = vmatprep.subr.mxu0 0.0
    %217 = vmatpush1.msra.mxu0 0.0
    %218 = vmatprep.subr.mxu0 0.0
    %219 = vmatpush1.msra.mxu0 0.0
    %220 = vmatprep.subr.mxu0 0.0
    %221 = vmatpush1.msra.mxu0 0.0
    %222 = vmatprep.subr.mxu0 0.0
    %223 = vmatpush1.msra.mxu0 0.0
    %224 = vmatprep.subr.mxu0 0.0
    %225 = vmatpush1.msra.mxu0 0.0
    %226 = vmatprep.subr.mxu0 0.0
    %227 = vmatpush1.msra.mxu0 0.0
    %228 = vmatprep.subr.mxu0 0.0
    %229 = vmatpush1.msra.mxu0 0.0
    %230 = vmatprep.subr.mxu0 0.0
    %231 = vmatpush1.msra.mxu0 0.0
    %232 = vmatprep.mubr.f32.mxu0 0.0
    %233 = vmatmul.mubr.f32.gmra.mrb[0].mxu0 %v64
    %v234 = vpop.f32.mrb[0].mxu0
    %v235 = vadd.f32 %v166, %v234
    %v236 = vpop.f32.mrb[0].mxu0
    %237 = vmatprep.mubr.f32.mxu0 0.0
    %238 = vmatmul.mubr.f32.gmra.mrb[0].mxu0 %v65
    %v239 = vpop.f32.mrb[0].mxu0
    %v240 = vadd.f32 %v166, %v239
    %v241 = vpop.f32.mrb[0].mxu0
    %242 = vmatprep.mubr.f32.mxu0 0.0
    %243 = vmatmul.mubr.f32.gmra.mrb[0].mxu0 %v66
    %v244 = vpop.f32.mrb[0].mxu0
    %v245 = vadd.f32 %v166, %v244
    %v246 = vpop.f32.mrb[0].mxu0
    %247 = vmatprep.mubr.f32.mxu0 0.0
    %248 = vmatmul.mubr.f32.gmra.mrb[0].mxu0 %v67
    %v249 = vpop.f32.mrb[0].mxu0
    %v250 = vadd.f32 %v166, %v249
    %v251 = vpop.f32.mrb[0].mxu0
    %252 = vmatprep.mubr.f32.mxu0 0.0
    %253 = vmatmul.mubr.f32.gmra.mrb[0].mxu0 %v68
    %v254 = vpop.f32.mrb[0].mxu0
    %v255 = vadd.f32 %v166, %v254
    %v256 = vpop.f32.mrb[0].mxu0
    %257 = vmatprep.mubr.f32.mxu0 0.0
    %258 = vmatmul.mubr.f32.gmra.mrb[0].mxu0 %v69
    %v259 = vpop.f32.mrb[0].mxu0
    %v260 = vadd.f32 %v166, %v259
    %v261 = vpop.f32.mrb[0].mxu0
    %262 = vmatprep.mubr.f32.mxu0 0.0
    %263 = vmatmul.mubr.f32.gmra.mrb[0].mxu0 %v70
    %v264 = vpop.f32.mrb[0].mxu0
    %v265 = vadd.f32 %v166, %v264
    %v266 = vpop.f32.mrb[0].mxu0
    %267 = vmatprep.mubr.f32.mxu0 0.0
    %268 = vmatmul.mubr.f32.gmra.mrb[0].mxu0 %v71
    %v269 = vpop.f32.mrb[0].mxu0
    %v270 = vadd.f32 %v166, %v269
    %v271 = vpop.f32.mrb[0].mxu0
    %272 = vmatprep.mubr.f32.mxu0 0.0
    %273 = vmatmul.mubr.f32.gmra.mrb[0].mxu0 %v72
    %v274 = vpop.f32.mrb[0].mxu0
    %v275 = vadd.f32 %v166, %v274
    %v276 = vpop.f32.mrb[0].mxu0
    %277 = vmatprep.mubr.f32.mxu0 0.0
    %278 = vmatmul.mubr.f32.gmra.mrb[0].mxu0 %v73
    %v279 = vpop.f32.mrb[0].mxu0
    %v280 = vadd.f32 %v166, %v279
    %v281 = vpop.f32.mrb[0].mxu0
    %282 = vmatprep.mubr.f32.mxu0 0.0
    %283 = vmatmul.mubr.f32.gmra.mrb[0].mxu0 %v74
    %v284 = vpop.f32.mrb[0].mxu0
    %v285 = vadd.f32 %v166, %v284
    %v286 = vpop.f32.mrb[0].mxu0
    %287 = vmatprep.mubr.f32.mxu0 0.0
    %288 = vmatmul.mubr.f32.gmra.mrb[0].mxu0 %v75
    %v289 = vpop.f32.mrb[0].mxu0
    %v290 = vadd.f32 %v166, %v289
    %v291 = vpop.f32.mrb[0].mxu0
    %292 = vmatprep.mubr.f32.mxu0 0.0
    %293 = vmatmul.mubr.f32.gmra.mrb[0].mxu0 %v76
    %v294 = vpop.f32.mrb[0].mxu0
    %v295 = vadd.f32 %v166, %v294
    %v296 = vpop.f32.mrb[0].mxu0
    %297 = vmatprep.mubr.f32.mxu0 0.0
    %298 = vmatmul.mubr.f32.gmra.mrb[0].mxu0 %v77
    %v299 = vpop.f32.mrb[0].mxu0
    %v300 = vadd.f32 %v166, %v299
    %v301 = vpop.f32.mrb[0].mxu0
    %302 = vmatprep.mubr.f32.mxu0 0.0
    %303 = vmatmul.mubr.f32.gmra.mrb[0].mxu0 %v78
    %v304 = vpop.f32.mrb[0].mxu0
    %v305 = vadd.f32 %v166, %v304
    %v306 = vpop.f32.mrb[0].mxu0
    %307 = vmatprep.mubr.f32.mxu0 0.0
    %308 = vmatmul.mubr.f32.gmra.mrb[0].mxu0 %v79
    %v309 = vpop.f32.mrb[0].mxu0
    %v310 = vadd.f32 %v166, %v309
    %v311 = vpop.f32.mrb[0].mxu0
    %312 = vmatprep.mubr.f32.mxu0 0.0
    %313 = vmatmul.mubr.f32.gmra.mrb[0].mxu0 %v80
    %v314 = vpop.f32.mrb[0].mxu0
    %v315 = vadd.f32 %v166, %v314
    %v316 = vpop.f32.mrb[0].mxu0
    %317 = vmatprep.mubr.f32.mxu0 0.0
    %318 = vmatmul.mubr.f32.gmra.mrb[0].mxu0 %v81
    %v319 = vpop.f32.mrb[0].mxu0
    %v320 = vadd.f32 %v166, %v319
    %v321 = vpop.f32.mrb[0].mxu0
    %322 = vmatprep.mubr.f32.mxu0 0.0
    %323 = vmatmul.mubr.f32.gmra.mrb[0].mxu0 %v82
    %v324 = vpop.f32.mrb[0].mxu0
    %v325 = vadd.f32 %v166, %v324
    %v326 = vpop.f32.mrb[0].mxu0
    %327 = vmatprep.mubr.f32.mxu0 0.0
    %328 = vmatmul.mubr.f32.gmra.mrb[0].mxu0 %v83
    %v329 = vpop.f32.mrb[0].mxu0
    %v330 = vadd.f32 %v166, %v329
    %v331 = vpop.f32.mrb[0].mxu0
    %332 = vmatprep.mubr.f32.mxu0 0.0
    %333 = vmatmul.mubr.f32.gmra.mrb[0].mxu0 %v84
    %v334 = vpop.f32.mrb[0].mxu0
    %v335 = vadd.f32 %v166, %v334
    %v336 = vpop.f32.mrb[0].mxu0
    %337 = vmatprep.mubr.f32.mxu0 0.0
    %338 = vmatmul.mubr.f32.gmra.mrb[0].mxu0 %v85
    %v339 = vpop.f32.mrb[0].mxu0
    %v340 = vadd.f32 %v166, %v339
    %v341 = vpop.f32.mrb[0].mxu0
    %342 = vmatprep.mubr.f32.mxu0 0.0
    %343 = vmatmul.mubr.f32.gmra.mrb[0].mxu0 %v86
    %v344 = vpop.f32.mrb[0].mxu0
    %v345 = vadd.f32 %v166, %v344
    %v346 = vpop.f32.mrb[0].mxu0
    %347 = vmatprep.mubr.f32.mxu0 0.0
    %348 = vmatmul.mubr.f32.gmra.mrb[0].mxu0 %v87
    %v349 = vpop.f32.mrb[0].mxu0
    %v350 = vadd.f32 %v166, %v349
    %v351 = vpop.f32.mrb[0].mxu0
    %352 = vmatprep.mubr.f32.mxu0 0.0
    %353 = vmatmul.mubr.f32.gmra.mrb[0].mxu0 %v88
    %v354 = vpop.f32.mrb[0].mxu0
    %v355 = vadd.f32 %v166, %v354
    %v356 = vpop.f32.mrb[0].mxu0
    %357 = vmatprep.mubr.f32.mxu0 0.0
    %358 = vmatmul.mubr.f32.gmra.mrb[0].mxu0 %v89
    %v359 = vpop.f32.mrb[0].mxu0
    %v360 = vadd.f32 %v166, %v359
    %v361 = vpop.f32.mrb[0].mxu0
    %362 = vmatprep.mubr.f32.mxu0 0.0
    %363 = vmatmul.mubr.f32.gmra.mrb[0].mxu0 %v90
    %v364 = vpop.f32.mrb[0].mxu0
    %v365 = vadd.f32 %v166, %v364
    %v366 = vpop.f32.mrb[0].mxu0
    %367 = vmatprep.mubr.f32.mxu0 0.0
    %368 = vmatmul.mubr.f32.gmra.mrb[0].mxu0 %v91
    %v369 = vpop.f32.mrb[0].mxu0
    %v370 = vadd.f32 %v166, %v369
    %v371 = vpop.f32.mrb[0].mxu0
    %372 = vmatprep.mubr.f32.mxu0 0.0
    %373 = vmatmul.mubr.f32.gmra.mrb[0].mxu0 %v92
    %v374 = vpop.f32.mrb[0].mxu0
    %v375 = vadd.f32 %v166, %v374
    %v376 = vpop.f32.mrb[0].mxu0
    %377 = vmatprep.mubr.f32.mxu0 0.0
    %378 = vmatmul.mubr.f32.gmra.mrb[0].mxu0 %v93
    %v379 = vpop.f32.mrb[0].mxu0
    %v380 = vadd.f32 %v166, %v379
    %v381 = vpop.f32.mrb[0].mxu0
    %382 = vmatprep.mubr.f32.mxu0 0.0
    %383 = vmatmul.mubr.f32.gmra.mrb[0].mxu0 %v94
    %v384 = vpop.f32.mrb[0].mxu0
    %v385 = vadd.f32 %v166, %v384
    %v386 = vpop.f32.mrb[0].mxu0
    %387 = vmatprep.mubr.f32.mxu0 0.0
    %388 = vmatmul.mubr.f32.gmra.mrb[0].mxu0 %v95
    %v389 = vpop.f32.mrb[0].mxu0
    %v390 = vadd.f32 %v166, %v389
    %v391 = vpop.f32.mrb[0].mxu0
    %392 = vdwg.mxu0
    %v394 = vlaneseq
    %v395 = vshrl.u32 %v394, 7
    %v396 = vsub.s32 0, %v395
    %v397 = vrot.slane %v161, %v396
    %399 = vmatprep.subr.mxu0 0.0
    %400 = vmatpush1.msra.mxu0 %v145
    %401 = vmatprep.subr.mxu0 0.0
    %402 = vmatpush1.msra.mxu0 %v146
    %403 = vmatprep.subr.mxu0 0.0
    %404 = vmatpush1.msra.mxu0 %v147
    %405 = vmatprep.subr.mxu0 0.0
    %406 = vmatpush1.msra.mxu0 %v148
    %407 = vmatprep.subr.mxu0 0.0
    %408 = vmatpush1.msra.mxu0 %v149
    %409 = vmatprep.subr.mxu0 0.0
    %410 = vmatpush1.msra.mxu0 %v150
    %411 = vmatprep.subr.mxu0 0.0
    %412 = vmatpush1.msra.mxu0 %v151
    %413 = vmatprep.subr.mxu0 0.0
    %414 = vmatpush1.msra.mxu0 %v152
    %415 = vmatprep.subr.mxu0 0.0
    %416 = vmatpush1.msra.mxu0 %v153
    %417 = vmatprep.subr.mxu0 0.0
    %418 = vmatpush1.msra.mxu0 %v154
    %419 = vmatprep.subr.mxu0 0.0
    %420 = vmatpush1.msra.mxu0 %v155
    %421 = vmatprep.subr.mxu0 0.0
    %422 = vmatpush1.msra.mxu0 %v156
    %423 = vmatprep.subr.mxu0 0.0
    %424 = vmatpush1.msra.mxu0 %v157
    %425 = vmatprep.subr.mxu0 0.0
    %426 = vmatpush1.msra.mxu0 %v158
    %427 = vmatprep.subr.mxu0 0.0
    %428 = vmatpush1.msra.mxu0 %v159
    %429 = vmatprep.subr.mxu0 0.0
    %430 = vmatpush1.msra.mxu0 %v160
    %431 = vmatprep.subr.mxu0 0.0
    %432 = vmatpush1.msra.mxu0 0.0
    %433 = vmatprep.subr.mxu0 0.0
    %434 = vmatpush1.msra.mxu0 0.0
    %435 = vmatprep.subr.mxu0 0.0
    %436 = vmatpush1.msra.mxu0 0.0
    %437 = vmatprep.subr.mxu0 0.0
    %438 = vmatpush1.msra.mxu0 0.0
    %439 = vmatprep.subr.mxu0 0.0
    %440 = vmatpush1.msra.mxu0 0.0
    %441 = vmatprep.subr.mxu0 0.0
    %442 = vmatpush1.msra.mxu0 0.0
    %443 = vmatprep.subr.mxu0 0.0
    %444 = vmatpush1.msra.mxu0 0.0
    %445 = vmatprep.subr.mxu0 0.0
    %446 = vmatpush1.msra.mxu0 0.0
    %447 = vmatprep.subr.mxu0 0.0
    %448 = vmatpush1.msra.mxu0 0.0
    %449 = vmatprep.subr.mxu0 0.0
    %450 = vmatpush1.msra.mxu0 0.0
    %451 = vmatprep.subr.mxu0 0.0
    %452 = vmatpush1.msra.mxu0 0.0
    %453 = vmatprep.subr.mxu0 0.0
    %454 = vmatpush1.msra.mxu0 0.0
    %455 = vmatprep.subr.mxu0 0.0
    %456 = vmatpush1.msra.mxu0 0.0
    %457 = vmatprep.subr.mxu0 0.0
    %458 = vmatpush1.msra.mxu0 0.0
    %459 = vmatprep.subr.mxu0 0.0
    %460 = vmatpush1.msra.mxu0 0.0
    %461 = vmatprep.subr.mxu0 0.0
    %462 = vmatpush1.msra.mxu0 0.0
    %463 = vmatprep.mubr.f32.mxu0 0.0
    %464 = vmatmul.mubr.f32.gmra.mrb[0].mxu0 %v64
    %v465 = vpop.f32.mrb[0].mxu0
    %v466 = vadd.f32 %v397, %v465
    %v467 = vpop.f32.mrb[0].mxu0
    %468 = vmatprep.mubr.f32.mxu0 0.0
    %469 = vmatmul.mubr.f32.gmra.mrb[0].mxu0 %v65
    %v470 = vpop.f32.mrb[0].mxu0
    %v471 = vadd.f32 %v397, %v470
    %v472 = vpop.f32.mrb[0].mxu0
    %473 = vmatprep.mubr.f32.mxu0 0.0
    %474 = vmatmul.mubr.f32.gmra.mrb[0].mxu0 %v66
    %v475 = vpop.f32.mrb[0].mxu0
    %v476 = vadd.f32 %v397, %v475
    %v477 = vpop.f32.mrb[0].mxu0
    %478 = vmatprep.mubr.f32.mxu0 0.0
    %479 = vmatmul.mubr.f32.gmra.mrb[0].mxu0 %v67
    %v480 = vpop.f32.mrb[0].mxu0
    %v481 = vadd.f32 %v397, %v480
    %v482 = vpop.f32.mrb[0].mxu0
    %483 = vmatprep.mubr.f32.mxu0 0.0
    %484 = vmatmul.mubr.f32.gmra.mrb[0].mxu0 %v68
    %v485 = vpop.f32.mrb[0].mxu0
    %v486 = vadd.f32 %v397, %v485
    %v487 = vpop.f32.mrb[0].mxu0
    %488 = vmatprep.mubr.f32.mxu0 0.0
    %489 = vmatmul.mubr.f32.gmra.mrb[0].mxu0 %v69
    %v490 = vpop.f32.mrb[0].mxu0
    %v491 = vadd.f32 %v397, %v490
    %v492 = vpop.f32.mrb[0].mxu0
    %493 = vmatprep.mubr.f32.mxu0 0.0
    %494 = vmatmul.mubr.f32.gmra.mrb[0].mxu0 %v70
    %v495 = vpop.f32.mrb[0].mxu0
    %v496 = vadd.f32 %v397, %v495
    %v497 = vpop.f32.mrb[0].mxu0
    %498 = vmatprep.mubr.f32.mxu0 0.0
    %499 = vmatmul.mubr.f32.gmra.mrb[0].mxu0 %v71
    %v500 = vpop.f32.mrb[0].mxu0
    %v501 = vadd.f32 %v397, %v500
    %v502 = vpop.f32.mrb[0].mxu0
    %503 = vmatprep.mubr.f32.mxu0 0.0
    %504 = vmatmul.mubr.f32.gmra.mrb[0].mxu0 %v72
    %v505 = vpop.f32.mrb[0].mxu0
    %v506 = vadd.f32 %v397, %v505
    %v507 = vpop.f32.mrb[0].mxu0
    %508 = vmatprep.mubr.f32.mxu0 0.0
    %509 = vmatmul.mubr.f32.gmra.mrb[0].mxu0 %v73
    %v510 = vpop.f32.mrb[0].mxu0
    %v511 = vadd.f32 %v397, %v510
    %v512 = vpop.f32.mrb[0].mxu0
    %513 = vmatprep.mubr.f32.mxu0 0.0
    %514 = vmatmul.mubr.f32.gmra.mrb[0].mxu0 %v74
    %v515 = vpop.f32.mrb[0].mxu0
    %v516 = vadd.f32 %v397, %v515
    %v517 = vpop.f32.mrb[0].mxu0
    %518 = vmatprep.mubr.f32.mxu0 0.0
    %519 = vmatmul.mubr.f32.gmra.mrb[0].mxu0 %v75
    %v520 = vpop.f32.mrb[0].mxu0
    %v521 = vadd.f32 %v397, %v520
    %v522 = vpop.f32.mrb[0].mxu0
    %523 = vmatprep.mubr.f32.mxu0 0.0
    %524 = vmatmul.mubr.f32.gmra.mrb[0].mxu0 %v76
    %v525 = vpop.f32.mrb[0].mxu0
    %v526 = vadd.f32 %v397, %v525
    %v527 = vpop.f32.mrb[0].mxu0
    %528 = vmatprep.mubr.f32.mxu0 0.0
    %529 = vmatmul.mubr.f32.gmra.mrb[0].mxu0 %v77
    %v530 = vpop.f32.mrb[0].mxu0
    %v531 = vadd.f32 %v397, %v530
    %v532 = vpop.f32.mrb[0].mxu0
    %533 = vmatprep.mubr.f32.mxu0 0.0
    %534 = vmatmul.mubr.f32.gmra.mrb[0].mxu0 %v78
    %v535 = vpop.f32.mrb[0].mxu0
    %v536 = vadd.f32 %v397, %v535
    %v537 = vpop.f32.mrb[0].mxu0
    %538 = vmatprep.mubr.f32.mxu0 0.0
    %539 = vmatmul.mubr.f32.gmra.mrb[0].mxu0 %v79
    %v540 = vpop.f32.mrb[0].mxu0
    %v541 = vadd.f32 %v397, %v540
    %v542 = vpop.f32.mrb[0].mxu0
    %543 = vmatprep.mubr.f32.mxu0 0.0
    %544 = vmatmul.mubr.f32.gmra.mrb[0].mxu0 %v80
    %v545 = vpop.f32.mrb[0].mxu0
    %v546 = vadd.f32 %v397, %v545
    %v547 = vpop.f32.mrb[0].mxu0
    %548 = vmatprep.mubr.f32.mxu0 0.0
    %549 = vmatmul.mubr.f32.gmra.mrb[0].mxu0 %v81
    %v550 = vpop.f32.mrb[0].mxu0
    %v551 = vadd.f32 %v397, %v550
    %v552 = vpop.f32.mrb[0].mxu0
    %553 = vmatprep.mubr.f32.mxu0 0.0
    %554 = vmatmul.mubr.f32.gmra.mrb[0].mxu0 %v82
    %v555 = vpop.f32.mrb[0].mxu0
    %v556 = vadd.f32 %v397, %v555
    %v557 = vpop.f32.mrb[0].mxu0
    %558 = vmatprep.mubr.f32.mxu0 0.0
    %559 = vmatmul.mubr.f32.gmra.mrb[0].mxu0 %v83
    %v560 = vpop.f32.mrb[0].mxu0
    %v561 = vadd.f32 %v397, %v560
    %v562 = vpop.f32.mrb[0].mxu0
    %563 = vmatprep.mubr.f32.mxu0 0.0
    %564 = vmatmul.mubr.f32.gmra.mrb[0].mxu0 %v84
    %v565 = vpop.f32.mrb[0].mxu0
    %v566 = vadd.f32 %v397, %v565
    %v567 = vpop.f32.mrb[0].mxu0
    %568 = vmatprep.mubr.f32.mxu0 0.0
    %569 = vmatmul.mubr.f32.gmra.mrb[0].mxu0 %v85
    %v570 = vpop.f32.mrb[0].mxu0
    %v571 = vadd.f32 %v397, %v570
    %v572 = vpop.f32.mrb[0].mxu0
    %573 = vmatprep.mubr.f32.mxu0 0.0
    %574 = vmatmul.mubr.f32.gmra.mrb[0].mxu0 %v86
    %v575 = vpop.f32.mrb[0].mxu0
    %v576 = vadd.f32 %v397, %v575
    %v577 = vpop.f32.mrb[0].mxu0
    %578 = vmatprep.mubr.f32.mxu0 0.0
    %579 = vmatmul.mubr.f32.gmra.mrb[0].mxu0 %v87
    %v580 = vpop.f32.mrb[0].mxu0
    %v581 = vadd.f32 %v397, %v580
    %v582 = vpop.f32.mrb[0].mxu0
    %583 = vmatprep.mubr.f32.mxu0 0.0
    %584 = vmatmul.mubr.f32.gmra.mrb[0].mxu0 %v88
    %v585 = vpop.f32.mrb[0].mxu0
    %v586 = vadd.f32 %v397, %v585
    %v587 = vpop.f32.mrb[0].mxu0
    %588 = vmatprep.mubr.f32.mxu0 0.0
    %589 = vmatmul.mubr.f32.gmra.mrb[0].mxu0 %v89
    %v590 = vpop.f32.mrb[0].mxu0
    %v591 = vadd.f32 %v397, %v590
    %v592 = vpop.f32.mrb[0].mxu0
    %593 = vmatprep.mubr.f32.mxu0 0.0
    %594 = vmatmul.mubr.f32.gmra.mrb[0].mxu0 %v90
    %v595 = vpop.f32.mrb[0].mxu0
    %v596 = vadd.f32 %v397, %v595
    %v597 = vpop.f32.mrb[0].mxu0
    %598 = vmatprep.mubr.f32.mxu0 0.0
    %599 = vmatmul.mubr.f32.gmra.mrb[0].mxu0 %v91
    %v600 = vpop.f32.mrb[0].mxu0
    %v601 = vadd.f32 %v397, %v600
    %v602 = vpop.f32.mrb[0].mxu0
    %603 = vmatprep.mubr.f32.mxu0 0.0
    %604 = vmatmul.mubr.f32.gmra.mrb[0].mxu0 %v92
    %v605 = vpop.f32.mrb[0].mxu0
    %v606 = vadd.f32 %v397, %v605
    %v607 = vpop.f32.mrb[0].mxu0
    %608 = vmatprep.mubr.f32.mxu0 0.0
    %609 = vmatmul.mubr.f32.gmra.mrb[0].mxu0 %v93
    %v610 = vpop.f32.mrb[0].mxu0
    %v611 = vadd.f32 %v397, %v610
    %v612 = vpop.f32.mrb[0].mxu0
    %613 = vmatprep.mubr.f32.mxu0 0.0
    %614 = vmatmul.mubr.f32.gmra.mrb[0].mxu0 %v94
    %v615 = vpop.f32.mrb[0].mxu0
    %v616 = vadd.f32 %v397, %v615
    %v617 = vpop.f32.mrb[0].mxu0
    %618 = vmatprep.mubr.f32.mxu0 0.0
    %619 = vmatmul.mubr.f32.gmra.mrb[0].mxu0 %v95
    %v620 = vpop.f32.mrb[0].mxu0
    %v621 = vadd.f32 %v397, %v620
    %v622 = vpop.f32.mrb[0].mxu0
    %623 = vdwg.mxu0
    %v624 = vmax.f32 %v466, 0.0
    %v625 = vmax.f32 %v471, 0.0
    %v626 = vmax.f32 %v476, 0.0
    %v627 = vmax.f32 %v481, 0.0
    %v628 = vmax.f32 %v486, 0.0
    %v629 = vmax.f32 %v491, 0.0
    %v630 = vmax.f32 %v496, 0.0
    %v631 = vmax.f32 %v501, 0.0
    %v632 = vmax.f32 %v506, 0.0
    %v633 = vmax.f32 %v511, 0.0
    %v634 = vmax.f32 %v516, 0.0
    %v635 = vmax.f32 %v521, 0.0
    %v636 = vmax.f32 %v526, 0.0
    %v637 = vmax.f32 %v531, 0.0
    %v638 = vmax.f32 %v536, 0.0
    %v639 = vmax.f32 %v541, 0.0
    %v640 = vmax.f32 %v546, 0.0
    %v641 = vmax.f32 %v551, 0.0
    %v642 = vmax.f32 %v556, 0.0
    %v643 = vmax.f32 %v561, 0.0
    %v644 = vmax.f32 %v566, 0.0
    %v645 = vmax.f32 %v571, 0.0
    %v646 = vmax.f32 %v576, 0.0
    %v647 = vmax.f32 %v581, 0.0
    %v648 = vmax.f32 %v586, 0.0
    %v649 = vmax.f32 %v591, 0.0
    %v650 = vmax.f32 %v596, 0.0
    %v651 = vmax.f32 %v601, 0.0
    %v652 = vmax.f32 %v606, 0.0
    %v653 = vmax.f32 %v611, 0.0
    %v654 = vmax.f32 %v616, 0.0
    %v655 = vmax.f32 %v621, 0.0
    %v656 = vand.u32 2147483647, %v466
    %v657 = vand.u32 2147483647, %v471
    %v658 = vand.u32 2147483647, %v476
    %v659 = vand.u32 2147483647, %v481
    %v660 = vand.u32 2147483647, %v486
    %v661 = vand.u32 2147483647, %v491
    %v662 = vand.u32 2147483647, %v496
    %v663 = vand.u32 2147483647, %v501
    %v664 = vand.u32 2147483647, %v506
    %v665 = vand.u32 2147483647, %v511
    %v666 = vand.u32 2147483647, %v516
    %v667 = vand.u32 2147483647, %v521
    %v668 = vand.u32 2147483647, %v526
    %v669 = vand.u32 2147483647, %v531
    %v670 = vand.u32 2147483647, %v536
    %v671 = vand.u32 2147483647, %v541
    %v672 = vand.u32 2147483647, %v546
    %v673 = vand.u32 2147483647, %v551
    %v674 = vand.u32 2147483647, %v556
    %v675 = vand.u32 2147483647, %v561
    %v676 = vand.u32 2147483647, %v566
    %v677 = vand.u32 2147483647, %v571
    %v678 = vand.u32 2147483647, %v576
    %v679 = vand.u32 2147483647, %v581
    %v680 = vand.u32 2147483647, %v586
    %v681 = vand.u32 2147483647, %v591
    %v682 = vand.u32 2147483647, %v596
    %v683 = vand.u32 2147483647, %v601
    %v684 = vand.u32 2147483647, %v606
    %v685 = vand.u32 2147483647, %v611
    %v686 = vand.u32 2147483647, %v616
    %v687 = vand.u32 2147483647, %v621
    %v688 = vsub.f32 0.0, %v656
    %v689 = vsub.f32 0.0, %v657
    %v690 = vsub.f32 0.0, %v658
    %v691 = vsub.f32 0.0, %v659
    %v692 = vsub.f32 0.0, %v660
    %v693 = vsub.f32 0.0, %v661
    %v694 = vsub.f32 0.0, %v662
    %v695 = vsub.f32 0.0, %v663
    %v696 = vsub.f32 0.0, %v664
    %v697 = vsub.f32 0.0, %v665
    %v698 = vsub.f32 0.0, %v666
    %v699 = vsub.f32 0.0, %v667
    %v700 = vsub.f32 0.0, %v668
    %v701 = vsub.f32 0.0, %v669
    %v702 = vsub.f32 0.0, %v670
    %v703 = vsub.f32 0.0, %v671
    %v704 = vsub.f32 0.0, %v672
    %v705 = vsub.f32 0.0, %v673
    %v706 = vsub.f32 0.0, %v674
    %v707 = vsub.f32 0.0, %v675
    %v708 = vsub.f32 0.0, %v676
    %v709 = vsub.f32 0.0, %v677
    %v710 = vsub.f32 0.0, %v678
    %v711 = vsub.f32 0.0, %v679
    %v712 = vsub.f32 0.0, %v680
    %v713 = vsub.f32 0.0, %v681
    %v714 = vsub.f32 0.0, %v682
    %v715 = vsub.f32 0.0, %v683
    %v716 = vsub.f32 0.0, %v684
    %v717 = vsub.f32 0.0, %v685
    %v718 = vsub.f32 0.0, %v686
    %v719 = vsub.f32 0.0, %v687
    %v720 = vmul.f32 %v688, 1.442695
    %v721 = vpow.pop %v720
    %v722 = vmul.f32 %v689, 1.442695
    %v723 = vpow.pop %v722
    %v724 = vmul.f32 %v690, 1.442695
    %v725 = vpow.pop %v724
    %v726 = vmul.f32 %v691, 1.442695
    %v727 = vpow.pop %v726
    %v728 = vmul.f32 %v692, 1.442695
    %v729 = vpow.pop %v728
    %v730 = vmul.f32 %v693, 1.442695
    %v731 = vpow.pop %v730
    %v732 = vmul.f32 %v694, 1.442695
    %v733 = vpow.pop %v732
    %v734 = vmul.f32 %v695, 1.442695
    %v735 = vpow.pop %v734
    %v736 = vmul.f32 %v696, 1.442695
    %v737 = vpow.pop %v736
    %v738 = vmul.f32 %v697, 1.442695
    %v739 = vpow.pop %v738
    %v740 = vmul.f32 %v698, 1.442695
    %v741 = vpow.pop %v740
    %v742 = vmul.f32 %v699, 1.442695
    %v743 = vpow.pop %v742
    %v744 = vmul.f32 %v700, 1.442695
    %v745 = vpow.pop %v744
    %v746 = vmul.f32 %v701, 1.442695
    %v747 = vpow.pop %v746
    %v748 = vmul.f32 %v702, 1.442695
    %v749 = vpow.pop %v748
    %v750 = vmul.f32 %v703, 1.442695
    %v751 = vpow.pop %v750
    %v752 = vmul.f32 %v704, 1.442695
    %v753 = vpow.pop %v752
    %v754 = vmul.f32 %v705, 1.442695
    %v755 = vpow.pop %v754
    %v756 = vmul.f32 %v706, 1.442695
    %v757 = vpow.pop %v756
    %v758 = vmul.f32 %v707, 1.442695
    %v759 = vpow.pop %v758
    %v760 = vmul.f32 %v708, 1.442695
    %v761 = vpow.pop %v760
    %v762 = vmul.f32 %v709, 1.442695
    %v763 = vpow.pop %v762
    %v764 = vmul.f32 %v710, 1.442695
    %v765 = vpow.pop %v764
    %v766 = vmul.f32 %v711, 1.442695
    %v767 = vpow.pop %v766
    %v768 = vmul.f32 %v712, 1.442695
    %v769 = vpow.pop %v768
    %v770 = vmul.f32 %v713, 1.442695
    %v771 = vpow.pop %v770
    %v772 = vmul.f32 %v714, 1.442695
    %v773 = vpow.pop %v772
    %v774 = vmul.f32 %v715, 1.442695
    %v775 = vpow.pop %v774
    %v776 = vmul.f32 %v716, 1.442695
    %v777 = vpow.pop %v776
    %v778 = vmul.f32 %v717, 1.442695
    %v779 = vpow.pop %v778
    %v780 = vmul.f32 %v718, 1.442695
    %v781 = vpow.pop %v780
    %v782 = vmul.f32 %v719, 1.442695
    %v783 = vpow.pop %v782
    %v784 = vadd.f32 %v721, 1.0
    %v785 = vlog2.pop %v784
    %v786 = vmul.f32 %v785, 0.6931472
    %v787 = vmul.f32 -0.5, %v721
    %v788 = vadd.f32 %v787, 1.0
    %v789 = vmul.f32 %v788, %v721
    %v790 = vand.u32 2147483647, %v721
    %vm791 = vcmp.lt.f32.partialorder %v790, 0.0004427343
    %v792 = vsel %vm791, %v789, %v786
    %v793 = vadd.f32 %v723, 1.0
    %v794 = vlog2.pop %v793
    %v795 = vmul.f32 %v794, 0.6931472
    %v796 = vmul.f32 -0.5, %v723
    %v797 = vadd.f32 %v796, 1.0
    %v798 = vmul.f32 %v797, %v723
    %v799 = vand.u32 2147483647, %v723
    %vm800 = vcmp.lt.f32.partialorder %v799, 0.0004427343
    %v801 = vsel %vm800, %v798, %v795
    %v802 = vadd.f32 %v725, 1.0
    %v803 = vlog2.pop %v802
    %v804 = vmul.f32 %v803, 0.6931472
    %v805 = vmul.f32 -0.5, %v725
    %v806 = vadd.f32 %v805, 1.0
    %v807 = vmul.f32 %v806, %v725
    %v808 = vand.u32 2147483647, %v725
    %vm809 = vcmp.lt.f32.partialorder %v808, 0.0004427343
    %v810 = vsel %vm809, %v807, %v804
    %v811 = vadd.f32 %v727, 1.0
    %v812 = vlog2.pop %v811
    %v813 = vmul.f32 %v812, 0.6931472
    %v814 = vmul.f32 -0.5, %v727
    %v815 = vadd.f32 %v814, 1.0
    %v816 = vmul.f32 %v815, %v727
    %v817 = vand.u32 2147483647, %v727
    %vm818 = vcmp.lt.f32.partialorder %v817, 0.0004427343
    %v819 = vsel %vm818, %v816, %v813
    %v820 = vadd.f32 %v729, 1.0
    %v821 = vlog2.pop %v820
    %v822 = vmul.f32 %v821, 0.6931472
    %v823 = vmul.f32 -0.5, %v729
    %v824 = vadd.f32 %v823, 1.0
    %v825 = vmul.f32 %v824, %v729
    %v826 = vand.u32 2147483647, %v729
    %vm827 = vcmp.lt.f32.partialorder %v826, 0.0004427343
    %v828 = vsel %vm827, %v825, %v822
    %v829 = vadd.f32 %v731, 1.0
    %v830 = vlog2.pop %v829
    %v831 = vmul.f32 %v830, 0.6931472
    %v832 = vmul.f32 -0.5, %v731
    %v833 = vadd.f32 %v832, 1.0
    %v834 = vmul.f32 %v833, %v731
    %v835 = vand.u32 2147483647, %v731
    %vm836 = vcmp.lt.f32.partialorder %v835, 0.0004427343
    %v837 = vsel %vm836, %v834, %v831
    %v838 = vadd.f32 %v733, 1.0
    %v839 = vlog2.pop %v838
    %v840 = vmul.f32 %v839, 0.6931472
    %v841 = vmul.f32 -0.5, %v733
    %v842 = vadd.f32 %v841, 1.0
    %v843 = vmul.f32 %v842, %v733
    %v844 = vand.u32 2147483647, %v733
    %vm845 = vcmp.lt.f32.partialorder %v844, 0.0004427343
    %v846 = vsel %vm845, %v843, %v840
    %v847 = vadd.f32 %v735, 1.0
    %v848 = vlog2.pop %v847
    %v849 = vmul.f32 %v848, 0.6931472
    %v850 = vmul.f32 -0.5, %v735
    %v851 = vadd.f32 %v850, 1.0
    %v852 = vmul.f32 %v851, %v735
    %v853 = vand.u32 2147483647, %v735
    %vm854 = vcmp.lt.f32.partialorder %v853, 0.0004427343
    %v855 = vsel %vm854, %v852, %v849
    %v856 = vadd.f32 %v737, 1.0
    %v857 = vlog2.pop %v856
    %v858 = vmul.f32 %v857, 0.6931472
    %v859 = vmul.f32 -0.5, %v737
    %v860 = vadd.f32 %v859, 1.0
    %v861 = vmul.f32 %v860, %v737
    %v862 = vand.u32 2147483647, %v737
    %vm863 = vcmp.lt.f32.partialorder %v862, 0.0004427343
    %v864 = vsel %vm863, %v861, %v858
    %v865 = vadd.f32 %v739, 1.0
    %v866 = vlog2.pop %v865
    %v867 = vmul.f32 %v866, 0.6931472
    %v868 = vmul.f32 -0.5, %v739
    %v869 = vadd.f32 %v868, 1.0
    %v870 = vmul.f32 %v869, %v739
    %v871 = vand.u32 2147483647, %v739
    %vm872 = vcmp.lt.f32.partialorder %v871, 0.0004427343
    %v873 = vsel %vm872, %v870, %v867
    %v874 = vadd.f32 %v741, 1.0
    %v875 = vlog2.pop %v874
    %v876 = vmul.f32 %v875, 0.6931472
    %v877 = vmul.f32 -0.5, %v741
    %v878 = vadd.f32 %v877, 1.0
    %v879 = vmul.f32 %v878, %v741
    %v880 = vand.u32 2147483647, %v741
    %vm881 = vcmp.lt.f32.partialorder %v880, 0.0004427343
    %v882 = vsel %vm881, %v879, %v876
    %v883 = vadd.f32 %v743, 1.0
    %v884 = vlog2.pop %v883
    %v885 = vmul.f32 %v884, 0.6931472
    %v886 = vmul.f32 -0.5, %v743
    %v887 = vadd.f32 %v886, 1.0
    %v888 = vmul.f32 %v887, %v743
    %v889 = vand.u32 2147483647, %v743
    %vm890 = vcmp.lt.f32.partialorder %v889, 0.0004427343
    %v891 = vsel %vm890, %v888, %v885
    %v892 = vadd.f32 %v745, 1.0
    %v893 = vlog2.pop %v892
    %v894 = vmul.f32 %v893, 0.6931472
    %v895 = vmul.f32 -0.5, %v745
    %v896 = vadd.f32 %v895, 1.0
    %v897 = vmul.f32 %v896, %v745
    %v898 = vand.u32 2147483647, %v745
    %vm899 = vcmp.lt.f32.partialorder %v898, 0.0004427343
    %v900 = vsel %vm899, %v897, %v894
    %v901 = vadd.f32 %v747, 1.0
    %v902 = vlog2.pop %v901
    %v903 = vmul.f32 %v902, 0.6931472
    %v904 = vmul.f32 -0.5, %v747
    %v905 = vadd.f32 %v904, 1.0
    %v906 = vmul.f32 %v905, %v747
    %v907 = vand.u32 2147483647, %v747
    %vm908 = vcmp.lt.f32.partialorder %v907, 0.0004427343
    %v909 = vsel %vm908, %v906, %v903
    %v910 = vadd.f32 %v749, 1.0
    %v911 = vlog2.pop %v910
    %v912 = vmul.f32 %v911, 0.6931472
    %v913 = vmul.f32 -0.5, %v749
    %v914 = vadd.f32 %v913, 1.0
    %v915 = vmul.f32 %v914, %v749
    %v916 = vand.u32 2147483647, %v749
    %vm917 = vcmp.lt.f32.partialorder %v916, 0.0004427343
    %v918 = vsel %vm917, %v915, %v912
    %v919 = vadd.f32 %v751, 1.0
    %v920 = vlog2.pop %v919
    %v921 = vmul.f32 %v920, 0.6931472
    %v922 = vmul.f32 -0.5, %v751
    %v923 = vadd.f32 %v922, 1.0
    %v924 = vmul.f32 %v923, %v751
    %v925 = vand.u32 2147483647, %v751
    %vm926 = vcmp.lt.f32.partialorder %v925, 0.0004427343
    %v927 = vsel %vm926, %v924, %v921
    %v928 = vadd.f32 %v753, 1.0
    %v929 = vlog2.pop %v928
    %v930 = vmul.f32 %v929, 0.6931472
    %v931 = vmul.f32 -0.5, %v753
    %v932 = vadd.f32 %v931, 1.0
    %v933 = vmul.f32 %v932, %v753
    %v934 = vand.u32 2147483647, %v753
    %vm935 = vcmp.lt.f32.partialorder %v934, 0.0004427343
    %v936 = vsel %vm935, %v933, %v930
    %v937 = vadd.f32 %v755, 1.0
    %v938 = vlog2.pop %v937
    %v939 = vmul.f32 %v938, 0.6931472
    %v940 = vmul.f32 -0.5, %v755
    %v941 = vadd.f32 %v940, 1.0
    %v942 = vmul.f32 %v941, %v755
    %v943 = vand.u32 2147483647, %v755
    %vm944 = vcmp.lt.f32.partialorder %v943, 0.0004427343
    %v945 = vsel %vm944, %v942, %v939
    %v946 = vadd.f32 %v757, 1.0
    %v947 = vlog2.pop %v946
    %v948 = vmul.f32 %v947, 0.6931472
    %v949 = vmul.f32 -0.5, %v757
    %v950 = vadd.f32 %v949, 1.0
    %v951 = vmul.f32 %v950, %v757
    %v952 = vand.u32 2147483647, %v757
    %vm953 = vcmp.lt.f32.partialorder %v952, 0.0004427343
    %v954 = vsel %vm953, %v951, %v948
    %v955 = vadd.f32 %v759, 1.0
    %v956 = vlog2.pop %v955
    %v957 = vmul.f32 %v956, 0.6931472
    %v958 = vmul.f32 -0.5, %v759
    %v959 = vadd.f32 %v958, 1.0
    %v960 = vmul.f32 %v959, %v759
    %v961 = vand.u32 2147483647, %v759
    %vm962 = vcmp.lt.f32.partialorder %v961, 0.0004427343
    %v963 = vsel %vm962, %v960, %v957
    %v964 = vadd.f32 %v761, 1.0
    %v965 = vlog2.pop %v964
    %v966 = vmul.f32 %v965, 0.6931472
    %v967 = vmul.f32 -0.5, %v761
    %v968 = vadd.f32 %v967, 1.0
    %v969 = vmul.f32 %v968, %v761
    %v970 = vand.u32 2147483647, %v761
    %vm971 = vcmp.lt.f32.partialorder %v970, 0.0004427343
    %v972 = vsel %vm971, %v969, %v966
    %v973 = vadd.f32 %v763, 1.0
    %v974 = vlog2.pop %v973
    %v975 = vmul.f32 %v974, 0.6931472
    %v976 = vmul.f32 -0.5, %v763
    %v977 = vadd.f32 %v976, 1.0
    %v978 = vmul.f32 %v977, %v763
    %v979 = vand.u32 2147483647, %v763
    %vm980 = vcmp.lt.f32.partialorder %v979, 0.0004427343
    %v981 = vsel %vm980, %v978, %v975
    %v982 = vadd.f32 %v765, 1.0
    %v983 = vlog2.pop %v982
    %v984 = vmul.f32 %v983, 0.6931472
    %v985 = vmul.f32 -0.5, %v765
    %v986 = vadd.f32 %v985, 1.0
    %v987 = vmul.f32 %v986, %v765
    %v988 = vand.u32 2147483647, %v765
    %vm989 = vcmp.lt.f32.partialorder %v988, 0.0004427343
    %v990 = vsel %vm989, %v987, %v984
    %v991 = vadd.f32 %v767, 1.0
    %v992 = vlog2.pop %v991
    %v993 = vmul.f32 %v992, 0.6931472
    %v994 = vmul.f32 -0.5, %v767
    %v995 = vadd.f32 %v994, 1.0
    %v996 = vmul.f32 %v995, %v767
    %v997 = vand.u32 2147483647, %v767
    %vm998 = vcmp.lt.f32.partialorder %v997, 0.0004427343
    %v999 = vsel %vm998, %v996, %v993
    %v1000 = vadd.f32 %v769, 1.0
    %v1001 = vlog2.pop %v1000
    %v1002 = vmul.f32 %v1001, 0.6931472
    %v1003 = vmul.f32 -0.5, %v769
    %v1004 = vadd.f32 %v1003, 1.0
    %v1005 = vmul.f32 %v1004, %v769
    %v1006 = vand.u32 2147483647, %v769
    %vm1007 = vcmp.lt.f32.partialorder %v1006, 0.0004427343
    %v1008 = vsel %vm1007, %v1005, %v1002
    %v1009 = vadd.f32 %v771, 1.0
    %v1010 = vlog2.pop %v1009
    %v1011 = vmul.f32 %v1010, 0.6931472
    %v1012 = vmul.f32 -0.5, %v771
    %v1013 = vadd.f32 %v1012, 1.0
    %v1014 = vmul.f32 %v1013, %v771
    %v1015 = vand.u32 2147483647, %v771
    %vm1016 = vcmp.lt.f32.partialorder %v1015, 0.0004427343
    %v1017 = vsel %vm1016, %v1014, %v1011
    %v1018 = vadd.f32 %v773, 1.0
    %v1019 = vlog2.pop %v1018
    %v1020 = vmul.f32 %v1019, 0.6931472
    %v1021 = vmul.f32 -0.5, %v773
    %v1022 = vadd.f32 %v1021, 1.0
    %v1023 = vmul.f32 %v1022, %v773
    %v1024 = vand.u32 2147483647, %v773
    %vm1025 = vcmp.lt.f32.partialorder %v1024, 0.0004427343
    %v1026 = vsel %vm1025, %v1023, %v1020
    %v1027 = vadd.f32 %v775, 1.0
    %v1028 = vlog2.pop %v1027
    %v1029 = vmul.f32 %v1028, 0.6931472
    %v1030 = vmul.f32 -0.5, %v775
    %v1031 = vadd.f32 %v1030, 1.0
    %v1032 = vmul.f32 %v1031, %v775
    %v1033 = vand.u32 2147483647, %v775
    %vm1034 = vcmp.lt.f32.partialorder %v1033, 0.0004427343
    %v1035 = vsel %vm1034, %v1032, %v1029
    %v1036 = vadd.f32 %v777, 1.0
    %v1037 = vlog2.pop %v1036
    %v1038 = vmul.f32 %v1037, 0.6931472
    %v1039 = vmul.f32 -0.5, %v777
    %v1040 = vadd.f32 %v1039, 1.0
    %v1041 = vmul.f32 %v1040, %v777
    %v1042 = vand.u32 2147483647, %v777
    %vm1043 = vcmp.lt.f32.partialorder %v1042, 0.0004427343
    %v1044 = vsel %vm1043, %v1041, %v1038
    %v1045 = vadd.f32 %v779, 1.0
    %v1046 = vlog2.pop %v1045
    %v1047 = vmul.f32 %v1046, 0.6931472
    %v1048 = vmul.f32 -0.5, %v779
    %v1049 = vadd.f32 %v1048, 1.0
    %v1050 = vmul.f32 %v1049, %v779
    %v1051 = vand.u32 2147483647, %v779
    %vm1052 = vcmp.lt.f32.partialorder %v1051, 0.0004427343
    %v1053 = vsel %vm1052, %v1050, %v1047
    %v1054 = vadd.f32 %v781, 1.0
    %v1055 = vlog2.pop %v1054
    %v1056 = vmul.f32 %v1055, 0.6931472
    %v1057 = vmul.f32 -0.5, %v781
    %v1058 = vadd.f32 %v1057, 1.0
    %v1059 = vmul.f32 %v1058, %v781
    %v1060 = vand.u32 2147483647, %v781
    %vm1061 = vcmp.lt.f32.partialorder %v1060, 0.0004427343
    %v1062 = vsel %vm1061, %v1059, %v1056
    %v1063 = vadd.f32 %v783, 1.0
    %v1064 = vlog2.pop %v1063
    %v1065 = vmul.f32 %v1064, 0.6931472
    %v1066 = vmul.f32 -0.5, %v783
    %v1067 = vadd.f32 %v1066, 1.0
    %v1068 = vmul.f32 %v1067, %v783
    %v1069 = vand.u32 2147483647, %v783
    %vm1070 = vcmp.lt.f32.partialorder %v1069, 0.0004427343
    %v1071 = vsel %vm1070, %v1068, %v1065
    %v1072 = vadd.f32 %v624, %v792
    %v1073 = vadd.f32 %v625, %v801
    %v1074 = vadd.f32 %v626, %v810
    %v1075 = vadd.f32 %v627, %v819
    %v1076 = vadd.f32 %v628, %v828
    %v1077 = vadd.f32 %v629, %v837
    %v1078 = vadd.f32 %v630, %v846
    %v1079 = vadd.f32 %v631, %v855
    %v1080 = vadd.f32 %v632, %v864
    %v1081 = vadd.f32 %v633, %v873
    %v1082 = vadd.f32 %v634, %v882
    %v1083 = vadd.f32 %v635, %v891
    %v1084 = vadd.f32 %v636, %v900
    %v1085 = vadd.f32 %v637, %v909
    %v1086 = vadd.f32 %v638, %v918
    %v1087 = vadd.f32 %v639, %v927
    %v1088 = vadd.f32 %v640, %v936
    %v1089 = vadd.f32 %v641, %v945
    %v1090 = vadd.f32 %v642, %v954
    %v1091 = vadd.f32 %v643, %v963
    %v1092 = vadd.f32 %v644, %v972
    %v1093 = vadd.f32 %v645, %v981
    %v1094 = vadd.f32 %v646, %v990
    %v1095 = vadd.f32 %v647, %v999
    %v1096 = vadd.f32 %v648, %v1008
    %v1097 = vadd.f32 %v649, %v1017
    %v1098 = vadd.f32 %v650, %v1026
    %v1099 = vadd.f32 %v651, %v1035
    %v1100 = vadd.f32 %v652, %v1044
    %v1101 = vadd.f32 %v653, %v1053
    %v1102 = vadd.f32 %v654, %v1062
    %v1103 = vadd.f32 %v655, %v1071
    %v1104 = vmul.f32 %v96, %v1072
    %v1105 = vmul.f32 %v97, %v1073
    %v1106 = vmul.f32 %v98, %v1074
    %v1107 = vmul.f32 %v99, %v1075
    %v1108 = vmul.f32 %v100, %v1076
    %v1109 = vmul.f32 %v101, %v1077
    %v1110 = vmul.f32 %v102, %v1078
    %v1111 = vmul.f32 %v103, %v1079
    %v1112 = vmul.f32 %v104, %v1080
    %v1113 = vmul.f32 %v105, %v1081
    %v1114 = vmul.f32 %v106, %v1082
    %v1115 = vmul.f32 %v107, %v1083
    %v1116 = vmul.f32 %v108, %v1084
    %v1117 = vmul.f32 %v109, %v1085
    %v1118 = vmul.f32 %v110, %v1086
    %v1119 = vmul.f32 %v111, %v1087
    %v1120 = vmul.f32 %v112, %v1088
    %v1121 = vmul.f32 %v113, %v1089
    %v1122 = vmul.f32 %v114, %v1090
    %v1123 = vmul.f32 %v115, %v1091
    %v1124 = vmul.f32 %v116, %v1092
    %v1125 = vmul.f32 %v117, %v1093
    %v1126 = vmul.f32 %v118, %v1094
    %v1127 = vmul.f32 %v119, %v1095
    %v1128 = vmul.f32 %v120, %v1096
    %v1129 = vmul.f32 %v121, %v1097
    %v1130 = vmul.f32 %v122, %v1098
    %v1131 = vmul.f32 %v123, %v1099
    %v1132 = vmul.f32 %v124, %v1100
    %v1133 = vmul.f32 %v125, %v1101
    %v1134 = vmul.f32 %v126, %v1102
    %v1135 = vmul.f32 %v127, %v1103
    %v1136 = vadd.f32 %v235, %v1104
    %v1137 = vadd.f32 %v240, %v1105
    %v1138 = vadd.f32 %v245, %v1106
    %v1139 = vadd.f32 %v250, %v1107
    %v1140 = vadd.f32 %v255, %v1108
    %v1141 = vadd.f32 %v260, %v1109
    %v1142 = vadd.f32 %v265, %v1110
    %v1143 = vadd.f32 %v270, %v1111
    %v1144 = vadd.f32 %v275, %v1112
    %v1145 = vadd.f32 %v280, %v1113
    %v1146 = vadd.f32 %v285, %v1114
    %v1147 = vadd.f32 %v290, %v1115
    %v1148 = vadd.f32 %v295, %v1116
    %v1149 = vadd.f32 %v300, %v1117
    %v1150 = vadd.f32 %v305, %v1118
    %v1151 = vadd.f32 %v310, %v1119
    %v1152 = vadd.f32 %v315, %v1120
    %v1153 = vadd.f32 %v320, %v1121
    %v1154 = vadd.f32 %v325, %v1122
    %v1155 = vadd.f32 %v330, %v1123
    %v1156 = vadd.f32 %v335, %v1124
    %v1157 = vadd.f32 %v340, %v1125
    %v1158 = vadd.f32 %v345, %v1126
    %v1159 = vadd.f32 %v350, %v1127
    %v1160 = vadd.f32 %v355, %v1128
    %v1161 = vadd.f32 %v360, %v1129
    %v1162 = vadd.f32 %v365, %v1130
    %v1163 = vadd.f32 %v370, %v1131
    %v1164 = vadd.f32 %v375, %v1132
    %v1165 = vadd.f32 %v380, %v1133
    %v1166 = vadd.f32 %v385, %v1134
    %v1167 = vadd.f32 %v390, %v1135
    %v1168 = vlaneseq
    %v1169 = vand.u32 %v1168, 127
    %vm1170 = vcmask 64512
    %v1171 = vsel %vm1170, %v1136, -inf
    %1172 = vmax.xlane.f32.xlu0 %v1171
    %v1173 = vpop.xlane.xlu0 %1172
    %v1174 = vsel %vm1170, %v1137, -inf
    %1175 = vmax.xlane.f32.xlu0 %v1174
    %v1176 = vpop.xlane.xlu0 %1175
    %v1177 = vsel %vm1170, %v1138, -inf
    %1178 = vmax.xlane.f32.xlu0 %v1177
    %v1179 = vpop.xlane.xlu0 %1178
    %v1180 = vsel %vm1170, %v1139, -inf
    %1181 = vmax.xlane.f32.xlu0 %v1180
    %v1182 = vpop.xlane.xlu0 %1181
    %v1183 = vsel %vm1170, %v1140, -inf
    %1184 = vmax.xlane.f32.xlu0 %v1183
    %v1185 = vpop.xlane.xlu0 %1184
    %v1186 = vsel %vm1170, %v1141, -inf
    %1187 = vmax.xlane.f32.xlu0 %v1186
    %v1188 = vpop.xlane.xlu0 %1187
    %v1189 = vsel %vm1170, %v1142, -inf
    %1190 = vmax.xlane.f32.xlu0 %v1189
    %v1191 = vpop.xlane.xlu0 %1190
    %v1192 = vsel %vm1170, %v1143, -inf
    %1193 = vmax.xlane.f32.xlu0 %v1192
    %v1194 = vpop.xlane.xlu0 %1193
    %v1195 = vsel %vm1170, %v1144, -inf
    %1196 = vmax.xlane.f32.xlu0 %v1195
    %v1197 = vpop.xlane.xlu0 %1196
    %v1198 = vsel %vm1170, %v1145, -inf
    %1199 = vmax.xlane.f32.xlu0 %v1198
    %v1200 = vpop.xlane.xlu0 %1199
    %v1201 = vsel %vm1170, %v1146, -inf
    %1202 = vmax.xlane.f32.xlu0 %v1201
    %v1203 = vpop.xlane.xlu0 %1202
    %v1204 = vsel %vm1170, %v1147, -inf
    %1205 = vmax.xlane.f32.xlu0 %v1204
    %v1206 = vpop.xlane.xlu0 %1205
    %v1207 = vsel %vm1170, %v1148, -inf
    %1208 = vmax.xlane.f32.xlu0 %v1207
    %v1209 = vpop.xlane.xlu0 %1208
    %v1210 = vsel %vm1170, %v1149, -inf
    %1211 = vmax.xlane.f32.xlu0 %v1210
    %v1212 = vpop.xlane.xlu0 %1211
    %v1213 = vsel %vm1170, %v1150, -inf
    %1214 = vmax.xlane.f32.xlu0 %v1213
    %v1215 = vpop.xlane.xlu0 %1214
    %v1216 = vsel %vm1170, %v1151, -inf
    %1217 = vmax.xlane.f32.xlu0 %v1216
    %v1218 = vpop.xlane.xlu0 %1217
    %v1219 = vsel %vm1170, %v1152, -inf
    %1220 = vmax.xlane.f32.xlu0 %v1219
    %v1221 = vpop.xlane.xlu0 %1220
    %v1222 = vsel %vm1170, %v1153, -inf
    %1223 = vmax.xlane.f32.xlu0 %v1222
    %v1224 = vpop.xlane.xlu0 %1223
    %v1225 = vsel %vm1170, %v1154, -inf
    %1226 = vmax.xlane.f32.xlu0 %v1225
    %v1227 = vpop.xlane.xlu0 %1226
    %v1228 = vsel %vm1170, %v1155, -inf
    %1229 = vmax.xlane.f32.xlu0 %v1228
    %v1230 = vpop.xlane.xlu0 %1229
    %v1231 = vsel %vm1170, %v1156, -inf
    %1232 = vmax.xlane.f32.xlu0 %v1231
    %v1233 = vpop.xlane.xlu0 %1232
    %v1234 = vsel %vm1170, %v1157, -inf
    %1235 = vmax.xlane.f32.xlu0 %v1234
    %v1236 = vpop.xlane.xlu0 %1235
    %v1237 = vsel %vm1170, %v1158, -inf
    %1238 = vmax.xlane.f32.xlu0 %v1237
    %v1239 = vpop.xlane.xlu0 %1238
    %v1240 = vsel %vm1170, %v1159, -inf
    %1241 = vmax.xlane.f32.xlu0 %v1240
    %v1242 = vpop.xlane.xlu0 %1241
    %v1243 = vsel %vm1170, %v1160, -inf
    %1244 = vmax.xlane.f32.xlu0 %v1243
    %v1245 = vpop.xlane.xlu0 %1244
    %v1246 = vsel %vm1170, %v1161, -inf
    %1247 = vmax.xlane.f32.xlu0 %v1246
    %v1248 = vpop.xlane.xlu0 %1247
    %v1249 = vsel %vm1170, %v1162, -inf
    %1250 = vmax.xlane.f32.xlu0 %v1249
    %v1251 = vpop.xlane.xlu0 %1250
    %v1252 = vsel %vm1170, %v1163, -inf
    %1253 = vmax.xlane.f32.xlu0 %v1252
    %v1254 = vpop.xlane.xlu0 %1253
    %v1255 = vsel %vm1170, %v1164, -inf
    %1256 = vmax.xlane.f32.xlu0 %v1255
    %v1257 = vpop.xlane.xlu0 %1256
    %v1258 = vsel %vm1170, %v1165, -inf
    %1259 = vmax.xlane.f32.xlu0 %v1258
    %v1260 = vpop.xlane.xlu0 %1259
    %v1261 = vsel %vm1170, %v1166, -inf
    %1262 = vmax.xlane.f32.xlu0 %v1261
    %v1263 = vpop.xlane.xlu0 %1262
    %v1264 = vsel %vm1170, %v1167, -inf
    %1265 = vmax.xlane.f32.xlu0 %v1264
    %v1266 = vpop.xlane.xlu0 %1265
    %vm1267 = vcmp.eq.f32.partialorder %v1136, %v1173
    %vm1268 = vcmp.eq.f32.partialorder %v1137, %v1176
    %vm1269 = vcmp.eq.f32.partialorder %v1138, %v1179
    %vm1270 = vcmp.eq.f32.partialorder %v1139, %v1182
    %vm1271 = vcmp.eq.f32.partialorder %v1140, %v1185
    %vm1272 = vcmp.eq.f32.partialorder %v1141, %v1188
    %vm1273 = vcmp.eq.f32.partialorder %v1142, %v1191
    %vm1274 = vcmp.eq.f32.partialorder %v1143, %v1194
    %vm1275 = vcmp.eq.f32.partialorder %v1144, %v1197
    %vm1276 = vcmp.eq.f32.partialorder %v1145, %v1200
    %vm1277 = vcmp.eq.f32.partialorder %v1146, %v1203
    %vm1278 = vcmp.eq.f32.partialorder %v1147, %v1206
    %vm1279 = vcmp.eq.f32.partialorder %v1148, %v1209
    %vm1280 = vcmp.eq.f32.partialorder %v1149, %v1212
    %vm1281 = vcmp.eq.f32.partialorder %v1150, %v1215
    %vm1282 = vcmp.eq.f32.partialorder %v1151, %v1218
    %vm1283 = vcmp.eq.f32.partialorder %v1152, %v1221
    %vm1284 = vcmp.eq.f32.partialorder %v1153, %v1224
    %vm1285 = vcmp.eq.f32.partialorder %v1154, %v1227
    %vm1286 = vcmp.eq.f32.partialorder %v1155, %v1230
    %vm1287 = vcmp.eq.f32.partialorder %v1156, %v1233
    %vm1288 = vcmp.eq.f32.partialorder %v1157, %v1236
    %vm1289 = vcmp.eq.f32.partialorder %v1158, %v1239
    %vm1290 = vcmp.eq.f32.partialorder %v1159, %v1242
    %vm1291 = vcmp.eq.f32.partialorder %v1160, %v1245
    %vm1292 = vcmp.eq.f32.partialorder %v1161, %v1248
    %vm1293 = vcmp.eq.f32.partialorder %v1162, %v1251
    %vm1294 = vcmp.eq.f32.partialorder %v1163, %v1254
    %vm1295 = vcmp.eq.f32.partialorder %v1164, %v1257
    %vm1296 = vcmp.eq.f32.partialorder %v1165, %v1260
    %vm1297 = vcmp.eq.f32.partialorder %v1166, %v1263
    %vm1298 = vcmp.eq.f32.partialorder %v1167, %v1266
    %v1299 = vsel %vm1267, %v1169, 8
    %v1300 = vsel %vm1268, %v1169, 8
    %v1301 = vsel %vm1269, %v1169, 8
    %v1302 = vsel %vm1270, %v1169, 8
    %v1303 = vsel %vm1271, %v1169, 8
    %v1304 = vsel %vm1272, %v1169, 8
    %v1305 = vsel %vm1273, %v1169, 8
    %v1306 = vsel %vm1274, %v1169, 8
    %v1307 = vsel %vm1275, %v1169, 8
    %v1308 = vsel %vm1276, %v1169, 8
    %v1309 = vsel %vm1277, %v1169, 8
    %v1310 = vsel %vm1278, %v1169, 8
    %v1311 = vsel %vm1279, %v1169, 8
    %v1312 = vsel %vm1280, %v1169, 8
    %v1313 = vsel %vm1281, %v1169, 8
    %v1314 = vsel %vm1282, %v1169, 8
    %v1315 = vsel %vm1283, %v1169, 8
    %v1316 = vsel %vm1284, %v1169, 8
    %v1317 = vsel %vm1285, %v1169, 8
    %v1318 = vsel %vm1286, %v1169, 8
    %v1319 = vsel %vm1287, %v1169, 8
    %v1320 = vsel %vm1288, %v1169, 8
    %v1321 = vsel %vm1289, %v1169, 8
    %v1322 = vsel %vm1290, %v1169, 8
    %v1323 = vsel %vm1291, %v1169, 8
    %v1324 = vsel %vm1292, %v1169, 8
    %v1325 = vsel %vm1293, %v1169, 8
    %v1326 = vsel %vm1294, %v1169, 8
    %v1327 = vsel %vm1295, %v1169, 8
    %v1328 = vsel %vm1296, %v1169, 8
    %v1329 = vsel %vm1297, %v1169, 8
    %v1330 = vsel %vm1298, %v1169, 8
    %v1331 = vsel %vm1170, %v1299, 2147483647
    %v1332 = vand.u32 %v1331, 65535
    %v1333 = vshra.s32 %v1331, 16
    %v1334 = vcvt.s32.f32 %v1332
    %v1335 = vcvt.s32.f32 %v1333
    %1336 = vmin.xlane.f32.xlu0 %v1335
    %v1337 = vpop.xlane.xlu0 %1336
    %vm1338 = vcmp.eq.f32.partialorder %v1335, %v1337
    %v1339 = vsel %vm1338, %v1334, inf
    %1340 = vmin.xlane.f32.xlu0 %v1339
    %v1341 = vpop.xlane.xlu0 %1340
    %v1342 = vcvt.f32.s32 %v1341
    %v1343 = vcvt.f32.s32 %v1337
    %v1344 = vshll.u32 %v1343, 16
    %v1345 = vadd.s32 %v1344, %v1342
    %v1346 = vsel %vm1170, %v1300, 2147483647
    %v1347 = vand.u32 %v1346, 65535
    %v1348 = vshra.s32 %v1346, 16
    %v1349 = vcvt.s32.f32 %v1347
    %v1350 = vcvt.s32.f32 %v1348
    %1351 = vmin.xlane.f32.xlu0 %v1350
    %v1352 = vpop.xlane.xlu0 %1351
    %vm1353 = vcmp.eq.f32.partialorder %v1350, %v1352
    %v1354 = vsel %vm1353, %v1349, inf
    %1355 = vmin.xlane.f32.xlu0 %v1354
    %v1356 = vpop.xlane.xlu0 %1355
    %v1357 = vcvt.f32.s32 %v1356
    %v1358 = vcvt.f32.s32 %v1352
    %v1359 = vshll.u32 %v1358, 16
    %v1360 = vadd.s32 %v1359, %v1357
    %v1361 = vsel %vm1170, %v1301, 2147483647
    %v1362 = vand.u32 %v1361, 65535
    %v1363 = vshra.s32 %v1361, 16
    %v1364 = vcvt.s32.f32 %v1362
    %v1365 = vcvt.s32.f32 %v1363
    %1366 = vmin.xlane.f32.xlu0 %v1365
    %v1367 = vpop.xlane.xlu0 %1366
    %vm1368 = vcmp.eq.f32.partialorder %v1365, %v1367
    %v1369 = vsel %vm1368, %v1364, inf
    %1370 = vmin.xlane.f32.xlu0 %v1369
    %v1371 = vpop.xlane.xlu0 %1370
    %v1372 = vcvt.f32.s32 %v1371
    %v1373 = vcvt.f32.s32 %v1367
    %v1374 = vshll.u32 %v1373, 16
    %v1375 = vadd.s32 %v1374, %v1372
    %v1376 = vsel %vm1170, %v1302, 2147483647
    %v1377 = vand.u32 %v1376, 65535
    %v1378 = vshra.s32 %v1376, 16
    %v1379 = vcvt.s32.f32 %v1377
    %v1380 = vcvt.s32.f32 %v1378
    %1381 = vmin.xlane.f32.xlu0 %v1380
    %v1382 = vpop.xlane.xlu0 %1381
    %vm1383 = vcmp.eq.f32.partialorder %v1380, %v1382
    %v1384 = vsel %vm1383, %v1379, inf
    %1385 = vmin.xlane.f32.xlu0 %v1384
    %v1386 = vpop.xlane.xlu0 %1385
    %v1387 = vcvt.f32.s32 %v1386
    %v1388 = vcvt.f32.s32 %v1382
    %v1389 = vshll.u32 %v1388, 16
    %v1390 = vadd.s32 %v1389, %v1387
    %v1391 = vsel %vm1170, %v1303, 2147483647
    %v1392 = vand.u32 %v1391, 65535
    %v1393 = vshra.s32 %v1391, 16
    %v1394 = vcvt.s32.f32 %v1392
    %v1395 = vcvt.s32.f32 %v1393
    %1396 = vmin.xlane.f32.xlu0 %v1395
    %v1397 = vpop.xlane.xlu0 %1396
    %vm1398 = vcmp.eq.f32.partialorder %v1395, %v1397
    %v1399 = vsel %vm1398, %v1394, inf
    %1400 = vmin.xlane.f32.xlu0 %v1399
    %v1401 = vpop.xlane.xlu0 %1400
    %v1402 = vcvt.f32.s32 %v1401
    %v1403 = vcvt.f32.s32 %v1397
    %v1404 = vshll.u32 %v1403, 16
    %v1405 = vadd.s32 %v1404, %v1402
    %v1406 = vsel %vm1170, %v1304, 2147483647
    %v1407 = vand.u32 %v1406, 65535
    %v1408 = vshra.s32 %v1406, 16
    %v1409 = vcvt.s32.f32 %v1407
    %v1410 = vcvt.s32.f32 %v1408
    %1411 = vmin.xlane.f32.xlu0 %v1410
    %v1412 = vpop.xlane.xlu0 %1411
    %vm1413 = vcmp.eq.f32.partialorder %v1410, %v1412
    %v1414 = vsel %vm1413, %v1409, inf
    %1415 = vmin.xlane.f32.xlu0 %v1414
    %v1416 = vpop.xlane.xlu0 %1415
    %v1417 = vcvt.f32.s32 %v1416
    %v1418 = vcvt.f32.s32 %v1412
    %v1419 = vshll.u32 %v1418, 16
    %v1420 = vadd.s32 %v1419, %v1417
    %v1421 = vsel %vm1170, %v1305, 2147483647
    %v1422 = vand.u32 %v1421, 65535
    %v1423 = vshra.s32 %v1421, 16
    %v1424 = vcvt.s32.f32 %v1422
    %v1425 = vcvt.s32.f32 %v1423
    %1426 = vmin.xlane.f32.xlu0 %v1425
    %v1427 = vpop.xlane.xlu0 %1426
    %vm1428 = vcmp.eq.f32.partialorder %v1425, %v1427
    %v1429 = vsel %vm1428, %v1424, inf
    %1430 = vmin.xlane.f32.xlu0 %v1429
    %v1431 = vpop.xlane.xlu0 %1430
    %v1432 = vcvt.f32.s32 %v1431
    %v1433 = vcvt.f32.s32 %v1427
    %v1434 = vshll.u32 %v1433, 16
    %v1435 = vadd.s32 %v1434, %v1432
    %v1436 = vsel %vm1170, %v1306, 2147483647
    %v1437 = vand.u32 %v1436, 65535
    %v1438 = vshra.s32 %v1436, 16
    %v1439 = vcvt.s32.f32 %v1437
    %v1440 = vcvt.s32.f32 %v1438
    %1441 = vmin.xlane.f32.xlu0 %v1440
    %v1442 = vpop.xlane.xlu0 %1441
    %vm1443 = vcmp.eq.f32.partialorder %v1440, %v1442
    %v1444 = vsel %vm1443, %v1439, inf
    %1445 = vmin.xlane.f32.xlu0 %v1444
    %v1446 = vpop.xlane.xlu0 %1445
    %v1447 = vcvt.f32.s32 %v1446
    %v1448 = vcvt.f32.s32 %v1442
    %v1449 = vshll.u32 %v1448, 16
    %v1450 = vadd.s32 %v1449, %v1447
    %v1451 = vsel %vm1170, %v1307, 2147483647
    %v1452 = vand.u32 %v1451, 65535
    %v1453 = vshra.s32 %v1451, 16
    %v1454 = vcvt.s32.f32 %v1452
    %v1455 = vcvt.s32.f32 %v1453
    %1456 = vmin.xlane.f32.xlu0 %v1455
    %v1457 = vpop.xlane.xlu0 %1456
    %vm1458 = vcmp.eq.f32.partialorder %v1455, %v1457
    %v1459 = vsel %vm1458, %v1454, inf
    %1460 = vmin.xlane.f32.xlu0 %v1459
    %v1461 = vpop.xlane.xlu0 %1460
    %v1462 = vcvt.f32.s32 %v1461
    %v1463 = vcvt.f32.s32 %v1457
    %v1464 = vshll.u32 %v1463, 16
    %v1465 = vadd.s32 %v1464, %v1462
    %v1466 = vsel %vm1170, %v1308, 2147483647
    %v1467 = vand.u32 %v1466, 65535
    %v1468 = vshra.s32 %v1466, 16
    %v1469 = vcvt.s32.f32 %v1467
    %v1470 = vcvt.s32.f32 %v1468
    %1471 = vmin.xlane.f32.xlu0 %v1470
    %v1472 = vpop.xlane.xlu0 %1471
    %vm1473 = vcmp.eq.f32.partialorder %v1470, %v1472
    %v1474 = vsel %vm1473, %v1469, inf
    %1475 = vmin.xlane.f32.xlu0 %v1474
    %v1476 = vpop.xlane.xlu0 %1475
    %v1477 = vcvt.f32.s32 %v1476
    %v1478 = vcvt.f32.s32 %v1472
    %v1479 = vshll.u32 %v1478, 16
    %v1480 = vadd.s32 %v1479, %v1477
    %v1481 = vsel %vm1170, %v1309, 2147483647
    %v1482 = vand.u32 %v1481, 65535
    %v1483 = vshra.s32 %v1481, 16
    %v1484 = vcvt.s32.f32 %v1482
    %v1485 = vcvt.s32.f32 %v1483
    %1486 = vmin.xlane.f32.xlu0 %v1485
    %v1487 = vpop.xlane.xlu0 %1486
    %vm1488 = vcmp.eq.f32.partialorder %v1485, %v1487
    %v1489 = vsel %vm1488, %v1484, inf
    %1490 = vmin.xlane.f32.xlu0 %v1489
    %v1491 = vpop.xlane.xlu0 %1490
    %v1492 = vcvt.f32.s32 %v1491
    %v1493 = vcvt.f32.s32 %v1487
    %v1494 = vshll.u32 %v1493, 16
    %v1495 = vadd.s32 %v1494, %v1492
    %v1496 = vsel %vm1170, %v1310, 2147483647
    %v1497 = vand.u32 %v1496, 65535
    %v1498 = vshra.s32 %v1496, 16
    %v1499 = vcvt.s32.f32 %v1497
    %v1500 = vcvt.s32.f32 %v1498
    %1501 = vmin.xlane.f32.xlu0 %v1500
    %v1502 = vpop.xlane.xlu0 %1501
    %vm1503 = vcmp.eq.f32.partialorder %v1500, %v1502
    %v1504 = vsel %vm1503, %v1499, inf
    %1505 = vmin.xlane.f32.xlu0 %v1504
    %v1506 = vpop.xlane.xlu0 %1505
    %v1507 = vcvt.f32.s32 %v1506
    %v1508 = vcvt.f32.s32 %v1502
    %v1509 = vshll.u32 %v1508, 16
    %v1510 = vadd.s32 %v1509, %v1507
    %v1511 = vsel %vm1170, %v1311, 2147483647
    %v1512 = vand.u32 %v1511, 65535
    %v1513 = vshra.s32 %v1511, 16
    %v1514 = vcvt.s32.f32 %v1512
    %v1515 = vcvt.s32.f32 %v1513
    %1516 = vmin.xlane.f32.xlu0 %v1515
    %v1517 = vpop.xlane.xlu0 %1516
    %vm1518 = vcmp.eq.f32.partialorder %v1515, %v1517
    %v1519 = vsel %vm1518, %v1514, inf
    %1520 = vmin.xlane.f32.xlu0 %v1519
    %v1521 = vpop.xlane.xlu0 %1520
    %v1522 = vcvt.f32.s32 %v1521
    %v1523 = vcvt.f32.s32 %v1517
    %v1524 = vshll.u32 %v1523, 16
    %v1525 = vadd.s32 %v1524, %v1522
    %v1526 = vsel %vm1170, %v1312, 2147483647
    %v1527 = vand.u32 %v1526, 65535
    %v1528 = vshra.s32 %v1526, 16
    %v1529 = vcvt.s32.f32 %v1527
    %v1530 = vcvt.s32.f32 %v1528
    %1531 = vmin.xlane.f32.xlu0 %v1530
    %v1532 = vpop.xlane.xlu0 %1531
    %vm1533 = vcmp.eq.f32.partialorder %v1530, %v1532
    %v1534 = vsel %vm1533, %v1529, inf
    %1535 = vmin.xlane.f32.xlu0 %v1534
    %v1536 = vpop.xlane.xlu0 %1535
    %v1537 = vcvt.f32.s32 %v1536
    %v1538 = vcvt.f32.s32 %v1532
    %v1539 = vshll.u32 %v1538, 16
    %v1540 = vadd.s32 %v1539, %v1537
    %v1541 = vsel %vm1170, %v1313, 2147483647
    %v1542 = vand.u32 %v1541, 65535
    %v1543 = vshra.s32 %v1541, 16
    %v1544 = vcvt.s32.f32 %v1542
    %v1545 = vcvt.s32.f32 %v1543
    %1546 = vmin.xlane.f32.xlu0 %v1545
    %v1547 = vpop.xlane.xlu0 %1546
    %vm1548 = vcmp.eq.f32.partialorder %v1545, %v1547
    %v1549 = vsel %vm1548, %v1544, inf
    %1550 = vmin.xlane.f32.xlu0 %v1549
    %v1551 = vpop.xlane.xlu0 %1550
    %v1552 = vcvt.f32.s32 %v1551
    %v1553 = vcvt.f32.s32 %v1547
    %v1554 = vshll.u32 %v1553, 16
    %v1555 = vadd.s32 %v1554, %v1552
    %v1556 = vsel %vm1170, %v1314, 2147483647
    %v1557 = vand.u32 %v1556, 65535
    %v1558 = vshra.s32 %v1556, 16
    %v1559 = vcvt.s32.f32 %v1557
    %v1560 = vcvt.s32.f32 %v1558
    %1561 = vmin.xlane.f32.xlu0 %v1560
    %v1562 = vpop.xlane.xlu0 %1561
    %vm1563 = vcmp.eq.f32.partialorder %v1560, %v1562
    %v1564 = vsel %vm1563, %v1559, inf
    %1565 = vmin.xlane.f32.xlu0 %v1564
    %v1566 = vpop.xlane.xlu0 %1565
    %v1567 = vcvt.f32.s32 %v1566
    %v1568 = vcvt.f32.s32 %v1562
    %v1569 = vshll.u32 %v1568, 16
    %v1570 = vadd.s32 %v1569, %v1567
    %v1571 = vsel %vm1170, %v1315, 2147483647
    %v1572 = vand.u32 %v1571, 65535
    %v1573 = vshra.s32 %v1571, 16
    %v1574 = vcvt.s32.f32 %v1572
    %v1575 = vcvt.s32.f32 %v1573
    %1576 = vmin.xlane.f32.xlu0 %v1575
    %v1577 = vpop.xlane.xlu0 %1576
    %vm1578 = vcmp.eq.f32.partialorder %v1575, %v1577
    %v1579 = vsel %vm1578, %v1574, inf
    %1580 = vmin.xlane.f32.xlu0 %v1579
    %v1581 = vpop.xlane.xlu0 %1580
    %v1582 = vcvt.f32.s32 %v1581
    %v1583 = vcvt.f32.s32 %v1577
    %v1584 = vshll.u32 %v1583, 16
    %v1585 = vadd.s32 %v1584, %v1582
    %v1586 = vsel %vm1170, %v1316, 2147483647
    %v1587 = vand.u32 %v1586, 65535
    %v1588 = vshra.s32 %v1586, 16
    %v1589 = vcvt.s32.f32 %v1587
    %v1590 = vcvt.s32.f32 %v1588
    %1591 = vmin.xlane.f32.xlu0 %v1590
    %v1592 = vpop.xlane.xlu0 %1591
    %vm1593 = vcmp.eq.f32.partialorder %v1590, %v1592
    %v1594 = vsel %vm1593, %v1589, inf
    %1595 = vmin.xlane.f32.xlu0 %v1594
    %v1596 = vpop.xlane.xlu0 %1595
    %v1597 = vcvt.f32.s32 %v1596
    %v1598 = vcvt.f32.s32 %v1592
    %v1599 = vshll.u32 %v1598, 16
    %v1600 = vadd.s32 %v1599, %v1597
    %v1601 = vsel %vm1170, %v1317, 2147483647
    %v1602 = vand.u32 %v1601, 65535
    %v1603 = vshra.s32 %v1601, 16
    %v1604 = vcvt.s32.f32 %v1602
    %v1605 = vcvt.s32.f32 %v1603
    %1606 = vmin.xlane.f32.xlu0 %v1605
    %v1607 = vpop.xlane.xlu0 %1606
    %vm1608 = vcmp.eq.f32.partialorder %v1605, %v1607
    %v1609 = vsel %vm1608, %v1604, inf
    %1610 = vmin.xlane.f32.xlu0 %v1609
    %v1611 = vpop.xlane.xlu0 %1610
    %v1612 = vcvt.f32.s32 %v1611
    %v1613 = vcvt.f32.s32 %v1607
    %v1614 = vshll.u32 %v1613, 16
    %v1615 = vadd.s32 %v1614, %v1612
    %v1616 = vsel %vm1170, %v1318, 2147483647
    %v1617 = vand.u32 %v1616, 65535
    %v1618 = vshra.s32 %v1616, 16
    %v1619 = vcvt.s32.f32 %v1617
    %v1620 = vcvt.s32.f32 %v1618
    %1621 = vmin.xlane.f32.xlu0 %v1620
    %v1622 = vpop.xlane.xlu0 %1621
    %vm1623 = vcmp.eq.f32.partialorder %v1620, %v1622
    %v1624 = vsel %vm1623, %v1619, inf
    %1625 = vmin.xlane.f32.xlu0 %v1624
    %v1626 = vpop.xlane.xlu0 %1625
    %v1627 = vcvt.f32.s32 %v1626
    %v1628 = vcvt.f32.s32 %v1622
    %v1629 = vshll.u32 %v1628, 16
    %v1630 = vadd.s32 %v1629, %v1627
    %v1631 = vsel %vm1170, %v1319, 2147483647
    %v1632 = vand.u32 %v1631, 65535
    %v1633 = vshra.s32 %v1631, 16
    %v1634 = vcvt.s32.f32 %v1632
    %v1635 = vcvt.s32.f32 %v1633
    %1636 = vmin.xlane.f32.xlu0 %v1635
    %v1637 = vpop.xlane.xlu0 %1636
    %vm1638 = vcmp.eq.f32.partialorder %v1635, %v1637
    %v1639 = vsel %vm1638, %v1634, inf
    %1640 = vmin.xlane.f32.xlu0 %v1639
    %v1641 = vpop.xlane.xlu0 %1640
    %v1642 = vcvt.f32.s32 %v1641
    %v1643 = vcvt.f32.s32 %v1637
    %v1644 = vshll.u32 %v1643, 16
    %v1645 = vadd.s32 %v1644, %v1642
    %v1646 = vsel %vm1170, %v1320, 2147483647
    %v1647 = vand.u32 %v1646, 65535
    %v1648 = vshra.s32 %v1646, 16
    %v1649 = vcvt.s32.f32 %v1647
    %v1650 = vcvt.s32.f32 %v1648
    %1651 = vmin.xlane.f32.xlu0 %v1650
    %v1652 = vpop.xlane.xlu0 %1651
    %vm1653 = vcmp.eq.f32.partialorder %v1650, %v1652
    %v1654 = vsel %vm1653, %v1649, inf
    %1655 = vmin.xlane.f32.xlu0 %v1654
    %v1656 = vpop.xlane.xlu0 %1655
    %v1657 = vcvt.f32.s32 %v1656
    %v1658 = vcvt.f32.s32 %v1652
    %v1659 = vshll.u32 %v1658, 16
    %v1660 = vadd.s32 %v1659, %v1657
    %v1661 = vsel %vm1170, %v1321, 2147483647
    %v1662 = vand.u32 %v1661, 65535
    %v1663 = vshra.s32 %v1661, 16
    %v1664 = vcvt.s32.f32 %v1662
    %v1665 = vcvt.s32.f32 %v1663
    %1666 = vmin.xlane.f32.xlu0 %v1665
    %v1667 = vpop.xlane.xlu0 %1666
    %vm1668 = vcmp.eq.f32.partialorder %v1665, %v1667
    %v1669 = vsel %vm1668, %v1664, inf
    %1670 = vmin.xlane.f32.xlu0 %v1669
    %v1671 = vpop.xlane.xlu0 %1670
    %v1672 = vcvt.f32.s32 %v1671
    %v1673 = vcvt.f32.s32 %v1667
    %v1674 = vshll.u32 %v1673, 16
    %v1675 = vadd.s32 %v1674, %v1672
    %v1676 = vsel %vm1170, %v1322, 2147483647
    %v1677 = vand.u32 %v1676, 65535
    %v1678 = vshra.s32 %v1676, 16
    %v1679 = vcvt.s32.f32 %v1677
    %v1680 = vcvt.s32.f32 %v1678
    %1681 = vmin.xlane.f32.xlu0 %v1680
    %v1682 = vpop.xlane.xlu0 %1681
    %vm1683 = vcmp.eq.f32.partialorder %v1680, %v1682
    %v1684 = vsel %vm1683, %v1679, inf
    %1685 = vmin.xlane.f32.xlu0 %v1684
    %v1686 = vpop.xlane.xlu0 %1685
    %v1687 = vcvt.f32.s32 %v1686
    %v1688 = vcvt.f32.s32 %v1682
    %v1689 = vshll.u32 %v1688, 16
    %v1690 = vadd.s32 %v1689, %v1687
    %v1691 = vsel %vm1170, %v1323, 2147483647
    %v1692 = vand.u32 %v1691, 65535
    %v1693 = vshra.s32 %v1691, 16
    %v1694 = vcvt.s32.f32 %v1692
    %v1695 = vcvt.s32.f32 %v1693
    %1696 = vmin.xlane.f32.xlu0 %v1695
    %v1697 = vpop.xlane.xlu0 %1696
    %vm1698 = vcmp.eq.f32.partialorder %v1695, %v1697
    %v1699 = vsel %vm1698, %v1694, inf
    %1700 = vmin.xlane.f32.xlu0 %v1699
    %v1701 = vpop.xlane.xlu0 %1700
    %v1702 = vcvt.f32.s32 %v1701
    %v1703 = vcvt.f32.s32 %v1697
    %v1704 = vshll.u32 %v1703, 16
    %v1705 = vadd.s32 %v1704, %v1702
    %v1706 = vsel %vm1170, %v1324, 2147483647
    %v1707 = vand.u32 %v1706, 65535
    %v1708 = vshra.s32 %v1706, 16
    %v1709 = vcvt.s32.f32 %v1707
    %v1710 = vcvt.s32.f32 %v1708
    %1711 = vmin.xlane.f32.xlu0 %v1710
    %v1712 = vpop.xlane.xlu0 %1711
    %vm1713 = vcmp.eq.f32.partialorder %v1710, %v1712
    %v1714 = vsel %vm1713, %v1709, inf
    %1715 = vmin.xlane.f32.xlu0 %v1714
    %v1716 = vpop.xlane.xlu0 %1715
    %v1717 = vcvt.f32.s32 %v1716
    %v1718 = vcvt.f32.s32 %v1712
    %v1719 = vshll.u32 %v1718, 16
    %v1720 = vadd.s32 %v1719, %v1717
    %v1721 = vsel %vm1170, %v1325, 2147483647
    %v1722 = vand.u32 %v1721, 65535
    %v1723 = vshra.s32 %v1721, 16
    %v1724 = vcvt.s32.f32 %v1722
    %v1725 = vcvt.s32.f32 %v1723
    %1726 = vmin.xlane.f32.xlu0 %v1725
    %v1727 = vpop.xlane.xlu0 %1726
    %vm1728 = vcmp.eq.f32.partialorder %v1725, %v1727
    %v1729 = vsel %vm1728, %v1724, inf
    %1730 = vmin.xlane.f32.xlu0 %v1729
    %v1731 = vpop.xlane.xlu0 %1730
    %v1732 = vcvt.f32.s32 %v1731
    %v1733 = vcvt.f32.s32 %v1727
    %v1734 = vshll.u32 %v1733, 16
    %v1735 = vadd.s32 %v1734, %v1732
    %v1736 = vsel %vm1170, %v1326, 2147483647
    %v1737 = vand.u32 %v1736, 65535
    %v1738 = vshra.s32 %v1736, 16
    %v1739 = vcvt.s32.f32 %v1737
    %v1740 = vcvt.s32.f32 %v1738
    %1741 = vmin.xlane.f32.xlu0 %v1740
    %v1742 = vpop.xlane.xlu0 %1741
    %vm1743 = vcmp.eq.f32.partialorder %v1740, %v1742
    %v1744 = vsel %vm1743, %v1739, inf
    %1745 = vmin.xlane.f32.xlu0 %v1744
    %v1746 = vpop.xlane.xlu0 %1745
    %v1747 = vcvt.f32.s32 %v1746
    %v1748 = vcvt.f32.s32 %v1742
    %v1749 = vshll.u32 %v1748, 16
    %v1750 = vadd.s32 %v1749, %v1747
    %v1751 = vsel %vm1170, %v1327, 2147483647
    %v1752 = vand.u32 %v1751, 65535
    %v1753 = vshra.s32 %v1751, 16
    %v1754 = vcvt.s32.f32 %v1752
    %v1755 = vcvt.s32.f32 %v1753
    %1756 = vmin.xlane.f32.xlu0 %v1755
    %v1757 = vpop.xlane.xlu0 %1756
    %vm1758 = vcmp.eq.f32.partialorder %v1755, %v1757
    %v1759 = vsel %vm1758, %v1754, inf
    %1760 = vmin.xlane.f32.xlu0 %v1759
    %v1761 = vpop.xlane.xlu0 %1760
    %v1762 = vcvt.f32.s32 %v1761
    %v1763 = vcvt.f32.s32 %v1757
    %v1764 = vshll.u32 %v1763, 16
    %v1765 = vadd.s32 %v1764, %v1762
    %v1766 = vsel %vm1170, %v1328, 2147483647
    %v1767 = vand.u32 %v1766, 65535
    %v1768 = vshra.s32 %v1766, 16
    %v1769 = vcvt.s32.f32 %v1767
    %v1770 = vcvt.s32.f32 %v1768
    %1771 = vmin.xlane.f32.xlu0 %v1770
    %v1772 = vpop.xlane.xlu0 %1771
    %vm1773 = vcmp.eq.f32.partialorder %v1770, %v1772
    %v1774 = vsel %vm1773, %v1769, inf
    %1775 = vmin.xlane.f32.xlu0 %v1774
    %v1776 = vpop.xlane.xlu0 %1775
    %v1777 = vcvt.f32.s32 %v1776
    %v1778 = vcvt.f32.s32 %v1772
    %v1779 = vshll.u32 %v1778, 16
    %v1780 = vadd.s32 %v1779, %v1777
    %v1781 = vsel %vm1170, %v1329, 2147483647
    %v1782 = vand.u32 %v1781, 65535
    %v1783 = vshra.s32 %v1781, 16
    %v1784 = vcvt.s32.f32 %v1782
    %v1785 = vcvt.s32.f32 %v1783
    %1786 = vmin.xlane.f32.xlu0 %v1785
    %v1787 = vpop.xlane.xlu0 %1786
    %vm1788 = vcmp.eq.f32.partialorder %v1785, %v1787
    %v1789 = vsel %vm1788, %v1784, inf
    %1790 = vmin.xlane.f32.xlu0 %v1789
    %v1791 = vpop.xlane.xlu0 %1790
    %v1792 = vcvt.f32.s32 %v1791
    %v1793 = vcvt.f32.s32 %v1787
    %v1794 = vshll.u32 %v1793, 16
    %v1795 = vadd.s32 %v1794, %v1792
    %v1796 = vsel %vm1170, %v1330, 2147483647
    %v1797 = vand.u32 %v1796, 65535
    %v1798 = vshra.s32 %v1796, 16
    %v1799 = vcvt.s32.f32 %v1797
    %v1800 = vcvt.s32.f32 %v1798
    %1801 = vmin.xlane.f32.xlu0 %v1800
    %v1802 = vpop.xlane.xlu0 %1801
    %vm1803 = vcmp.eq.f32.partialorder %v1800, %v1802
    %v1804 = vsel %vm1803, %v1799, inf
    %1805 = vmin.xlane.f32.xlu0 %v1804
    %v1806 = vpop.xlane.xlu0 %1805
    %v1807 = vcvt.f32.s32 %v1806
    %v1808 = vcvt.f32.s32 %v1802
    %v1809 = vshll.u32 %v1808, 16
    %v1810 = vadd.s32 %v1809, %v1807
    %vm1811 = vcmp.eq.s32.totalorder %v1169, %v1345
    %vm1812 = vcmp.eq.s32.totalorder %v1169, %v1360
    %vm1813 = vcmp.eq.s32.totalorder %v1169, %v1375
    %vm1814 = vcmp.eq.s32.totalorder %v1169, %v1390
    %vm1815 = vcmp.eq.s32.totalorder %v1169, %v1405
    %vm1816 = vcmp.eq.s32.totalorder %v1169, %v1420
    %vm1817 = vcmp.eq.s32.totalorder %v1169, %v1435
    %vm1818 = vcmp.eq.s32.totalorder %v1169, %v1450
    %vm1819 = vcmp.eq.s32.totalorder %v1169, %v1465
    %vm1820 = vcmp.eq.s32.totalorder %v1169, %v1480
    %vm1821 = vcmp.eq.s32.totalorder %v1169, %v1495
    %vm1822 = vcmp.eq.s32.totalorder %v1169, %v1510
    %vm1823 = vcmp.eq.s32.totalorder %v1169, %v1525
    %vm1824 = vcmp.eq.s32.totalorder %v1169, %v1540
    %vm1825 = vcmp.eq.s32.totalorder %v1169, %v1555
    %vm1826 = vcmp.eq.s32.totalorder %v1169, %v1570
    %vm1827 = vcmp.eq.s32.totalorder %v1169, %v1585
    %vm1828 = vcmp.eq.s32.totalorder %v1169, %v1600
    %vm1829 = vcmp.eq.s32.totalorder %v1169, %v1615
    %vm1830 = vcmp.eq.s32.totalorder %v1169, %v1630
    %vm1831 = vcmp.eq.s32.totalorder %v1169, %v1645
    %vm1832 = vcmp.eq.s32.totalorder %v1169, %v1660
    %vm1833 = vcmp.eq.s32.totalorder %v1169, %v1675
    %vm1834 = vcmp.eq.s32.totalorder %v1169, %v1690
    %vm1835 = vcmp.eq.s32.totalorder %v1169, %v1705
    %vm1836 = vcmp.eq.s32.totalorder %v1169, %v1720
    %vm1837 = vcmp.eq.s32.totalorder %v1169, %v1735
    %vm1838 = vcmp.eq.s32.totalorder %v1169, %v1750
    %vm1839 = vcmp.eq.s32.totalorder %v1169, %v1765
    %vm1840 = vcmp.eq.s32.totalorder %v1169, %v1780
    %vm1841 = vcmp.eq.s32.totalorder %v1169, %v1795
    %vm1842 = vcmp.eq.s32.totalorder %v1169, %v1810
    %v1843 = vsel %vm1811, -inf, %v1136
    %v1844 = vsel %vm1812, -inf, %v1137
    %v1845 = vsel %vm1813, -inf, %v1138
    %v1846 = vsel %vm1814, -inf, %v1139
    %v1847 = vsel %vm1815, -inf, %v1140
    %v1848 = vsel %vm1816, -inf, %v1141
    %v1849 = vsel %vm1817, -inf, %v1142
    %v1850 = vsel %vm1818, -inf, %v1143
    %v1851 = vsel %vm1819, -inf, %v1144
    %v1852 = vsel %vm1820, -inf, %v1145
    %v1853 = vsel %vm1821, -inf, %v1146
    %v1854 = vsel %vm1822, -inf, %v1147
    %v1855 = vsel %vm1823, -inf, %v1148
    %v1856 = vsel %vm1824, -inf, %v1149
    %v1857 = vsel %vm1825, -inf, %v1150
    %v1858 = vsel %vm1826, -inf, %v1151
    %v1859 = vsel %vm1827, -inf, %v1152
    %v1860 = vsel %vm1828, -inf, %v1153
    %v1861 = vsel %vm1829, -inf, %v1154
    %v1862 = vsel %vm1830, -inf, %v1155
    %v1863 = vsel %vm1831, -inf, %v1156
    %v1864 = vsel %vm1832, -inf, %v1157
    %v1865 = vsel %vm1833, -inf, %v1158
    %v1866 = vsel %vm1834, -inf, %v1159
    %v1867 = vsel %vm1835, -inf, %v1160
    %v1868 = vsel %vm1836, -inf, %v1161
    %v1869 = vsel %vm1837, -inf, %v1162
    %v1870 = vsel %vm1838, -inf, %v1163
    %v1871 = vsel %vm1839, -inf, %v1164
    %v1872 = vsel %vm1840, -inf, %v1165
    %v1873 = vsel %vm1841, -inf, %v1166
    %v1874 = vsel %vm1842, -inf, %v1167
    %v1875 = vsel %vm1170, %v1843, -inf
    %1876 = vmax.xlane.f32.xlu0 %v1875
    %v1877 = vpop.xlane.xlu0 %1876
    %v1878 = vsel %vm1170, %v1844, -inf
    %1879 = vmax.xlane.f32.xlu0 %v1878
    %v1880 = vpop.xlane.xlu0 %1879
    %v1881 = vsel %vm1170, %v1845, -inf
    %1882 = vmax.xlane.f32.xlu0 %v1881
    %v1883 = vpop.xlane.xlu0 %1882
    %v1884 = vsel %vm1170, %v1846, -inf
    %1885 = vmax.xlane.f32.xlu0 %v1884
    %v1886 = vpop.xlane.xlu0 %1885
    %v1887 = vsel %vm1170, %v1847, -inf
    %1888 = vmax.xlane.f32.xlu0 %v1887
    %v1889 = vpop.xlane.xlu0 %1888
    %v1890 = vsel %vm1170, %v1848, -inf
    %1891 = vmax.xlane.f32.xlu0 %v1890
    %v1892 = vpop.xlane.xlu0 %1891
    %v1893 = vsel %vm1170, %v1849, -inf
    %1894 = vmax.xlane.f32.xlu0 %v1893
    %v1895 = vpop.xlane.xlu0 %1894
    %v1896 = vsel %vm1170, %v1850, -inf
    %1897 = vmax.xlane.f32.xlu0 %v1896
    %v1898 = vpop.xlane.xlu0 %1897
    %v1899 = vsel %vm1170, %v1851, -inf
    %1900 = vmax.xlane.f32.xlu0 %v1899
    %v1901 = vpop.xlane.xlu0 %1900
    %v1902 = vsel %vm1170, %v1852, -inf
    %1903 = vmax.xlane.f32.xlu0 %v1902
    %v1904 = vpop.xlane.xlu0 %1903
    %v1905 = vsel %vm1170, %v1853, -inf
    %1906 = vmax.xlane.f32.xlu0 %v1905
    %v1907 = vpop.xlane.xlu0 %1906
    %v1908 = vsel %vm1170, %v1854, -inf
    %1909 = vmax.xlane.f32.xlu0 %v1908
    %v1910 = vpop.xlane.xlu0 %1909
    %v1911 = vsel %vm1170, %v1855, -inf
    %1912 = vmax.xlane.f32.xlu0 %v1911
    %v1913 = vpop.xlane.xlu0 %1912
    %v1914 = vsel %vm1170, %v1856, -inf
    %1915 = vmax.xlane.f32.xlu0 %v1914
    %v1916 = vpop.xlane.xlu0 %1915
    %v1917 = vsel %vm1170, %v1857, -inf
    %1918 = vmax.xlane.f32.xlu0 %v1917
    %v1919 = vpop.xlane.xlu0 %1918
    %v1920 = vsel %vm1170, %v1858, -inf
    %1921 = vmax.xlane.f32.xlu0 %v1920
    %v1922 = vpop.xlane.xlu0 %1921
    %v1923 = vsel %vm1170, %v1859, -inf
    %1924 = vmax.xlane.f32.xlu0 %v1923
    %v1925 = vpop.xlane.xlu0 %1924
    %v1926 = vsel %vm1170, %v1860, -inf
    %1927 = vmax.xlane.f32.xlu0 %v1926
    %v1928 = vpop.xlane.xlu0 %1927
    %v1929 = vsel %vm1170, %v1861, -inf
    %1930 = vmax.xlane.f32.xlu0 %v1929
    %v1931 = vpop.xlane.xlu0 %1930
    %v1932 = vsel %vm1170, %v1862, -inf
    %1933 = vmax.xlane.f32.xlu0 %v1932
    %v1934 = vpop.xlane.xlu0 %1933
    %v1935 = vsel %vm1170, %v1863, -inf
    %1936 = vmax.xlane.f32.xlu0 %v1935
    %v1937 = vpop.xlane.xlu0 %1936
    %v1938 = vsel %vm1170, %v1864, -inf
    %1939 = vmax.xlane.f32.xlu0 %v1938
    %v1940 = vpop.xlane.xlu0 %1939
    %v1941 = vsel %vm1170, %v1865, -inf
    %1942 = vmax.xlane.f32.xlu0 %v1941
    %v1943 = vpop.xlane.xlu0 %1942
    %v1944 = vsel %vm1170, %v1866, -inf
    %1945 = vmax.xlane.f32.xlu0 %v1944
    %v1946 = vpop.xlane.xlu0 %1945
    %v1947 = vsel %vm1170, %v1867, -inf
    %1948 = vmax.xlane.f32.xlu0 %v1947
    %v1949 = vpop.xlane.xlu0 %1948
    %v1950 = vsel %vm1170, %v1868, -inf
    %1951 = vmax.xlane.f32.xlu0 %v1950
    %v1952 = vpop.xlane.xlu0 %1951
    %v1953 = vsel %vm1170, %v1869, -inf
    %1954 = vmax.xlane.f32.xlu0 %v1953
    %v1955 = vpop.xlane.xlu0 %1954
    %v1956 = vsel %vm1170, %v1870, -inf
    %1957 = vmax.xlane.f32.xlu0 %v1956
    %v1958 = vpop.xlane.xlu0 %1957
    %v1959 = vsel %vm1170, %v1871, -inf
    %1960 = vmax.xlane.f32.xlu0 %v1959
    %v1961 = vpop.xlane.xlu0 %1960
    %v1962 = vsel %vm1170, %v1872, -inf
    %1963 = vmax.xlane.f32.xlu0 %v1962
    %v1964 = vpop.xlane.xlu0 %1963
    %v1965 = vsel %vm1170, %v1873, -inf
    %1966 = vmax.xlane.f32.xlu0 %v1965
    %v1967 = vpop.xlane.xlu0 %1966
    %v1968 = vsel %vm1170, %v1874, -inf
    %1969 = vmax.xlane.f32.xlu0 %v1968
    %v1970 = vpop.xlane.xlu0 %1969
    %vm1971 = vcmp.eq.f32.partialorder %v1843, %v1877
    %vm1972 = vcmp.eq.f32.partialorder %v1844, %v1880
    %vm1973 = vcmp.eq.f32.partialorder %v1845, %v1883
    %vm1974 = vcmp.eq.f32.partialorder %v1846, %v1886
    %vm1975 = vcmp.eq.f32.partialorder %v1847, %v1889
    %vm1976 = vcmp.eq.f32.partialorder %v1848, %v1892
    %vm1977 = vcmp.eq.f32.partialorder %v1849, %v1895
    %vm1978 = vcmp.eq.f32.partialorder %v1850, %v1898
    %vm1979 = vcmp.eq.f32.partialorder %v1851, %v1901
    %vm1980 = vcmp.eq.f32.partialorder %v1852, %v1904
    %vm1981 = vcmp.eq.f32.partialorder %v1853, %v1907
    %vm1982 = vcmp.eq.f32.partialorder %v1854, %v1910
    %vm1983 = vcmp.eq.f32.partialorder %v1855, %v1913
    %vm1984 = vcmp.eq.f32.partialorder %v1856, %v1916
    %vm1985 = vcmp.eq.f32.partialorder %v1857, %v1919
    %vm1986 = vcmp.eq.f32.partialorder %v1858, %v1922
    %vm1987 = vcmp.eq.f32.partialorder %v1859, %v1925
    %vm1988 = vcmp.eq.f32.partialorder %v1860, %v1928
    %vm1989 = vcmp.eq.f32.partialorder %v1861, %v1931
    %vm1990 = vcmp.eq.f32.partialorder %v1862, %v1934
    %vm1991 = vcmp.eq.f32.partialorder %v1863, %v1937
    %vm1992 = vcmp.eq.f32.partialorder %v1864, %v1940
    %vm1993 = vcmp.eq.f32.partialorder %v1865, %v1943
    %vm1994 = vcmp.eq.f32.partialorder %v1866, %v1946
    %vm1995 = vcmp.eq.f32.partialorder %v1867, %v1949
    %vm1996 = vcmp.eq.f32.partialorder %v1868, %v1952
    %vm1997 = vcmp.eq.f32.partialorder %v1869, %v1955
    %vm1998 = vcmp.eq.f32.partialorder %v1870, %v1958
    %vm1999 = vcmp.eq.f32.partialorder %v1871, %v1961
    %vm2000 = vcmp.eq.f32.partialorder %v1872, %v1964
    %vm2001 = vcmp.eq.f32.partialorder %v1873, %v1967
    %vm2002 = vcmp.eq.f32.partialorder %v1874, %v1970
    %v2003 = vsel %vm1971, %v1169, 8
    %v2004 = vsel %vm1972, %v1169, 8
    %v2005 = vsel %vm1973, %v1169, 8
    %v2006 = vsel %vm1974, %v1169, 8
    %v2007 = vsel %vm1975, %v1169, 8
    %v2008 = vsel %vm1976, %v1169, 8
    %v2009 = vsel %vm1977, %v1169, 8
    %v2010 = vsel %vm1978, %v1169, 8
    %v2011 = vsel %vm1979, %v1169, 8
    %v2012 = vsel %vm1980, %v1169, 8
    %v2013 = vsel %vm1981, %v1169, 8
    %v2014 = vsel %vm1982, %v1169, 8
    %v2015 = vsel %vm1983, %v1169, 8
    %v2016 = vsel %vm1984, %v1169, 8
    %v2017 = vsel %vm1985, %v1169, 8
    %v2018 = vsel %vm1986, %v1169, 8
    %v2019 = vsel %vm1987, %v1169, 8
    %v2020 = vsel %vm1988, %v1169, 8
    %v2021 = vsel %vm1989, %v1169, 8
    %v2022 = vsel %vm1990, %v1169, 8
    %v2023 = vsel %vm1991, %v1169, 8
    %v2024 = vsel %vm1992, %v1169, 8
    %v2025 = vsel %vm1993, %v1169, 8
    %v2026 = vsel %vm1994, %v1169, 8
    %v2027 = vsel %vm1995, %v1169, 8
    %v2028 = vsel %vm1996, %v1169, 8
    %v2029 = vsel %vm1997, %v1169, 8
    %v2030 = vsel %vm1998, %v1169, 8
    %v2031 = vsel %vm1999, %v1169, 8
    %v2032 = vsel %vm2000, %v1169, 8
    %v2033 = vsel %vm2001, %v1169, 8
    %v2034 = vsel %vm2002, %v1169, 8
    %v2035 = vsel %vm1170, %v2003, 2147483647
    %v2036 = vand.u32 %v2035, 65535
    %v2037 = vshra.s32 %v2035, 16
    %v2038 = vcvt.s32.f32 %v2036
    %v2039 = vcvt.s32.f32 %v2037
    %2040 = vmin.xlane.f32.xlu0 %v2039
    %v2041 = vpop.xlane.xlu0 %2040
    %vm2042 = vcmp.eq.f32.partialorder %v2039, %v2041
    %v2043 = vsel %vm2042, %v2038, inf
    %2044 = vmin.xlane.f32.xlu0 %v2043
    %v2045 = vpop.xlane.xlu0 %2044
    %v2046 = vcvt.f32.s32 %v2045
    %v2047 = vcvt.f32.s32 %v2041
    %v2048 = vshll.u32 %v2047, 16
    %v2049 = vadd.s32 %v2048, %v2046
    %v2050 = vsel %vm1170, %v2004, 2147483647
    %v2051 = vand.u32 %v2050, 65535
    %v2052 = vshra.s32 %v2050, 16
    %v2053 = vcvt.s32.f32 %v2051
    %v2054 = vcvt.s32.f32 %v2052
    %2055 = vmin.xlane.f32.xlu0 %v2054
    %v2056 = vpop.xlane.xlu0 %2055
    %vm2057 = vcmp.eq.f32.partialorder %v2054, %v2056
    %v2058 = vsel %vm2057, %v2053, inf
    %2059 = vmin.xlane.f32.xlu0 %v2058
    %v2060 = vpop.xlane.xlu0 %2059
    %v2061 = vcvt.f32.s32 %v2060
    %v2062 = vcvt.f32.s32 %v2056
    %v2063 = vshll.u32 %v2062, 16
    %v2064 = vadd.s32 %v2063, %v2061
    %v2065 = vsel %vm1170, %v2005, 2147483647
    %v2066 = vand.u32 %v2065, 65535
    %v2067 = vshra.s32 %v2065, 16
    %v2068 = vcvt.s32.f32 %v2066
    %v2069 = vcvt.s32.f32 %v2067
    %2070 = vmin.xlane.f32.xlu0 %v2069
    %v2071 = vpop.xlane.xlu0 %2070
    %vm2072 = vcmp.eq.f32.partialorder %v2069, %v2071
    %v2073 = vsel %vm2072, %v2068, inf
    %2074 = vmin.xlane.f32.xlu0 %v2073
    %v2075 = vpop.xlane.xlu0 %2074
    %v2076 = vcvt.f32.s32 %v2075
    %v2077 = vcvt.f32.s32 %v2071
    %v2078 = vshll.u32 %v2077, 16
    %v2079 = vadd.s32 %v2078, %v2076
    %v2080 = vsel %vm1170, %v2006, 2147483647
    %v2081 = vand.u32 %v2080, 65535
    %v2082 = vshra.s32 %v2080, 16
    %v2083 = vcvt.s32.f32 %v2081
    %v2084 = vcvt.s32.f32 %v2082
    %2085 = vmin.xlane.f32.xlu0 %v2084
    %v2086 = vpop.xlane.xlu0 %2085
    %vm2087 = vcmp.eq.f32.partialorder %v2084, %v2086
    %v2088 = vsel %vm2087, %v2083, inf
    %2089 = vmin.xlane.f32.xlu0 %v2088
    %v2090 = vpop.xlane.xlu0 %2089
    %v2091 = vcvt.f32.s32 %v2090
    %v2092 = vcvt.f32.s32 %v2086
    %v2093 = vshll.u32 %v2092, 16
    %v2094 = vadd.s32 %v2093, %v2091
    %v2095 = vsel %vm1170, %v2007, 2147483647
    %v2096 = vand.u32 %v2095, 65535
    %v2097 = vshra.s32 %v2095, 16
    %v2098 = vcvt.s32.f32 %v2096
    %v2099 = vcvt.s32.f32 %v2097
    %2100 = vmin.xlane.f32.xlu0 %v2099
    %v2101 = vpop.xlane.xlu0 %2100
    %vm2102 = vcmp.eq.f32.partialorder %v2099, %v2101
    %v2103 = vsel %vm2102, %v2098, inf
    %2104 = vmin.xlane.f32.xlu0 %v2103
    %v2105 = vpop.xlane.xlu0 %2104
    %v2106 = vcvt.f32.s32 %v2105
    %v2107 = vcvt.f32.s32 %v2101
    %v2108 = vshll.u32 %v2107, 16
    %v2109 = vadd.s32 %v2108, %v2106
    %v2110 = vsel %vm1170, %v2008, 2147483647
    %v2111 = vand.u32 %v2110, 65535
    %v2112 = vshra.s32 %v2110, 16
    %v2113 = vcvt.s32.f32 %v2111
    %v2114 = vcvt.s32.f32 %v2112
    %2115 = vmin.xlane.f32.xlu0 %v2114
    %v2116 = vpop.xlane.xlu0 %2115
    %vm2117 = vcmp.eq.f32.partialorder %v2114, %v2116
    %v2118 = vsel %vm2117, %v2113, inf
    %2119 = vmin.xlane.f32.xlu0 %v2118
    %v2120 = vpop.xlane.xlu0 %2119
    %v2121 = vcvt.f32.s32 %v2120
    %v2122 = vcvt.f32.s32 %v2116
    %v2123 = vshll.u32 %v2122, 16
    %v2124 = vadd.s32 %v2123, %v2121
    %v2125 = vsel %vm1170, %v2009, 2147483647
    %v2126 = vand.u32 %v2125, 65535
    %v2127 = vshra.s32 %v2125, 16
    %v2128 = vcvt.s32.f32 %v2126
    %v2129 = vcvt.s32.f32 %v2127
    %2130 = vmin.xlane.f32.xlu0 %v2129
    %v2131 = vpop.xlane.xlu0 %2130
    %vm2132 = vcmp.eq.f32.partialorder %v2129, %v2131
    %v2133 = vsel %vm2132, %v2128, inf
    %2134 = vmin.xlane.f32.xlu0 %v2133
    %v2135 = vpop.xlane.xlu0 %2134
    %v2136 = vcvt.f32.s32 %v2135
    %v2137 = vcvt.f32.s32 %v2131
    %v2138 = vshll.u32 %v2137, 16
    %v2139 = vadd.s32 %v2138, %v2136
    %v2140 = vsel %vm1170, %v2010, 2147483647
    %v2141 = vand.u32 %v2140, 65535
    %v2142 = vshra.s32 %v2140, 16
    %v2143 = vcvt.s32.f32 %v2141
    %v2144 = vcvt.s32.f32 %v2142
    %2145 = vmin.xlane.f32.xlu0 %v2144
    %v2146 = vpop.xlane.xlu0 %2145
    %vm2147 = vcmp.eq.f32.partialorder %v2144, %v2146
    %v2148 = vsel %vm2147, %v2143, inf
    %2149 = vmin.xlane.f32.xlu0 %v2148
    %v2150 = vpop.xlane.xlu0 %2149
    %v2151 = vcvt.f32.s32 %v2150
    %v2152 = vcvt.f32.s32 %v2146
    %v2153 = vshll.u32 %v2152, 16
    %v2154 = vadd.s32 %v2153, %v2151
    %v2155 = vsel %vm1170, %v2011, 2147483647
    %v2156 = vand.u32 %v2155, 65535
    %v2157 = vshra.s32 %v2155, 16
    %v2158 = vcvt.s32.f32 %v2156
    %v2159 = vcvt.s32.f32 %v2157
    %2160 = vmin.xlane.f32.xlu0 %v2159
    %v2161 = vpop.xlane.xlu0 %2160
    %vm2162 = vcmp.eq.f32.partialorder %v2159, %v2161
    %v2163 = vsel %vm2162, %v2158, inf
    %2164 = vmin.xlane.f32.xlu0 %v2163
    %v2165 = vpop.xlane.xlu0 %2164
    %v2166 = vcvt.f32.s32 %v2165
    %v2167 = vcvt.f32.s32 %v2161
    %v2168 = vshll.u32 %v2167, 16
    %v2169 = vadd.s32 %v2168, %v2166
    %v2170 = vsel %vm1170, %v2012, 2147483647
    %v2171 = vand.u32 %v2170, 65535
    %v2172 = vshra.s32 %v2170, 16
    %v2173 = vcvt.s32.f32 %v2171
    %v2174 = vcvt.s32.f32 %v2172
    %2175 = vmin.xlane.f32.xlu0 %v2174
    %v2176 = vpop.xlane.xlu0 %2175
    %vm2177 = vcmp.eq.f32.partialorder %v2174, %v2176
    %v2178 = vsel %vm2177, %v2173, inf
    %2179 = vmin.xlane.f32.xlu0 %v2178
    %v2180 = vpop.xlane.xlu0 %2179
    %v2181 = vcvt.f32.s32 %v2180
    %v2182 = vcvt.f32.s32 %v2176
    %v2183 = vshll.u32 %v2182, 16
    %v2184 = vadd.s32 %v2183, %v2181
    %v2185 = vsel %vm1170, %v2013, 2147483647
    %v2186 = vand.u32 %v2185, 65535
    %v2187 = vshra.s32 %v2185, 16
    %v2188 = vcvt.s32.f32 %v2186
    %v2189 = vcvt.s32.f32 %v2187
    %2190 = vmin.xlane.f32.xlu0 %v2189
    %v2191 = vpop.xlane.xlu0 %2190
    %vm2192 = vcmp.eq.f32.partialorder %v2189, %v2191
    %v2193 = vsel %vm2192, %v2188, inf
    %2194 = vmin.xlane.f32.xlu0 %v2193
    %v2195 = vpop.xlane.xlu0 %2194
    %v2196 = vcvt.f32.s32 %v2195
    %v2197 = vcvt.f32.s32 %v2191
    %v2198 = vshll.u32 %v2197, 16
    %v2199 = vadd.s32 %v2198, %v2196
    %v2200 = vsel %vm1170, %v2014, 2147483647
    %v2201 = vand.u32 %v2200, 65535
    %v2202 = vshra.s32 %v2200, 16
    %v2203 = vcvt.s32.f32 %v2201
    %v2204 = vcvt.s32.f32 %v2202
    %2205 = vmin.xlane.f32.xlu0 %v2204
    %v2206 = vpop.xlane.xlu0 %2205
    %vm2207 = vcmp.eq.f32.partialorder %v2204, %v2206
    %v2208 = vsel %vm2207, %v2203, inf
    %2209 = vmin.xlane.f32.xlu0 %v2208
    %v2210 = vpop.xlane.xlu0 %2209
    %v2211 = vcvt.f32.s32 %v2210
    %v2212 = vcvt.f32.s32 %v2206
    %v2213 = vshll.u32 %v2212, 16
    %v2214 = vadd.s32 %v2213, %v2211
    %v2215 = vsel %vm1170, %v2015, 2147483647
    %v2216 = vand.u32 %v2215, 65535
    %v2217 = vshra.s32 %v2215, 16
    %v2218 = vcvt.s32.f32 %v2216
    %v2219 = vcvt.s32.f32 %v2217
    %2220 = vmin.xlane.f32.xlu0 %v2219
    %v2221 = vpop.xlane.xlu0 %2220
    %vm2222 = vcmp.eq.f32.partialorder %v2219, %v2221
    %v2223 = vsel %vm2222, %v2218, inf
    %2224 = vmin.xlane.f32.xlu0 %v2223
    %v2225 = vpop.xlane.xlu0 %2224
    %v2226 = vcvt.f32.s32 %v2225
    %v2227 = vcvt.f32.s32 %v2221
    %v2228 = vshll.u32 %v2227, 16
    %v2229 = vadd.s32 %v2228, %v2226
    %v2230 = vsel %vm1170, %v2016, 2147483647
    %v2231 = vand.u32 %v2230, 65535
    %v2232 = vshra.s32 %v2230, 16
    %v2233 = vcvt.s32.f32 %v2231
    %v2234 = vcvt.s32.f32 %v2232
    %2235 = vmin.xlane.f32.xlu0 %v2234
    %v2236 = vpop.xlane.xlu0 %2235
    %vm2237 = vcmp.eq.f32.partialorder %v2234, %v2236
    %v2238 = vsel %vm2237, %v2233, inf
    %2239 = vmin.xlane.f32.xlu0 %v2238
    %v2240 = vpop.xlane.xlu0 %2239
    %v2241 = vcvt.f32.s32 %v2240
    %v2242 = vcvt.f32.s32 %v2236
    %v2243 = vshll.u32 %v2242, 16
    %v2244 = vadd.s32 %v2243, %v2241
    %v2245 = vsel %vm1170, %v2017, 2147483647
    %v2246 = vand.u32 %v2245, 65535
    %v2247 = vshra.s32 %v2245, 16
    %v2248 = vcvt.s32.f32 %v2246
    %v2249 = vcvt.s32.f32 %v2247
    %2250 = vmin.xlane.f32.xlu0 %v2249
    %v2251 = vpop.xlane.xlu0 %2250
    %vm2252 = vcmp.eq.f32.partialorder %v2249, %v2251
    %v2253 = vsel %vm2252, %v2248, inf
    %2254 = vmin.xlane.f32.xlu0 %v2253
    %v2255 = vpop.xlane.xlu0 %2254
    %v2256 = vcvt.f32.s32 %v2255
    %v2257 = vcvt.f32.s32 %v2251
    %v2258 = vshll.u32 %v2257, 16
    %v2259 = vadd.s32 %v2258, %v2256
    %v2260 = vsel %vm1170, %v2018, 2147483647
    %v2261 = vand.u32 %v2260, 65535
    %v2262 = vshra.s32 %v2260, 16
    %v2263 = vcvt.s32.f32 %v2261
    %v2264 = vcvt.s32.f32 %v2262
    %2265 = vmin.xlane.f32.xlu0 %v2264
    %v2266 = vpop.xlane.xlu0 %2265
    %vm2267 = vcmp.eq.f32.partialorder %v2264, %v2266
    %v2268 = vsel %vm2267, %v2263, inf
    %2269 = vmin.xlane.f32.xlu0 %v2268
    %v2270 = vpop.xlane.xlu0 %2269
    %v2271 = vcvt.f32.s32 %v2270
    %v2272 = vcvt.f32.s32 %v2266
    %v2273 = vshll.u32 %v2272, 16
    %v2274 = vadd.s32 %v2273, %v2271
    %v2275 = vsel %vm1170, %v2019, 2147483647
    %v2276 = vand.u32 %v2275, 65535
    %v2277 = vshra.s32 %v2275, 16
    %v2278 = vcvt.s32.f32 %v2276
    %v2279 = vcvt.s32.f32 %v2277
    %2280 = vmin.xlane.f32.xlu0 %v2279
    %v2281 = vpop.xlane.xlu0 %2280
    %vm2282 = vcmp.eq.f32.partialorder %v2279, %v2281
    %v2283 = vsel %vm2282, %v2278, inf
    %2284 = vmin.xlane.f32.xlu0 %v2283
    %v2285 = vpop.xlane.xlu0 %2284
    %v2286 = vcvt.f32.s32 %v2285
    %v2287 = vcvt.f32.s32 %v2281
    %v2288 = vshll.u32 %v2287, 16
    %v2289 = vadd.s32 %v2288, %v2286
    %v2290 = vsel %vm1170, %v2020, 2147483647
    %v2291 = vand.u32 %v2290, 65535
    %v2292 = vshra.s32 %v2290, 16
    %v2293 = vcvt.s32.f32 %v2291
    %v2294 = vcvt.s32.f32 %v2292
    %2295 = vmin.xlane.f32.xlu0 %v2294
    %v2296 = vpop.xlane.xlu0 %2295
    %vm2297 = vcmp.eq.f32.partialorder %v2294, %v2296
    %v2298 = vsel %vm2297, %v2293, inf
    %2299 = vmin.xlane.f32.xlu0 %v2298
    %v2300 = vpop.xlane.xlu0 %2299
    %v2301 = vcvt.f32.s32 %v2300
    %v2302 = vcvt.f32.s32 %v2296
    %v2303 = vshll.u32 %v2302, 16
    %v2304 = vadd.s32 %v2303, %v2301
    %v2305 = vsel %vm1170, %v2021, 2147483647
    %v2306 = vand.u32 %v2305, 65535
    %v2307 = vshra.s32 %v2305, 16
    %v2308 = vcvt.s32.f32 %v2306
    %v2309 = vcvt.s32.f32 %v2307
    %2310 = vmin.xlane.f32.xlu0 %v2309
    %v2311 = vpop.xlane.xlu0 %2310
    %vm2312 = vcmp.eq.f32.partialorder %v2309, %v2311
    %v2313 = vsel %vm2312, %v2308, inf
    %2314 = vmin.xlane.f32.xlu0 %v2313
    %v2315 = vpop.xlane.xlu0 %2314
    %v2316 = vcvt.f32.s32 %v2315
    %v2317 = vcvt.f32.s32 %v2311
    %v2318 = vshll.u32 %v2317, 16
    %v2319 = vadd.s32 %v2318, %v2316
    %v2320 = vsel %vm1170, %v2022, 2147483647
    %v2321 = vand.u32 %v2320, 65535
    %v2322 = vshra.s32 %v2320, 16
    %v2323 = vcvt.s32.f32 %v2321
    %v2324 = vcvt.s32.f32 %v2322
    %2325 = vmin.xlane.f32.xlu0 %v2324
    %v2326 = vpop.xlane.xlu0 %2325
    %vm2327 = vcmp.eq.f32.partialorder %v2324, %v2326
    %v2328 = vsel %vm2327, %v2323, inf
    %2329 = vmin.xlane.f32.xlu0 %v2328
    %v2330 = vpop.xlane.xlu0 %2329
    %v2331 = vcvt.f32.s32 %v2330
    %v2332 = vcvt.f32.s32 %v2326
    %v2333 = vshll.u32 %v2332, 16
    %v2334 = vadd.s32 %v2333, %v2331
    %v2335 = vsel %vm1170, %v2023, 2147483647
    %v2336 = vand.u32 %v2335, 65535
    %v2337 = vshra.s32 %v2335, 16
    %v2338 = vcvt.s32.f32 %v2336
    %v2339 = vcvt.s32.f32 %v2337
    %2340 = vmin.xlane.f32.xlu0 %v2339
    %v2341 = vpop.xlane.xlu0 %2340
    %vm2342 = vcmp.eq.f32.partialorder %v2339, %v2341
    %v2343 = vsel %vm2342, %v2338, inf
    %2344 = vmin.xlane.f32.xlu0 %v2343
    %v2345 = vpop.xlane.xlu0 %2344
    %v2346 = vcvt.f32.s32 %v2345
    %v2347 = vcvt.f32.s32 %v2341
    %v2348 = vshll.u32 %v2347, 16
    %v2349 = vadd.s32 %v2348, %v2346
    %v2350 = vsel %vm1170, %v2024, 2147483647
    %v2351 = vand.u32 %v2350, 65535
    %v2352 = vshra.s32 %v2350, 16
    %v2353 = vcvt.s32.f32 %v2351
    %v2354 = vcvt.s32.f32 %v2352
    %2355 = vmin.xlane.f32.xlu0 %v2354
    %v2356 = vpop.xlane.xlu0 %2355
    %vm2357 = vcmp.eq.f32.partialorder %v2354, %v2356
    %v2358 = vsel %vm2357, %v2353, inf
    %2359 = vmin.xlane.f32.xlu0 %v2358
    %v2360 = vpop.xlane.xlu0 %2359
    %v2361 = vcvt.f32.s32 %v2360
    %v2362 = vcvt.f32.s32 %v2356
    %v2363 = vshll.u32 %v2362, 16
    %v2364 = vadd.s32 %v2363, %v2361
    %v2365 = vsel %vm1170, %v2025, 2147483647
    %v2366 = vand.u32 %v2365, 65535
    %v2367 = vshra.s32 %v2365, 16
    %v2368 = vcvt.s32.f32 %v2366
    %v2369 = vcvt.s32.f32 %v2367
    %2370 = vmin.xlane.f32.xlu0 %v2369
    %v2371 = vpop.xlane.xlu0 %2370
    %vm2372 = vcmp.eq.f32.partialorder %v2369, %v2371
    %v2373 = vsel %vm2372, %v2368, inf
    %2374 = vmin.xlane.f32.xlu0 %v2373
    %v2375 = vpop.xlane.xlu0 %2374
    %v2376 = vcvt.f32.s32 %v2375
    %v2377 = vcvt.f32.s32 %v2371
    %v2378 = vshll.u32 %v2377, 16
    %v2379 = vadd.s32 %v2378, %v2376
    %v2380 = vsel %vm1170, %v2026, 2147483647
    %v2381 = vand.u32 %v2380, 65535
    %v2382 = vshra.s32 %v2380, 16
    %v2383 = vcvt.s32.f32 %v2381
    %v2384 = vcvt.s32.f32 %v2382
    %2385 = vmin.xlane.f32.xlu0 %v2384
    %v2386 = vpop.xlane.xlu0 %2385
    %vm2387 = vcmp.eq.f32.partialorder %v2384, %v2386
    %v2388 = vsel %vm2387, %v2383, inf
    %2389 = vmin.xlane.f32.xlu0 %v2388
    %v2390 = vpop.xlane.xlu0 %2389
    %v2391 = vcvt.f32.s32 %v2390
    %v2392 = vcvt.f32.s32 %v2386
    %v2393 = vshll.u32 %v2392, 16
    %v2394 = vadd.s32 %v2393, %v2391
    %v2395 = vsel %vm1170, %v2027, 2147483647
    %v2396 = vand.u32 %v2395, 65535
    %v2397 = vshra.s32 %v2395, 16
    %v2398 = vcvt.s32.f32 %v2396
    %v2399 = vcvt.s32.f32 %v2397
    %2400 = vmin.xlane.f32.xlu0 %v2399
    %v2401 = vpop.xlane.xlu0 %2400
    %vm2402 = vcmp.eq.f32.partialorder %v2399, %v2401
    %v2403 = vsel %vm2402, %v2398, inf
    %2404 = vmin.xlane.f32.xlu0 %v2403
    %v2405 = vpop.xlane.xlu0 %2404
    %v2406 = vcvt.f32.s32 %v2405
    %v2407 = vcvt.f32.s32 %v2401
    %v2408 = vshll.u32 %v2407, 16
    %v2409 = vadd.s32 %v2408, %v2406
    %v2410 = vsel %vm1170, %v2028, 2147483647
    %v2411 = vand.u32 %v2410, 65535
    %v2412 = vshra.s32 %v2410, 16
    %v2413 = vcvt.s32.f32 %v2411
    %v2414 = vcvt.s32.f32 %v2412
    %2415 = vmin.xlane.f32.xlu0 %v2414
    %v2416 = vpop.xlane.xlu0 %2415
    %vm2417 = vcmp.eq.f32.partialorder %v2414, %v2416
    %v2418 = vsel %vm2417, %v2413, inf
    %2419 = vmin.xlane.f32.xlu0 %v2418
    %v2420 = vpop.xlane.xlu0 %2419
    %v2421 = vcvt.f32.s32 %v2420
    %v2422 = vcvt.f32.s32 %v2416
    %v2423 = vshll.u32 %v2422, 16
    %v2424 = vadd.s32 %v2423, %v2421
    %v2425 = vsel %vm1170, %v2029, 2147483647
    %v2426 = vand.u32 %v2425, 65535
    %v2427 = vshra.s32 %v2425, 16
    %v2428 = vcvt.s32.f32 %v2426
    %v2429 = vcvt.s32.f32 %v2427
    %2430 = vmin.xlane.f32.xlu0 %v2429
    %v2431 = vpop.xlane.xlu0 %2430
    %vm2432 = vcmp.eq.f32.partialorder %v2429, %v2431
    %v2433 = vsel %vm2432, %v2428, inf
    %2434 = vmin.xlane.f32.xlu0 %v2433
    %v2435 = vpop.xlane.xlu0 %2434
    %v2436 = vcvt.f32.s32 %v2435
    %v2437 = vcvt.f32.s32 %v2431
    %v2438 = vshll.u32 %v2437, 16
    %v2439 = vadd.s32 %v2438, %v2436
    %v2440 = vsel %vm1170, %v2030, 2147483647
    %v2441 = vand.u32 %v2440, 65535
    %v2442 = vshra.s32 %v2440, 16
    %v2443 = vcvt.s32.f32 %v2441
    %v2444 = vcvt.s32.f32 %v2442
    %2445 = vmin.xlane.f32.xlu0 %v2444
    %v2446 = vpop.xlane.xlu0 %2445
    %vm2447 = vcmp.eq.f32.partialorder %v2444, %v2446
    %v2448 = vsel %vm2447, %v2443, inf
    %2449 = vmin.xlane.f32.xlu0 %v2448
    %v2450 = vpop.xlane.xlu0 %2449
    %v2451 = vcvt.f32.s32 %v2450
    %v2452 = vcvt.f32.s32 %v2446
    %v2453 = vshll.u32 %v2452, 16
    %v2454 = vadd.s32 %v2453, %v2451
    %v2455 = vsel %vm1170, %v2031, 2147483647
    %v2456 = vand.u32 %v2455, 65535
    %v2457 = vshra.s32 %v2455, 16
    %v2458 = vcvt.s32.f32 %v2456
    %v2459 = vcvt.s32.f32 %v2457
    %2460 = vmin.xlane.f32.xlu0 %v2459
    %v2461 = vpop.xlane.xlu0 %2460
    %vm2462 = vcmp.eq.f32.partialorder %v2459, %v2461
    %v2463 = vsel %vm2462, %v2458, inf
    %2464 = vmin.xlane.f32.xlu0 %v2463
    %v2465 = vpop.xlane.xlu0 %2464
    %v2466 = vcvt.f32.s32 %v2465
    %v2467 = vcvt.f32.s32 %v2461
    %v2468 = vshll.u32 %v2467, 16
    %v2469 = vadd.s32 %v2468, %v2466
    %v2470 = vsel %vm1170, %v2032, 2147483647
    %v2471 = vand.u32 %v2470, 65535
    %v2472 = vshra.s32 %v2470, 16
    %v2473 = vcvt.s32.f32 %v2471
    %v2474 = vcvt.s32.f32 %v2472
    %2475 = vmin.xlane.f32.xlu0 %v2474
    %v2476 = vpop.xlane.xlu0 %2475
    %vm2477 = vcmp.eq.f32.partialorder %v2474, %v2476
    %v2478 = vsel %vm2477, %v2473, inf
    %2479 = vmin.xlane.f32.xlu0 %v2478
    %v2480 = vpop.xlane.xlu0 %2479
    %v2481 = vcvt.f32.s32 %v2480
    %v2482 = vcvt.f32.s32 %v2476
    %v2483 = vshll.u32 %v2482, 16
    %v2484 = vadd.s32 %v2483, %v2481
    %v2485 = vsel %vm1170, %v2033, 2147483647
    %v2486 = vand.u32 %v2485, 65535
    %v2487 = vshra.s32 %v2485, 16
    %v2488 = vcvt.s32.f32 %v2486
    %v2489 = vcvt.s32.f32 %v2487
    %2490 = vmin.xlane.f32.xlu0 %v2489
    %v2491 = vpop.xlane.xlu0 %2490
    %vm2492 = vcmp.eq.f32.partialorder %v2489, %v2491
    %v2493 = vsel %vm2492, %v2488, inf
    %2494 = vmin.xlane.f32.xlu0 %v2493
    %v2495 = vpop.xlane.xlu0 %2494
    %v2496 = vcvt.f32.s32 %v2495
    %v2497 = vcvt.f32.s32 %v2491
    %v2498 = vshll.u32 %v2497, 16
    %v2499 = vadd.s32 %v2498, %v2496
    %v2500 = vsel %vm1170, %v2034, 2147483647
    %v2501 = vand.u32 %v2500, 65535
    %v2502 = vshra.s32 %v2500, 16
    %v2503 = vcvt.s32.f32 %v2501
    %v2504 = vcvt.s32.f32 %v2502
    %2505 = vmin.xlane.f32.xlu0 %v2504
    %v2506 = vpop.xlane.xlu0 %2505
    %vm2507 = vcmp.eq.f32.partialorder %v2504, %v2506
    %v2508 = vsel %vm2507, %v2503, inf
    %2509 = vmin.xlane.f32.xlu0 %v2508
    %v2510 = vpop.xlane.xlu0 %2509
    %v2511 = vcvt.f32.s32 %v2510
    %v2512 = vcvt.f32.s32 %v2506
    %v2513 = vshll.u32 %v2512, 16
    %v2514 = vadd.s32 %v2513, %v2511
    %vm2515 = vcmp.eq.s32.totalorder %v1169, %v2049
    %vm2516 = vcmp.eq.s32.totalorder %v1169, %v2064
    %vm2517 = vcmp.eq.s32.totalorder %v1169, %v2079
    %vm2518 = vcmp.eq.s32.totalorder %v1169, %v2094
    %vm2519 = vcmp.eq.s32.totalorder %v1169, %v2109
    %vm2520 = vcmp.eq.s32.totalorder %v1169, %v2124
    %vm2521 = vcmp.eq.s32.totalorder %v1169, %v2139
    %vm2522 = vcmp.eq.s32.totalorder %v1169, %v2154
    %vm2523 = vcmp.eq.s32.totalorder %v1169, %v2169
    %vm2524 = vcmp.eq.s32.totalorder %v1169, %v2184
    %vm2525 = vcmp.eq.s32.totalorder %v1169, %v2199
    %vm2526 = vcmp.eq.s32.totalorder %v1169, %v2214
    %vm2527 = vcmp.eq.s32.totalorder %v1169, %v2229
    %vm2528 = vcmp.eq.s32.totalorder %v1169, %v2244
    %vm2529 = vcmp.eq.s32.totalorder %v1169, %v2259
    %vm2530 = vcmp.eq.s32.totalorder %v1169, %v2274
    %vm2531 = vcmp.eq.s32.totalorder %v1169, %v2289
    %vm2532 = vcmp.eq.s32.totalorder %v1169, %v2304
    %vm2533 = vcmp.eq.s32.totalorder %v1169, %v2319
    %vm2534 = vcmp.eq.s32.totalorder %v1169, %v2334
    %vm2535 = vcmp.eq.s32.totalorder %v1169, %v2349
    %vm2536 = vcmp.eq.s32.totalorder %v1169, %v2364
    %vm2537 = vcmp.eq.s32.totalorder %v1169, %v2379
    %vm2538 = vcmp.eq.s32.totalorder %v1169, %v2394
    %vm2539 = vcmp.eq.s32.totalorder %v1169, %v2409
    %vm2540 = vcmp.eq.s32.totalorder %v1169, %v2424
    %vm2541 = vcmp.eq.s32.totalorder %v1169, %v2439
    %vm2542 = vcmp.eq.s32.totalorder %v1169, %v2454
    %vm2543 = vcmp.eq.s32.totalorder %v1169, %v2469
    %vm2544 = vcmp.eq.s32.totalorder %v1169, %v2484
    %vm2545 = vcmp.eq.s32.totalorder %v1169, %v2499
    %vm2546 = vcmp.eq.s32.totalorder %v1169, %v2514
    %vm2547 = vmor %vm1811, %vm2515
    %vm2548 = vmor %vm1812, %vm2516
    %vm2549 = vmor %vm1813, %vm2517
    %vm2550 = vmor %vm1814, %vm2518
    %vm2551 = vmor %vm1815, %vm2519
    %vm2552 = vmor %vm1816, %vm2520
    %vm2553 = vmor %vm1817, %vm2521
    %vm2554 = vmor %vm1818, %vm2522
    %vm2555 = vmor %vm1819, %vm2523
    %vm2556 = vmor %vm1820, %vm2524
    %vm2557 = vmor %vm1821, %vm2525
    %vm2558 = vmor %vm1822, %vm2526
    %vm2559 = vmor %vm1823, %vm2527
    %vm2560 = vmor %vm1824, %vm2528
    %vm2561 = vmor %vm1825, %vm2529
    %vm2562 = vmor %vm1826, %vm2530
    %vm2563 = vmor %vm1827, %vm2531
    %vm2564 = vmor %vm1828, %vm2532
    %vm2565 = vmor %vm1829, %vm2533
    %vm2566 = vmor %vm1830, %vm2534
    %vm2567 = vmor %vm1831, %vm2535
    %vm2568 = vmor %vm1832, %vm2536
    %vm2569 = vmor %vm1833, %vm2537
    %vm2570 = vmor %vm1834, %vm2538
    %vm2571 = vmor %vm1835, %vm2539
    %vm2572 = vmor %vm1836, %vm2540
    %vm2573 = vmor %vm1837, %vm2541
    %vm2574 = vmor %vm1838, %vm2542
    %vm2575 = vmor %vm1839, %vm2543
    %vm2576 = vmor %vm1840, %vm2544
    %vm2577 = vmor %vm1841, %vm2545
    %vm2578 = vmor %vm1842, %vm2546
    %v2579 = vsel %vm2547, %v1136, -inf
    %v2580 = vsel %vm2548, %v1137, -inf
    %v2581 = vsel %vm2549, %v1138, -inf
    %v2582 = vsel %vm2550, %v1139, -inf
    %v2583 = vsel %vm2551, %v1140, -inf
    %v2584 = vsel %vm2552, %v1141, -inf
    %v2585 = vsel %vm2553, %v1142, -inf
    %v2586 = vsel %vm2554, %v1143, -inf
    %v2587 = vsel %vm2555, %v1144, -inf
    %v2588 = vsel %vm2556, %v1145, -inf
    %v2589 = vsel %vm2557, %v1146, -inf
    %v2590 = vsel %vm2558, %v1147, -inf
    %v2591 = vsel %vm2559, %v1148, -inf
    %v2592 = vsel %vm2560, %v1149, -inf
    %v2593 = vsel %vm2561, %v1150, -inf
    %v2594 = vsel %vm2562, %v1151, -inf
    %v2595 = vsel %vm2563, %v1152, -inf
    %v2596 = vsel %vm2564, %v1153, -inf
    %v2597 = vsel %vm2565, %v1154, -inf
    %v2598 = vsel %vm2566, %v1155, -inf
    %v2599 = vsel %vm2567, %v1156, -inf
    %v2600 = vsel %vm2568, %v1157, -inf
    %v2601 = vsel %vm2569, %v1158, -inf
    %v2602 = vsel %vm2570, %v1159, -inf
    %v2603 = vsel %vm2571, %v1160, -inf
    %v2604 = vsel %vm2572, %v1161, -inf
    %v2605 = vsel %vm2573, %v1162, -inf
    %v2606 = vsel %vm2574, %v1163, -inf
    %v2607 = vsel %vm2575, %v1164, -inf
    %v2608 = vsel %vm2576, %v1165, -inf
    %v2609 = vsel %vm2577, %v1166, -inf
    %v2610 = vsel %vm2578, %v1167, -inf
    %v2611 = vsel %vm1170, %v2579, -inf
    %2612 = vmax.xlane.f32.xlu0 %v2611
    %v2613 = vpop.xlane.xlu0 %2612
    %v2614 = vsel %vm1170, %v2580, -inf
    %2615 = vmax.xlane.f32.xlu0 %v2614
    %v2616 = vpop.xlane.xlu0 %2615
    %v2617 = vsel %vm1170, %v2581, -inf
    %2618 = vmax.xlane.f32.xlu0 %v2617
    %v2619 = vpop.xlane.xlu0 %2618
    %v2620 = vsel %vm1170, %v2582, -inf
    %2621 = vmax.xlane.f32.xlu0 %v2620
    %v2622 = vpop.xlane.xlu0 %2621
    %v2623 = vsel %vm1170, %v2583, -inf
    %2624 = vmax.xlane.f32.xlu0 %v2623
    %v2625 = vpop.xlane.xlu0 %2624
    %v2626 = vsel %vm1170, %v2584, -inf
    %2627 = vmax.xlane.f32.xlu0 %v2626
    %v2628 = vpop.xlane.xlu0 %2627
    %v2629 = vsel %vm1170, %v2585, -inf
    %2630 = vmax.xlane.f32.xlu0 %v2629
    %v2631 = vpop.xlane.xlu0 %2630
    %v2632 = vsel %vm1170, %v2586, -inf
    %2633 = vmax.xlane.f32.xlu0 %v2632
    %v2634 = vpop.xlane.xlu0 %2633
    %v2635 = vsel %vm1170, %v2587, -inf
    %2636 = vmax.xlane.f32.xlu0 %v2635
    %v2637 = vpop.xlane.xlu0 %2636
    %v2638 = vsel %vm1170, %v2588, -inf
    %2639 = vmax.xlane.f32.xlu0 %v2638
    %v2640 = vpop.xlane.xlu0 %2639
    %v2641 = vsel %vm1170, %v2589, -inf
    %2642 = vmax.xlane.f32.xlu0 %v2641
    %v2643 = vpop.xlane.xlu0 %2642
    %v2644 = vsel %vm1170, %v2590, -inf
    %2645 = vmax.xlane.f32.xlu0 %v2644
    %v2646 = vpop.xlane.xlu0 %2645
    %v2647 = vsel %vm1170, %v2591, -inf
    %2648 = vmax.xlane.f32.xlu0 %v2647
    %v2649 = vpop.xlane.xlu0 %2648
    %v2650 = vsel %vm1170, %v2592, -inf
    %2651 = vmax.xlane.f32.xlu0 %v2650
    %v2652 = vpop.xlane.xlu0 %2651
    %v2653 = vsel %vm1170, %v2593, -inf
    %2654 = vmax.xlane.f32.xlu0 %v2653
    %v2655 = vpop.xlane.xlu0 %2654
    %v2656 = vsel %vm1170, %v2594, -inf
    %2657 = vmax.xlane.f32.xlu0 %v2656
    %v2658 = vpop.xlane.xlu0 %2657
    %v2659 = vsel %vm1170, %v2595, -inf
    %2660 = vmax.xlane.f32.xlu0 %v2659
    %v2661 = vpop.xlane.xlu0 %2660
    %v2662 = vsel %vm1170, %v2596, -inf
    %2663 = vmax.xlane.f32.xlu0 %v2662
    %v2664 = vpop.xlane.xlu0 %2663
    %v2665 = vsel %vm1170, %v2597, -inf
    %2666 = vmax.xlane.f32.xlu0 %v2665
    %v2667 = vpop.xlane.xlu0 %2666
    %v2668 = vsel %vm1170, %v2598, -inf
    %2669 = vmax.xlane.f32.xlu0 %v2668
    %v2670 = vpop.xlane.xlu0 %2669
    %v2671 = vsel %vm1170, %v2599, -inf
    %2672 = vmax.xlane.f32.xlu0 %v2671
    %v2673 = vpop.xlane.xlu0 %2672
    %v2674 = vsel %vm1170, %v2600, -inf
    %2675 = vmax.xlane.f32.xlu0 %v2674
    %v2676 = vpop.xlane.xlu0 %2675
    %v2677 = vsel %vm1170, %v2601, -inf
    %2678 = vmax.xlane.f32.xlu0 %v2677
    %v2679 = vpop.xlane.xlu0 %2678
    %v2680 = vsel %vm1170, %v2602, -inf
    %2681 = vmax.xlane.f32.xlu0 %v2680
    %v2682 = vpop.xlane.xlu0 %2681
    %v2683 = vsel %vm1170, %v2603, -inf
    %2684 = vmax.xlane.f32.xlu0 %v2683
    %v2685 = vpop.xlane.xlu0 %2684
    %v2686 = vsel %vm1170, %v2604, -inf
    %2687 = vmax.xlane.f32.xlu0 %v2686
    %v2688 = vpop.xlane.xlu0 %2687
    %v2689 = vsel %vm1170, %v2605, -inf
    %2690 = vmax.xlane.f32.xlu0 %v2689
    %v2691 = vpop.xlane.xlu0 %2690
    %v2692 = vsel %vm1170, %v2606, -inf
    %2693 = vmax.xlane.f32.xlu0 %v2692
    %v2694 = vpop.xlane.xlu0 %2693
    %v2695 = vsel %vm1170, %v2607, -inf
    %2696 = vmax.xlane.f32.xlu0 %v2695
    %v2697 = vpop.xlane.xlu0 %2696
    %v2698 = vsel %vm1170, %v2608, -inf
    %2699 = vmax.xlane.f32.xlu0 %v2698
    %v2700 = vpop.xlane.xlu0 %2699
    %v2701 = vsel %vm1170, %v2609, -inf
    %2702 = vmax.xlane.f32.xlu0 %v2701
    %v2703 = vpop.xlane.xlu0 %2702
    %v2704 = vsel %vm1170, %v2610, -inf
    %2705 = vmax.xlane.f32.xlu0 %v2704
    %v2706 = vpop.xlane.xlu0 %2705
    %v2707 = vsub.f32 %v1136, %v2613
    %v2708 = vsub.f32 %v1137, %v2616
    %v2709 = vsub.f32 %v1138, %v2619
    %v2710 = vsub.f32 %v1139, %v2622
    %v2711 = vsub.f32 %v1140, %v2625
    %v2712 = vsub.f32 %v1141, %v2628
    %v2713 = vsub.f32 %v1142, %v2631
    %v2714 = vsub.f32 %v1143, %v2634
    %v2715 = vsub.f32 %v1144, %v2637
    %v2716 = vsub.f32 %v1145, %v2640
    %v2717 = vsub.f32 %v1146, %v2643
    %v2718 = vsub.f32 %v1147, %v2646
    %v2719 = vsub.f32 %v1148, %v2649
    %v2720 = vsub.f32 %v1149, %v2652
    %v2721 = vsub.f32 %v1150, %v2655
    %v2722 = vsub.f32 %v1151, %v2658
    %v2723 = vsub.f32 %v1152, %v2661
    %v2724 = vsub.f32 %v1153, %v2664
    %v2725 = vsub.f32 %v1154, %v2667
    %v2726 = vsub.f32 %v1155, %v2670
    %v2727 = vsub.f32 %v1156, %v2673
    %v2728 = vsub.f32 %v1157, %v2676
    %v2729 = vsub.f32 %v1158, %v2679
    %v2730 = vsub.f32 %v1159, %v2682
    %v2731 = vsub.f32 %v1160, %v2685
    %v2732 = vsub.f32 %v1161, %v2688
    %v2733 = vsub.f32 %v1162, %v2691
    %v2734 = vsub.f32 %v1163, %v2694
    %v2735 = vsub.f32 %v1164, %v2697
    %v2736 = vsub.f32 %v1165, %v2700
    %v2737 = vsub.f32 %v1166, %v2703
    %v2738 = vsub.f32 %v1167, %v2706
    %v2739 = vmul.f32 %v2707, 1.442695
    %v2740 = vpow.pop %v2739
    %v2741 = vmul.f32 %v2708, 1.442695
    %v2742 = vpow.pop %v2741
    %v2743 = vmul.f32 %v2709, 1.442695
    %v2744 = vpow.pop %v2743
    %v2745 = vmul.f32 %v2710, 1.442695
    %v2746 = vpow.pop %v2745
    %v2747 = vmul.f32 %v2711, 1.442695
    %v2748 = vpow.pop %v2747
    %v2749 = vmul.f32 %v2712, 1.442695
    %v2750 = vpow.pop %v2749
    %v2751 = vmul.f32 %v2713, 1.442695
    %v2752 = vpow.pop %v2751
    %v2753 = vmul.f32 %v2714, 1.442695
    %v2754 = vpow.pop %v2753
    %v2755 = vmul.f32 %v2715, 1.442695
    %v2756 = vpow.pop %v2755
    %v2757 = vmul.f32 %v2716, 1.442695
    %v2758 = vpow.pop %v2757
    %v2759 = vmul.f32 %v2717, 1.442695
    %v2760 = vpow.pop %v2759
    %v2761 = vmul.f32 %v2718, 1.442695
    %v2762 = vpow.pop %v2761
    %v2763 = vmul.f32 %v2719, 1.442695
    %v2764 = vpow.pop %v2763
    %v2765 = vmul.f32 %v2720, 1.442695
    %v2766 = vpow.pop %v2765
    %v2767 = vmul.f32 %v2721, 1.442695
    %v2768 = vpow.pop %v2767
    %v2769 = vmul.f32 %v2722, 1.442695
    %v2770 = vpow.pop %v2769
    %v2771 = vmul.f32 %v2723, 1.442695
    %v2772 = vpow.pop %v2771
    %v2773 = vmul.f32 %v2724, 1.442695
    %v2774 = vpow.pop %v2773
    %v2775 = vmul.f32 %v2725, 1.442695
    %v2776 = vpow.pop %v2775
    %v2777 = vmul.f32 %v2726, 1.442695
    %v2778 = vpow.pop %v2777
    %v2779 = vmul.f32 %v2727, 1.442695
    %v2780 = vpow.pop %v2779
    %v2781 = vmul.f32 %v2728, 1.442695
    %v2782 = vpow.pop %v2781
    %v2783 = vmul.f32 %v2729, 1.442695
    %v2784 = vpow.pop %v2783
    %v2785 = vmul.f32 %v2730, 1.442695
    %v2786 = vpow.pop %v2785
    %v2787 = vmul.f32 %v2731, 1.442695
    %v2788 = vpow.pop %v2787
    %v2789 = vmul.f32 %v2732, 1.442695
    %v2790 = vpow.pop %v2789
    %v2791 = vmul.f32 %v2733, 1.442695
    %v2792 = vpow.pop %v2791
    %v2793 = vmul.f32 %v2734, 1.442695
    %v2794 = vpow.pop %v2793
    %v2795 = vmul.f32 %v2735, 1.442695
    %v2796 = vpow.pop %v2795
    %v2797 = vmul.f32 %v2736, 1.442695
    %v2798 = vpow.pop %v2797
    %v2799 = vmul.f32 %v2737, 1.442695
    %v2800 = vpow.pop %v2799
    %v2801 = vmul.f32 %v2738, 1.442695
    %v2802 = vpow.pop %v2801
    %v2803 = vsel %vm2547, %v2740, 0.0
    %v2804 = vsel %vm2548, %v2742, 0.0
    %v2805 = vsel %vm2549, %v2744, 0.0
    %v2806 = vsel %vm2550, %v2746, 0.0
    %v2807 = vsel %vm2551, %v2748, 0.0
    %v2808 = vsel %vm2552, %v2750, 0.0
    %v2809 = vsel %vm2553, %v2752, 0.0
    %v2810 = vsel %vm2554, %v2754, 0.0
    %v2811 = vsel %vm2555, %v2756, 0.0
    %v2812 = vsel %vm2556, %v2758, 0.0
    %v2813 = vsel %vm2557, %v2760, 0.0
    %v2814 = vsel %vm2558, %v2762, 0.0
    %v2815 = vsel %vm2559, %v2764, 0.0
    %v2816 = vsel %vm2560, %v2766, 0.0
    %v2817 = vsel %vm2561, %v2768, 0.0
    %v2818 = vsel %vm2562, %v2770, 0.0
    %v2819 = vsel %vm2563, %v2772, 0.0
    %v2820 = vsel %vm2564, %v2774, 0.0
    %v2821 = vsel %vm2565, %v2776, 0.0
    %v2822 = vsel %vm2566, %v2778, 0.0
    %v2823 = vsel %vm2567, %v2780, 0.0
    %v2824 = vsel %vm2568, %v2782, 0.0
    %v2825 = vsel %vm2569, %v2784, 0.0
    %v2826 = vsel %vm2570, %v2786, 0.0
    %v2827 = vsel %vm2571, %v2788, 0.0
    %v2828 = vsel %vm2572, %v2790, 0.0
    %v2829 = vsel %vm2573, %v2792, 0.0
    %v2830 = vsel %vm2574, %v2794, 0.0
    %v2831 = vsel %vm2575, %v2796, 0.0
    %v2832 = vsel %vm2576, %v2798, 0.0
    %v2833 = vsel %vm2577, %v2800, 0.0
    %v2834 = vsel %vm2578, %v2802, 0.0
    %v2835 = vsel %vm1170, %v2803, 0.0
    %2836 = vadd.xlane.f32.xlu0 %v2835
    %v2837 = vpop.xlane.xlu0 %2836
    %v2838 = vsel %vm1170, %v2804, 0.0
    %2839 = vadd.xlane.f32.xlu0 %v2838
    %v2840 = vpop.xlane.xlu0 %2839
    %v2841 = vsel %vm1170, %v2805, 0.0
    %2842 = vadd.xlane.f32.xlu0 %v2841
    %v2843 = vpop.xlane.xlu0 %2842
    %v2844 = vsel %vm1170, %v2806, 0.0
    %2845 = vadd.xlane.f32.xlu0 %v2844
    %v2846 = vpop.xlane.xlu0 %2845
    %v2847 = vsel %vm1170, %v2807, 0.0
    %2848 = vadd.xlane.f32.xlu0 %v2847
    %v2849 = vpop.xlane.xlu0 %2848
    %v2850 = vsel %vm1170, %v2808, 0.0
    %2851 = vadd.xlane.f32.xlu0 %v2850
    %v2852 = vpop.xlane.xlu0 %2851
    %v2853 = vsel %vm1170, %v2809, 0.0
    %2854 = vadd.xlane.f32.xlu0 %v2853
    %v2855 = vpop.xlane.xlu0 %2854
    %v2856 = vsel %vm1170, %v2810, 0.0
    %2857 = vadd.xlane.f32.xlu0 %v2856
    %v2858 = vpop.xlane.xlu0 %2857
    %v2859 = vsel %vm1170, %v2811, 0.0
    %2860 = vadd.xlane.f32.xlu0 %v2859
    %v2861 = vpop.xlane.xlu0 %2860
    %v2862 = vsel %vm1170, %v2812, 0.0
    %2863 = vadd.xlane.f32.xlu0 %v2862
    %v2864 = vpop.xlane.xlu0 %2863
    %v2865 = vsel %vm1170, %v2813, 0.0
    %2866 = vadd.xlane.f32.xlu0 %v2865
    %v2867 = vpop.xlane.xlu0 %2866
    %v2868 = vsel %vm1170, %v2814, 0.0
    %2869 = vadd.xlane.f32.xlu0 %v2868
    %v2870 = vpop.xlane.xlu0 %2869
    %v2871 = vsel %vm1170, %v2815, 0.0
    %2872 = vadd.xlane.f32.xlu0 %v2871
    %v2873 = vpop.xlane.xlu0 %2872
    %v2874 = vsel %vm1170, %v2816, 0.0
    %2875 = vadd.xlane.f32.xlu0 %v2874
    %v2876 = vpop.xlane.xlu0 %2875
    %v2877 = vsel %vm1170, %v2817, 0.0
    %2878 = vadd.xlane.f32.xlu0 %v2877
    %v2879 = vpop.xlane.xlu0 %2878
    %v2880 = vsel %vm1170, %v2818, 0.0
    %2881 = vadd.xlane.f32.xlu0 %v2880
    %v2882 = vpop.xlane.xlu0 %2881
    %v2883 = vsel %vm1170, %v2819, 0.0
    %2884 = vadd.xlane.f32.xlu0 %v2883
    %v2885 = vpop.xlane.xlu0 %2884
    %v2886 = vsel %vm1170, %v2820, 0.0
    %2887 = vadd.xlane.f32.xlu0 %v2886
    %v2888 = vpop.xlane.xlu0 %2887
    %v2889 = vsel %vm1170, %v2821, 0.0
    %2890 = vadd.xlane.f32.xlu0 %v2889
    %v2891 = vpop.xlane.xlu0 %2890
    %v2892 = vsel %vm1170, %v2822, 0.0
    %2893 = vadd.xlane.f32.xlu0 %v2892
    %v2894 = vpop.xlane.xlu0 %2893
    %v2895 = vsel %vm1170, %v2823, 0.0
    %2896 = vadd.xlane.f32.xlu0 %v2895
    %v2897 = vpop.xlane.xlu0 %2896
    %v2898 = vsel %vm1170, %v2824, 0.0
    %2899 = vadd.xlane.f32.xlu0 %v2898
    %v2900 = vpop.xlane.xlu0 %2899
    %v2901 = vsel %vm1170, %v2825, 0.0
    %2902 = vadd.xlane.f32.xlu0 %v2901
    %v2903 = vpop.xlane.xlu0 %2902
    %v2904 = vsel %vm1170, %v2826, 0.0
    %2905 = vadd.xlane.f32.xlu0 %v2904
    %v2906 = vpop.xlane.xlu0 %2905
    %v2907 = vsel %vm1170, %v2827, 0.0
    %2908 = vadd.xlane.f32.xlu0 %v2907
    %v2909 = vpop.xlane.xlu0 %2908
    %v2910 = vsel %vm1170, %v2828, 0.0
    %2911 = vadd.xlane.f32.xlu0 %v2910
    %v2912 = vpop.xlane.xlu0 %2911
    %v2913 = vsel %vm1170, %v2829, 0.0
    %2914 = vadd.xlane.f32.xlu0 %v2913
    %v2915 = vpop.xlane.xlu0 %2914
    %v2916 = vsel %vm1170, %v2830, 0.0
    %2917 = vadd.xlane.f32.xlu0 %v2916
    %v2918 = vpop.xlane.xlu0 %2917
    %v2919 = vsel %vm1170, %v2831, 0.0
    %2920 = vadd.xlane.f32.xlu0 %v2919
    %v2921 = vpop.xlane.xlu0 %2920
    %v2922 = vsel %vm1170, %v2832, 0.0
    %2923 = vadd.xlane.f32.xlu0 %v2922
    %v2924 = vpop.xlane.xlu0 %2923
    %v2925 = vsel %vm1170, %v2833, 0.0
    %2926 = vadd.xlane.f32.xlu0 %v2925
    %v2927 = vpop.xlane.xlu0 %2926
    %v2928 = vsel %vm1170, %v2834, 0.0
    %2929 = vadd.xlane.f32.xlu0 %v2928
    %v2930 = vpop.xlane.xlu0 %2929
    %v2931 = vrcp.pop %v2837
    %v2932 = vrcp.pop %v2840
    %v2933 = vrcp.pop %v2843
    %v2934 = vrcp.pop %v2846
    %v2935 = vrcp.pop %v2849
    %v2936 = vrcp.pop %v2852
    %v2937 = vrcp.pop %v2855
    %v2938 = vrcp.pop %v2858
    %v2939 = vrcp.pop %v2861
    %v2940 = vrcp.pop %v2864
    %v2941 = vrcp.pop %v2867
    %v2942 = vrcp.pop %v2870
    %v2943 = vrcp.pop %v2873
    %v2944 = vrcp.pop %v2876
    %v2945 = vrcp.pop %v2879
    %v2946 = vrcp.pop %v2882
    %v2947 = vrcp.pop %v2885
    %v2948 = vrcp.pop %v2888
    %v2949 = vrcp.pop %v2891
    %v2950 = vrcp.pop %v2894
    %v2951 = vrcp.pop %v2897
    %v2952 = vrcp.pop %v2900
    %v2953 = vrcp.pop %v2903
    %v2954 = vrcp.pop %v2906
    %v2955 = vrcp.pop %v2909
    %v2956 = vrcp.pop %v2912
    %v2957 = vrcp.pop %v2915
    %v2958 = vrcp.pop %v2918
    %v2959 = vrcp.pop %v2921
    %v2960 = vrcp.pop %v2924
    %v2961 = vrcp.pop %v2927
    %v2962 = vrcp.pop %v2930
    %v2963 = vmul.f32 %v2837, %v2931
    %v2964 = vmul.f32 %v2840, %v2932
    %v2965 = vmul.f32 %v2843, %v2933
    %v2966 = vmul.f32 %v2846, %v2934
    %v2967 = vmul.f32 %v2849, %v2935
    %v2968 = vmul.f32 %v2852, %v2936
    %v2969 = vmul.f32 %v2855, %v2937
    %v2970 = vmul.f32 %v2858, %v2938
    %v2971 = vmul.f32 %v2861, %v2939
    %v2972 = vmul.f32 %v2864, %v2940
    %v2973 = vmul.f32 %v2867, %v2941
    %v2974 = vmul.f32 %v2870, %v2942
    %v2975 = vmul.f32 %v2873, %v2943
    %v2976 = vmul.f32 %v2876, %v2944
    %v2977 = vmul.f32 %v2879, %v2945
    %v2978 = vmul.f32 %v2882, %v2946
    %v2979 = vmul.f32 %v2885, %v2947
    %v2980 = vmul.f32 %v2888, %v2948
    %v2981 = vmul.f32 %v2891, %v2949
    %v2982 = vmul.f32 %v2894, %v2950
    %v2983 = vmul.f32 %v2897, %v2951
    %v2984 = vmul.f32 %v2900, %v2952
    %v2985 = vmul.f32 %v2903, %v2953
    %v2986 = vmul.f32 %v2906, %v2954
    %v2987 = vmul.f32 %v2909, %v2955
    %v2988 = vmul.f32 %v2912, %v2956
    %v2989 = vmul.f32 %v2915, %v2957
    %v2990 = vmul.f32 %v2918, %v2958
    %v2991 = vmul.f32 %v2921, %v2959
    %v2992 = vmul.f32 %v2924, %v2960
    %v2993 = vmul.f32 %v2927, %v2961
    %v2994 = vmul.f32 %v2930, %v2962
    %v2995 = vsub.f32 2.0, %v2963
    %v2996 = vsub.f32 2.0, %v2964
    %v2997 = vsub.f32 2.0, %v2965
    %v2998 = vsub.f32 2.0, %v2966
    %v2999 = vsub.f32 2.0, %v2967
    %v3000 = vsub.f32 2.0, %v2968
    %v3001 = vsub.f32 2.0, %v2969
    %v3002 = vsub.f32 2.0, %v2970
    %v3003 = vsub.f32 2.0, %v2971
    %v3004 = vsub.f32 2.0, %v2972
    %v3005 = vsub.f32 2.0, %v2973
    %v3006 = vsub.f32 2.0, %v2974
    %v3007 = vsub.f32 2.0, %v2975
    %v3008 = vsub.f32 2.0, %v2976
    %v3009 = vsub.f32 2.0, %v2977
    %v3010 = vsub.f32 2.0, %v2978
    %v3011 = vsub.f32 2.0, %v2979
    %v3012 = vsub.f32 2.0, %v2980
    %v3013 = vsub.f32 2.0, %v2981
    %v3014 = vsub.f32 2.0, %v2982
    %v3015 = vsub.f32 2.0, %v2983
    %v3016 = vsub.f32 2.0, %v2984
    %v3017 = vsub.f32 2.0, %v2985
    %v3018 = vsub.f32 2.0, %v2986
    %v3019 = vsub.f32 2.0, %v2987
    %v3020 = vsub.f32 2.0, %v2988
    %v3021 = vsub.f32 2.0, %v2989
    %v3022 = vsub.f32 2.0, %v2990
    %v3023 = vsub.f32 2.0, %v2991
    %v3024 = vsub.f32 2.0, %v2992
    %v3025 = vsub.f32 2.0, %v2993
    %v3026 = vsub.f32 2.0, %v2994
    %v3027 = vmul.f32 %v2931, %v2995
    %v3028 = vmul.f32 %v2932, %v2996
    %v3029 = vmul.f32 %v2933, %v2997
    %v3030 = vmul.f32 %v2934, %v2998
    %v3031 = vmul.f32 %v2935, %v2999
    %v3032 = vmul.f32 %v2936, %v3000
    %v3033 = vmul.f32 %v2937, %v3001
    %v3034 = vmul.f32 %v2938, %v3002
    %v3035 = vmul.f32 %v2939, %v3003
    %v3036 = vmul.f32 %v2940, %v3004
    %v3037 = vmul.f32 %v2941, %v3005
    %v3038 = vmul.f32 %v2942, %v3006
    %v3039 = vmul.f32 %v2943, %v3007
    %v3040 = vmul.f32 %v2944, %v3008
    %v3041 = vmul.f32 %v2945, %v3009
    %v3042 = vmul.f32 %v2946, %v3010
    %v3043 = vmul.f32 %v2947, %v3011
    %v3044 = vmul.f32 %v2948, %v3012
    %v3045 = vmul.f32 %v2949, %v3013
    %v3046 = vmul.f32 %v2950, %v3014
    %v3047 = vmul.f32 %v2951, %v3015
    %v3048 = vmul.f32 %v2952, %v3016
    %v3049 = vmul.f32 %v2953, %v3017
    %v3050 = vmul.f32 %v2954, %v3018
    %v3051 = vmul.f32 %v2955, %v3019
    %v3052 = vmul.f32 %v2956, %v3020
    %v3053 = vmul.f32 %v2957, %v3021
    %v3054 = vmul.f32 %v2958, %v3022
    %v3055 = vmul.f32 %v2959, %v3023
    %v3056 = vmul.f32 %v2960, %v3024
    %v3057 = vmul.f32 %v2961, %v3025
    %v3058 = vmul.f32 %v2962, %v3026
    %v3059 = vmul.f32 %v2803, %v3027
    %v3060 = vmul.f32 %v2804, %v3028
    %v3061 = vmul.f32 %v2805, %v3029
    %v3062 = vmul.f32 %v2806, %v3030
    %v3063 = vmul.f32 %v2807, %v3031
    %v3064 = vmul.f32 %v2808, %v3032
    %v3065 = vmul.f32 %v2809, %v3033
    %v3066 = vmul.f32 %v2810, %v3034
    %v3067 = vmul.f32 %v2811, %v3035
    %v3068 = vmul.f32 %v2812, %v3036
    %v3069 = vmul.f32 %v2813, %v3037
    %v3070 = vmul.f32 %v2814, %v3038
    %v3071 = vmul.f32 %v2815, %v3039
    %v3072 = vmul.f32 %v2816, %v3040
    %v3073 = vmul.f32 %v2817, %v3041
    %v3074 = vmul.f32 %v2818, %v3042
    %v3075 = vmul.f32 %v2819, %v3043
    %v3076 = vmul.f32 %v2820, %v3044
    %v3077 = vmul.f32 %v2821, %v3045
    %v3078 = vmul.f32 %v2822, %v3046
    %v3079 = vmul.f32 %v2823, %v3047
    %v3080 = vmul.f32 %v2824, %v3048
    %v3081 = vmul.f32 %v2825, %v3049
    %v3082 = vmul.f32 %v2826, %v3050
    %v3083 = vmul.f32 %v2827, %v3051
    %v3084 = vmul.f32 %v2828, %v3052
    %v3085 = vmul.f32 %v2829, %v3053
    %v3086 = vmul.f32 %v2830, %v3054
    %v3087 = vmul.f32 %v2831, %v3055
    %v3088 = vmul.f32 %v2832, %v3056
    %v3089 = vmul.f32 %v2833, %v3057
    %v3090 = vmul.f32 %v2834, %v3058
    %3091 = vst [vmem:[#allocation7] sm:$0xff] 0.0
    %3092 = vst [vmem:[#allocation7 + $0x8] sm:$0xff] 0.0
    %3093 = vst [vmem:[#allocation7 + $0x10] sm:$0xff] 0.0
    %3094 = vst [vmem:[#allocation7 + $0x18] sm:$0xff] 0.0
    %3095 = vst [vmem:[#allocation7 + $0x20] sm:$0xff] 0.0
    %3096 = vst [vmem:[#allocation7 + $0x28] sm:$0xff] 0.0
    %3097 = vst [vmem:[#allocation7 + $0x30] sm:$0xff] 0.0
    %3098 = vst [vmem:[#allocation7 + $0x38] sm:$0xff] 0.0
    %3099 = vst [vmem:[#allocation7 + $0x40] sm:$0xff] 0.0
    %3100 = vst [vmem:[#allocation7 + $0x48] sm:$0xff] 0.0
    %3101 = vst [vmem:[#allocation7 + $0x50] sm:$0xff] 0.0
    %3102 = vst [vmem:[#allocation7 + $0x58] sm:$0xff] 0.0
    %3103 = vst [vmem:[#allocation7 + $0x60] sm:$0xff] 0.0
    %3104 = vst [vmem:[#allocation7 + $0x68] sm:$0xff] 0.0
    %3105 = vst [vmem:[#allocation7 + $0x70] sm:$0xff] 0.0
    %3106 = vst [vmem:[#allocation7 + $0x78] sm:$0xff] 0.0
    %3107 = vst [vmem:[#allocation7 + $0x80] sm:$0xff] 0.0
    %3108 = vst [vmem:[#allocation7 + $0x88] sm:$0xff] 0.0
    %3109 = vst [vmem:[#allocation7 + $0x90] sm:$0xff] 0.0
    %3110 = vst [vmem:[#allocation7 + $0x98] sm:$0xff] 0.0
    %3111 = vst [vmem:[#allocation7 + $0xa0] sm:$0xff] 0.0
    %3112 = vst [vmem:[#allocation7 + $0xa8] sm:$0xff] 0.0
    %3113 = vst [vmem:[#allocation7 + $0xb0] sm:$0xff] 0.0
    %3114 = vst [vmem:[#allocation7 + $0xb8] sm:$0xff] 0.0
    %3115 = vst [vmem:[#allocation7 + $0xc0] sm:$0xff] 0.0
    %3116 = vst [vmem:[#allocation7 + $0xc8] sm:$0xff] 0.0
    %3117 = vst [vmem:[#allocation7 + $0xd0] sm:$0xff] 0.0
    %3118 = vst [vmem:[#allocation7 + $0xd8] sm:$0xff] 0.0
    %3119 = vst [vmem:[#allocation7 + $0xe0] sm:$0xff] 0.0
    %3120 = vst [vmem:[#allocation7 + $0xe8] sm:$0xff] 0.0
    %3121 = vst [vmem:[#allocation7 + $0xf0] sm:$0xff] 0.0
    %3122 = vst [vmem:[#allocation7 + $0xf8] sm:$0xff] 0.0
    loop: start=0, step=1, limit=8
    $region50: #{tpu_custom_call.1} parent=1 // loop_pre_header
      _
    $region51: #{tpu_custom_call.1} parent=1 // loop_header
      %s3124 = sphi 0, %s3128
      %p3125 = scmp.ge.s32.totalorder %s3124, 8
    $region52: #{tpu_custom_call.1} parent=1 // loop_header_branch
      %3127 = sbr.rel (%p3125) target = $region56
    $region53: #{tpu_custom_call.1} parent=1 // loop_body
      %v3129 = vld [vmem:[#allocation7] sm:$0xff]
      %v3130 = vld [vmem:[#allocation7 + $0x8] sm:$0xff]
      %v3131 = vld [vmem:[#allocation7 + $0x10] sm:$0xff]
      %v3132 = vld [vmem:[#allocation7 + $0x18] sm:$0xff]
      %v3133 = vld [vmem:[#allocation7 + $0x20] sm:$0xff]
      %v3134 = vld [vmem:[#allocation7 + $0x28] sm:$0xff]
      %v3135 = vld [vmem:[#allocation7 + $0x30] sm:$0xff]
      %v3136 = vld [vmem:[#allocation7 + $0x38] sm:$0xff]
      %v3137 = vld [vmem:[#allocation7 + $0x40] sm:$0xff]
      %v3138 = vld [vmem:[#allocation7 + $0x48] sm:$0xff]
      %v3139 = vld [vmem:[#allocation7 + $0x50] sm:$0xff]
      %v3140 = vld [vmem:[#allocation7 + $0x58] sm:$0xff]
      %v3141 = vld [vmem:[#allocation7 + $0x60] sm:$0xff]
      %v3142 = vld [vmem:[#allocation7 + $0x68] sm:$0xff]
      %v3143 = vld [vmem:[#allocation7 + $0x70] sm:$0xff]
      %v3144 = vld [vmem:[#allocation7 + $0x78] sm:$0xff]
      %v3145 = vld [vmem:[#allocation7 + $0x80] sm:$0xff]
      %v3146 = vld [vmem:[#allocation7 + $0x88] sm:$0xff]
      %v3147 = vld [vmem:[#allocation7 + $0x90] sm:$0xff]
      %v3148 = vld [vmem:[#allocation7 + $0x98] sm:$0xff]
      %v3149 = vld [vmem:[#allocation7 + $0xa0] sm:$0xff]
      %v3150 = vld [vmem:[#allocation7 + $0xa8] sm:$0xff]
      %v3151 = vld [vmem:[#allocation7 + $0xb0] sm:$0xff]
      %v3152 = vld [vmem:[#allocation7 + $0xb8] sm:$0xff]
      %v3153 = vld [vmem:[#allocation7 + $0xc0] sm:$0xff]
      %v3154 = vld [vmem:[#allocation7 + $0xc8] sm:$0xff]
      %v3155 = vld [vmem:[#allocation7 + $0xd0] sm:$0xff]
      %v3156 = vld [vmem:[#allocation7 + $0xd8] sm:$0xff]
      %v3157 = vld [vmem:[#allocation7 + $0xe0] sm:$0xff]
      %v3158 = vld [vmem:[#allocation7 + $0xe8] sm:$0xff]
      %v3159 = vld [vmem:[#allocation7 + $0xf0] sm:$0xff]
      %v3160 = vld [vmem:[#allocation7 + $0xf8] sm:$0xff]
      %v3161 = vstv %s3124
      %vm3162 = vcmp.eq.s32.totalorder %v1169, %v3161
      %v3163 = vsel %vm3162, %v3059, 0.0
      %v3164 = vsel %vm3162, %v3060, 0.0
      %v3165 = vsel %vm3162, %v3061, 0.0
      %v3166 = vsel %vm3162, %v3062, 0.0
      %v3167 = vsel %vm3162, %v3063, 0.0
      %v3168 = vsel %vm3162, %v3064, 0.0
      %v3169 = vsel %vm3162, %v3065, 0.0
      %v3170 = vsel %vm3162, %v3066, 0.0
      %v3171 = vsel %vm3162, %v3067, 0.0
      %v3172 = vsel %vm3162, %v3068, 0.0
      %v3173 = vsel %vm3162, %v3069, 0.0
      %v3174 = vsel %vm3162, %v3070, 0.0
      %v3175 = vsel %vm3162, %v3071, 0.0
      %v3176 = vsel %vm3162, %v3072, 0.0
      %v3177 = vsel %vm3162, %v3073, 0.0
      %v3178 = vsel %vm3162, %v3074, 0.0
      %v3179 = vsel %vm3162, %v3075, 0.0
      %v3180 = vsel %vm3162, %v3076, 0.0
      %v3181 = vsel %vm3162, %v3077, 0.0
      %v3182 = vsel %vm3162, %v3078, 0.0
      %v3183 = vsel %vm3162, %v3079, 0.0
      %v3184 = vsel %vm3162, %v3080, 0.0
      %v3185 = vsel %vm3162, %v3081, 0.0
      %v3186 = vsel %vm3162, %v3082, 0.0
      %v3187 = vsel %vm3162, %v3083, 0.0
      %v3188 = vsel %vm3162, %v3084, 0.0
      %v3189 = vsel %vm3162, %v3085, 0.0
      %v3190 = vsel %vm3162, %v3086, 0.0
      %v3191 = vsel %vm3162, %v3087, 0.0
      %v3192 = vsel %vm3162, %v3088, 0.0
      %v3193 = vsel %vm3162, %v3089, 0.0
      %v3194 = vsel %vm3162, %v3090, 0.0
      %v3195 = vsel %vm1170, %v3163, 0.0
      %3196 = vadd.xlane.f32.xlu0 %v3195
      %v3197 = vpop.xlane.xlu0 %3196
      %v3198 = vsel %vm1170, %v3164, 0.0
      %3199 = vadd.xlane.f32.xlu0 %v3198
      %v3200 = vpop.xlane.xlu0 %3199
      %v3201 = vsel %vm1170, %v3165, 0.0
      %3202 = vadd.xlane.f32.xlu0 %v3201
      %v3203 = vpop.xlane.xlu0 %3202
      %v3204 = vsel %vm1170, %v3166, 0.0
      %3205 = vadd.xlane.f32.xlu0 %v3204
      %v3206 = vpop.xlane.xlu0 %3205
      %v3207 = vsel %vm1170, %v3167, 0.0
      %3208 = vadd.xlane.f32.xlu0 %v3207
      %v3209 = vpop.xlane.xlu0 %3208
      %v3210 = vsel %vm1170, %v3168, 0.0
      %3211 = vadd.xlane.f32.xlu0 %v3210
      %v3212 = vpop.xlane.xlu0 %3211
      %v3213 = vsel %vm1170, %v3169, 0.0
      %3214 = vadd.xlane.f32.xlu0 %v3213
      %v3215 = vpop.xlane.xlu0 %3214
      %v3216 = vsel %vm1170, %v3170, 0.0
      %3217 = vadd.xlane.f32.xlu0 %v3216
      %v3218 = vpop.xlane.xlu0 %3217
      %v3219 = vsel %vm1170, %v3171, 0.0
      %3220 = vadd.xlane.f32.xlu0 %v3219
      %v3221 = vpop.xlane.xlu0 %3220
      %v3222 = vsel %vm1170, %v3172, 0.0
      %3223 = vadd.xlane.f32.xlu0 %v3222
      %v3224 = vpop.xlane.xlu0 %3223
      %v3225 = vsel %vm1170, %v3173, 0.0
      %3226 = vadd.xlane.f32.xlu0 %v3225
      %v3227 = vpop.xlane.xlu0 %3226
      %v3228 = vsel %vm1170, %v3174, 0.0
      %3229 = vadd.xlane.f32.xlu0 %v3228
      %v3230 = vpop.xlane.xlu0 %3229
      %v3231 = vsel %vm1170, %v3175, 0.0
      %3232 = vadd.xlane.f32.xlu0 %v3231
      %v3233 = vpop.xlane.xlu0 %3232
      %v3234 = vsel %vm1170, %v3176, 0.0
      %3235 = vadd.xlane.f32.xlu0 %v3234
      %v3236 = vpop.xlane.xlu0 %3235
      %v3237 = vsel %vm1170, %v3177, 0.0
      %3238 = vadd.xlane.f32.xlu0 %v3237
      %v3239 = vpop.xlane.xlu0 %3238
      %v3240 = vsel %vm1170, %v3178, 0.0
      %3241 = vadd.xlane.f32.xlu0 %v3240
      %v3242 = vpop.xlane.xlu0 %3241
      %v3243 = vsel %vm1170, %v3179, 0.0
      %3244 = vadd.xlane.f32.xlu0 %v3243
      %v3245 = vpop.xlane.xlu0 %3244
      %v3246 = vsel %vm1170, %v3180, 0.0
      %3247 = vadd.xlane.f32.xlu0 %v3246
      %v3248 = vpop.xlane.xlu0 %3247
      %v3249 = vsel %vm1170, %v3181, 0.0
      %3250 = vadd.xlane.f32.xlu0 %v3249
      %v3251 = vpop.xlane.xlu0 %3250
      %v3252 = vsel %vm1170, %v3182, 0.0
      %3253 = vadd.xlane.f32.xlu0 %v3252
      %v3254 = vpop.xlane.xlu0 %3253
      %v3255 = vsel %vm1170, %v3183, 0.0
      %3256 = vadd.xlane.f32.xlu0 %v3255
      %v3257 = vpop.xlane.xlu0 %3256
      %v3258 = vsel %vm1170, %v3184, 0.0
      %3259 = vadd.xlane.f32.xlu0 %v3258
      %v3260 = vpop.xlane.xlu0 %3259
      %v3261 = vsel %vm1170, %v3185, 0.0
      %3262 = vadd.xlane.f32.xlu0 %v3261
      %v3263 = vpop.xlane.xlu0 %3262
      %v3264 = vsel %vm1170, %v3186, 0.0
      %3265 = vadd.xlane.f32.xlu0 %v3264
      %v3266 = vpop.xlane.xlu0 %3265
      %v3267 = vsel %vm1170, %v3187, 0.0
      %3268 = vadd.xlane.f32.xlu0 %v3267
      %v3269 = vpop.xlane.xlu0 %3268
      %v3270 = vsel %vm1170, %v3188, 0.0
      %3271 = vadd.xlane.f32.xlu0 %v3270
      %v3272 = vpop.xlane.xlu0 %3271
      %v3273 = vsel %vm1170, %v3189, 0.0
      %3274 = vadd.xlane.f32.xlu0 %v3273
      %v3275 = vpop.xlane.xlu0 %3274
      %v3276 = vsel %vm1170, %v3190, 0.0
      %3277 = vadd.xlane.f32.xlu0 %v3276
      %v3278 = vpop.xlane.xlu0 %3277
      %v3279 = vsel %vm1170, %v3191, 0.0
      %3280 = vadd.xlane.f32.xlu0 %v3279
      %v3281 = vpop.xlane.xlu0 %3280
      %v3282 = vsel %vm1170, %v3192, 0.0
      %3283 = vadd.xlane.f32.xlu0 %v3282
      %v3284 = vpop.xlane.xlu0 %3283
      %v3285 = vsel %vm1170, %v3193, 0.0
      %3286 = vadd.xlane.f32.xlu0 %v3285
      %v3287 = vpop.xlane.xlu0 %3286
      %v3288 = vsel %vm1170, %v3194, 0.0
      %3289 = vadd.xlane.f32.xlu0 %v3288
      %v3290 = vpop.xlane.xlu0 %3289
      %s3291 = smul.u32 %s3124, 32
      %s3292 = smul.addr %s3291, 8
      %s3293 = scalar_lea.vmem [#allocation2], %s3292
      %v3294 = vld [vmem:[%s3293] sm:$0xff]
      %v3295 = vld [vmem:[%s3293 + $0x8] sm:$0xff]
      %v3296 = vld [vmem:[%s3293 + $0x10] sm:$0xff]
      %v3297 = vld [vmem:[%s3293 + $0x18] sm:$0xff]
      %v3298 = vld [vmem:[%s3293 + $0x20] sm:$0xff]
      %v3299 = vld [vmem:[%s3293 + $0x28] sm:$0xff]
      %v3300 = vld [vmem:[%s3293 + $0x30] sm:$0xff]
      %v3301 = vld [vmem:[%s3293 + $0x38] sm:$0xff]
      %v3302 = vld [vmem:[%s3293 + $0x40] sm:$0xff]
      %v3303 = vld [vmem:[%s3293 + $0x48] sm:$0xff]
      %v3304 = vld [vmem:[%s3293 + $0x50] sm:$0xff]
      %v3305 = vld [vmem:[%s3293 + $0x58] sm:$0xff]
      %v3306 = vld [vmem:[%s3293 + $0x60] sm:$0xff]
      %v3307 = vld [vmem:[%s3293 + $0x68] sm:$0xff]
      %v3308 = vld [vmem:[%s3293 + $0x70] sm:$0xff]
      %v3309 = vld [vmem:[%s3293 + $0x78] sm:$0xff]
      %v3310 = vld [vmem:[%s3293 + $0x80] sm:$0xff]
      %v3311 = vld [vmem:[%s3293 + $0x88] sm:$0xff]
      %v3312 = vld [vmem:[%s3293 + $0x90] sm:$0xff]
      %v3313 = vld [vmem:[%s3293 + $0x98] sm:$0xff]
      %v3314 = vld [vmem:[%s3293 + $0xa0] sm:$0xff]
      %v3315 = vld [vmem:[%s3293 + $0xa8] sm:$0xff]
      %v3316 = vld [vmem:[%s3293 + $0xb0] sm:$0xff]
      %v3317 = vld [vmem:[%s3293 + $0xb8] sm:$0xff]
      %v3318 = vld [vmem:[%s3293 + $0xc0] sm:$0xff]
      %v3319 = vld [vmem:[%s3293 + $0xc8] sm:$0xff]
      %v3320 = vld [vmem:[%s3293 + $0xd0] sm:$0xff]
      %v3321 = vld [vmem:[%s3293 + $0xd8] sm:$0xff]
      %v3322 = vld [vmem:[%s3293 + $0xe0] sm:$0xff]
      %v3323 = vld [vmem:[%s3293 + $0xe8] sm:$0xff]
      %v3324 = vld [vmem:[%s3293 + $0xf0] sm:$0xff]
      %v3325 = vld [vmem:[%s3293 + $0xf8] sm:$0xff]
      %s3326 = smul.u32 %s3124, 2
      %s3327 = scalar_lea.vmem %s7, %s3326
      %v3328 = vld [vmem:[%s3327] sm:$0x3]
      %v3330 = vlaneseq
      %v3331 = vshrl.u32 %v3330, 7
      %v3332 = vsub.s32 0, %v3331
      %v3333 = vrot.slane %v3328, %v3332
      %v3334 = vlaneseq
      %v3335 = vshrl.u32 %v3334, 7
      %v3336 = vsub.s32 1, %v3335
      %v3337 = vrot.slane %v3328, %v3336
      %3340 = vmatprep.subr.mxu0 %v3295
      %3341 = vmatpush1.msra.mxu0 %v3294
      %3342 = vmatprep.subr.mxu0 %v3297
      %3343 = vmatpush1.msra.mxu0 %v3296
      %3344 = vmatprep.subr.mxu0 %v3299
      %3345 = vmatpush1.msra.mxu0 %v3298
      %3346 = vmatprep.subr.mxu0 %v3301
      %3347 = vmatpush1.msra.mxu0 %v3300
      %3348 = vmatprep.subr.mxu0 %v3303
      %3349 = vmatpush1.msra.mxu0 %v3302
      %3350 = vmatprep.subr.mxu0 %v3305
      %3351 = vmatpush1.msra.mxu0 %v3304
      %3352 = vmatprep.subr.mxu0 %v3307
      %3353 = vmatpush1.msra.mxu0 %v3306
      %3354 = vmatprep.subr.mxu0 %v3309
      %3355 = vmatpush1.msra.mxu0 %v3308
      %3356 = vmatprep.subr.mxu0 %v3311
      %3357 = vmatpush1.msra.mxu0 %v3310
      %3358 = vmatprep.subr.mxu0 %v3313
      %3359 = vmatpush1.msra.mxu0 %v3312
      %3360 = vmatprep.subr.mxu0 %v3315
      %3361 = vmatpush1.msra.mxu0 %v3314
      %3362 = vmatprep.subr.mxu0 %v3317
      %3363 = vmatpush1.msra.mxu0 %v3316
      %3364 = vmatprep.subr.mxu0 %v3319
      %3365 = vmatpush1.msra.mxu0 %v3318
      %3366 = vmatprep.subr.mxu0 %v3321
      %3367 = vmatpush1.msra.mxu0 %v3320
      %3368 = vmatprep.subr.mxu0 %v3323
      %3369 = vmatpush1.msra.mxu0 %v3322
      %3370 = vmatprep.subr.mxu0 %v3325
      %3371 = vmatpush1.msra.mxu0 %v3324
      %3372 = vmatprep.subr.mxu0 0.0
      %3373 = vmatpush1.msra.mxu0 0.0
      %3374 = vmatprep.subr.mxu0 0.0
      %3375 = vmatpush1.msra.mxu0 0.0
      %3376 = vmatprep.subr.mxu0 0.0
      %3377 = vmatpush1.msra.mxu0 0.0
      %3378 = vmatprep.subr.mxu0 0.0
      %3379 = vmatpush1.msra.mxu0 0.0
      %3380 = vmatprep.subr.mxu0 0.0
      %3381 = vmatpush1.msra.mxu0 0.0
      %3382 = vmatprep.subr.mxu0 0.0
      %3383 = vmatpush1.msra.mxu0 0.0
      %3384 = vmatprep.subr.mxu0 0.0
      %3385 = vmatpush1.msra.mxu0 0.0
      %3386 = vmatprep.subr.mxu0 0.0
      %3387 = vmatpush1.msra.mxu0 0.0
      %3388 = vmatprep.subr.mxu0 0.0
      %3389 = vmatpush1.msra.mxu0 0.0
      %3390 = vmatprep.subr.mxu0 0.0
      %3391 = vmatpush1.msra.mxu0 0.0
      %3392 = vmatprep.subr.mxu0 0.0
      %3393 = vmatpush1.msra.mxu0 0.0
      %3394 = vmatprep.subr.mxu0 0.0
      %3395 = vmatpush1.msra.mxu0 0.0
      %3396 = vmatprep.subr.mxu0 0.0
      %3397 = vmatpush1.msra.mxu0 0.0
      %3398 = vmatprep.subr.mxu0 0.0
      %3399 = vmatpush1.msra.mxu0 0.0
      %3400 = vmatprep.subr.mxu0 0.0
      %3401 = vmatpush1.msra.mxu0 0.0
      %3402 = vmatprep.subr.mxu0 0.0
      %3403 = vmatpush1.msra.mxu0 0.0
      %3404 = vmatprep.mubr.f32.mxu0 0.0
      %3405 = vmatmul.mubr.f32.gmra.mrb[0].mxu0 %v64
      %v3406 = vpop.f32.mrb[0].mxu0
      %v3407 = vadd.f32 %v3333, %v3406
      %v3408 = vpop.f32.mrb[0].mxu0
      %v3409 = vadd.f32 %v3337, %v3408
      %3410 = vmatprep.mubr.f32.mxu0 0.0
      %3411 = vmatmul.mubr.f32.gmra.mrb[0].mxu0 %v65
      %v3412 = vpop.f32.mrb[0].mxu0
      %v3413 = vadd.f32 %v3333, %v3412
      %v3414 = vpop.f32.mrb[0].mxu0
      %v3415 = vadd.f32 %v3337, %v3414
      %3416 = vmatprep.mubr.f32.mxu0 0.0
      %3417 = vmatmul.mubr.f32.gmra.mrb[0].mxu0 %v66
      %v3418 = vpop.f32.mrb[0].mxu0
      %v3419 = vadd.f32 %v3333, %v3418
      %v3420 = vpop.f32.mrb[0].mxu0
      %v3421 = vadd.f32 %v3337, %v3420
      %3422 = vmatprep.mubr.f32.mxu0 0.0
      %3423 = vmatmul.mubr.f32.gmra.mrb[0].mxu0 %v67
      %v3424 = vpop.f32.mrb[0].mxu0
      %v3425 = vadd.f32 %v3333, %v3424
      %v3426 = vpop.f32.mrb[0].mxu0
      %v3427 = vadd.f32 %v3337, %v3426
      %3428 = vmatprep.mubr.f32.mxu0 0.0
      %3429 = vmatmul.mubr.f32.gmra.mrb[0].mxu0 %v68
      %v3430 = vpop.f32.mrb[0].mxu0
      %v3431 = vadd.f32 %v3333, %v3430
      %v3432 = vpop.f32.mrb[0].mxu0
      %v3433 = vadd.f32 %v3337, %v3432
      %3434 = vmatprep.mubr.f32.mxu0 0.0
      %3435 = vmatmul.mubr.f32.gmra.mrb[0].mxu0 %v69
      %v3436 = vpop.f32.mrb[0].mxu0
      %v3437 = vadd.f32 %v3333, %v3436
      %v3438 = vpop.f32.mrb[0].mxu0
      %v3439 = vadd.f32 %v3337, %v3438
      %3440 = vmatprep.mubr.f32.mxu0 0.0
      %3441 = vmatmul.mubr.f32.gmra.mrb[0].mxu0 %v70
      %v3442 = vpop.f32.mrb[0].mxu0
      %v3443 = vadd.f32 %v3333, %v3442
      %v3444 = vpop.f32.mrb[0].mxu0
      %v3445 = vadd.f32 %v3337, %v3444
      %3446 = vmatprep.mubr.f32.mxu0 0.0
      %3447 = vmatmul.mubr.f32.gmra.mrb[0].mxu0 %v71
      %v3448 = vpop.f32.mrb[0].mxu0
      %v3449 = vadd.f32 %v3333, %v3448
      %v3450 = vpop.f32.mrb[0].mxu0
      %v3451 = vadd.f32 %v3337, %v3450
      %3452 = vmatprep.mubr.f32.mxu0 0.0
      %3453 = vmatmul.mubr.f32.gmra.mrb[0].mxu0 %v72
      %v3454 = vpop.f32.mrb[0].mxu0
      %v3455 = vadd.f32 %v3333, %v3454
      %v3456 = vpop.f32.mrb[0].mxu0
      %v3457 = vadd.f32 %v3337, %v3456
      %3458 = vmatprep.mubr.f32.mxu0 0.0
      %3459 = vmatmul.mubr.f32.gmra.mrb[0].mxu0 %v73
      %v3460 = vpop.f32.mrb[0].mxu0
      %v3461 = vadd.f32 %v3333, %v3460
      %v3462 = vpop.f32.mrb[0].mxu0
      %v3463 = vadd.f32 %v3337, %v3462
      %3464 = vmatprep.mubr.f32.mxu0 0.0
      %3465 = vmatmul.mubr.f32.gmra.mrb[0].mxu0 %v74
      %v3466 = vpop.f32.mrb[0].mxu0
      %v3467 = vadd.f32 %v3333, %v3466
      %v3468 = vpop.f32.mrb[0].mxu0
      %v3469 = vadd.f32 %v3337, %v3468
      %3470 = vmatprep.mubr.f32.mxu0 0.0
      %3471 = vmatmul.mubr.f32.gmra.mrb[0].mxu0 %v75
      %v3472 = vpop.f32.mrb[0].mxu0
      %v3473 = vadd.f32 %v3333, %v3472
      %v3474 = vpop.f32.mrb[0].mxu0
      %v3475 = vadd.f32 %v3337, %v3474
      %3476 = vmatprep.mubr.f32.mxu0 0.0
      %3477 = vmatmul.mubr.f32.gmra.mrb[0].mxu0 %v76
      %v3478 = vpop.f32.mrb[0].mxu0
      %v3479 = vadd.f32 %v3333, %v3478
      %v3480 = vpop.f32.mrb[0].mxu0
      %v3481 = vadd.f32 %v3337, %v3480
      %3482 = vmatprep.mubr.f32.mxu0 0.0
      %3483 = vmatmul.mubr.f32.gmra.mrb[0].mxu0 %v77
      %v3484 = vpop.f32.mrb[0].mxu0
      %v3485 = vadd.f32 %v3333, %v3484
      %v3486 = vpop.f32.mrb[0].mxu0
      %v3487 = vadd.f32 %v3337, %v3486
      %3488 = vmatprep.mubr.f32.mxu0 0.0
      %3489 = vmatmul.mubr.f32.gmra.mrb[0].mxu0 %v78
      %v3490 = vpop.f32.mrb[0].mxu0
      %v3491 = vadd.f32 %v3333, %v3490
      %v3492 = vpop.f32.mrb[0].mxu0
      %v3493 = vadd.f32 %v3337, %v3492
      %3494 = vmatprep.mubr.f32.mxu0 0.0
      %3495 = vmatmul.mubr.f32.gmra.mrb[0].mxu0 %v79
      %v3496 = vpop.f32.mrb[0].mxu0
      %v3497 = vadd.f32 %v3333, %v3496
      %v3498 = vpop.f32.mrb[0].mxu0
      %v3499 = vadd.f32 %v3337, %v3498
      %3500 = vmatprep.mubr.f32.mxu0 0.0
      %3501 = vmatmul.mubr.f32.gmra.mrb[0].mxu0 %v80
      %v3502 = vpop.f32.mrb[0].mxu0
      %v3503 = vadd.f32 %v3333, %v3502
      %v3504 = vpop.f32.mrb[0].mxu0
      %v3505 = vadd.f32 %v3337, %v3504
      %3506 = vmatprep.mubr.f32.mxu0 0.0
      %3507 = vmatmul.mubr.f32.gmra.mrb[0].mxu0 %v81
      %v3508 = vpop.f32.mrb[0].mxu0
      %v3509 = vadd.f32 %v3333, %v3508
      %v3510 = vpop.f32.mrb[0].mxu0
      %v3511 = vadd.f32 %v3337, %v3510
      %3512 = vmatprep.mubr.f32.mxu0 0.0
      %3513 = vmatmul.mubr.f32.gmra.mrb[0].mxu0 %v82
      %v3514 = vpop.f32.mrb[0].mxu0
      %v3515 = vadd.f32 %v3333, %v3514
      %v3516 = vpop.f32.mrb[0].mxu0
      %v3517 = vadd.f32 %v3337, %v3516
      %3518 = vmatprep.mubr.f32.mxu0 0.0
      %3519 = vmatmul.mubr.f32.gmra.mrb[0].mxu0 %v83
      %v3520 = vpop.f32.mrb[0].mxu0
      %v3521 = vadd.f32 %v3333, %v3520
      %v3522 = vpop.f32.mrb[0].mxu0
      %v3523 = vadd.f32 %v3337, %v3522
      %3524 = vmatprep.mubr.f32.mxu0 0.0
      %3525 = vmatmul.mubr.f32.gmra.mrb[0].mxu0 %v84
      %v3526 = vpop.f32.mrb[0].mxu0
      %v3527 = vadd.f32 %v3333, %v3526
      %v3528 = vpop.f32.mrb[0].mxu0
      %v3529 = vadd.f32 %v3337, %v3528
      %3530 = vmatprep.mubr.f32.mxu0 0.0
      %3531 = vmatmul.mubr.f32.gmra.mrb[0].mxu0 %v85
      %v3532 = vpop.f32.mrb[0].mxu0
      %v3533 = vadd.f32 %v3333, %v3532
      %v3534 = vpop.f32.mrb[0].mxu0
      %v3535 = vadd.f32 %v3337, %v3534
      %3536 = vmatprep.mubr.f32.mxu0 0.0
      %3537 = vmatmul.mubr.f32.gmra.mrb[0].mxu0 %v86
      %v3538 = vpop.f32.mrb[0].mxu0
      %v3539 = vadd.f32 %v3333, %v3538
      %v3540 = vpop.f32.mrb[0].mxu0
      %v3541 = vadd.f32 %v3337, %v3540
      %3542 = vmatprep.mubr.f32.mxu0 0.0
      %3543 = vmatmul.mubr.f32.gmra.mrb[0].mxu0 %v87
      %v3544 = vpop.f32.mrb[0].mxu0
      %v3545 = vadd.f32 %v3333, %v3544
      %v3546 = vpop.f32.mrb[0].mxu0
      %v3547 = vadd.f32 %v3337, %v3546
      %3548 = vmatprep.mubr.f32.mxu0 0.0
      %3549 = vmatmul.mubr.f32.gmra.mrb[0].mxu0 %v88
      %v3550 = vpop.f32.mrb[0].mxu0
      %v3551 = vadd.f32 %v3333, %v3550
      %v3552 = vpop.f32.mrb[0].mxu0
      %v3553 = vadd.f32 %v3337, %v3552
      %3554 = vmatprep.mubr.f32.mxu0 0.0
      %3555 = vmatmul.mubr.f32.gmra.mrb[0].mxu0 %v89
      %v3556 = vpop.f32.mrb[0].mxu0
      %v3557 = vadd.f32 %v3333, %v3556
      %v3558 = vpop.f32.mrb[0].mxu0
      %v3559 = vadd.f32 %v3337, %v3558
      %3560 = vmatprep.mubr.f32.mxu0 0.0
      %3561 = vmatmul.mubr.f32.gmra.mrb[0].mxu0 %v90
      %v3562 = vpop.f32.mrb[0].mxu0
      %v3563 = vadd.f32 %v3333, %v3562
      %v3564 = vpop.f32.mrb[0].mxu0
      %v3565 = vadd.f32 %v3337, %v3564
      %3566 = vmatprep.mubr.f32.mxu0 0.0
      %3567 = vmatmul.mubr.f32.gmra.mrb[0].mxu0 %v91
      %v3568 = vpop.f32.mrb[0].mxu0
      %v3569 = vadd.f32 %v3333, %v3568
      %v3570 = vpop.f32.mrb[0].mxu0
      %v3571 = vadd.f32 %v3337, %v3570
      %3572 = vmatprep.mubr.f32.mxu0 0.0
      %3573 = vmatmul.mubr.f32.gmra.mrb[0].mxu0 %v92
      %v3574 = vpop.f32.mrb[0].mxu0
      %v3575 = vadd.f32 %v3333, %v3574
      %v3576 = vpop.f32.mrb[0].mxu0
      %v3577 = vadd.f32 %v3337, %v3576
      %3578 = vmatprep.mubr.f32.mxu0 0.0
      %3579 = vmatmul.mubr.f32.gmra.mrb[0].mxu0 %v93
      %v3580 = vpop.f32.mrb[0].mxu0
      %v3581 = vadd.f32 %v3333, %v3580
      %v3582 = vpop.f32.mrb[0].mxu0
      %v3583 = vadd.f32 %v3337, %v3582
      %3584 = vmatprep.mubr.f32.mxu0 0.0
      %3585 = vmatmul.mubr.f32.gmra.mrb[0].mxu0 %v94
      %v3586 = vpop.f32.mrb[0].mxu0
      %v3587 = vadd.f32 %v3333, %v3586
      %v3588 = vpop.f32.mrb[0].mxu0
      %v3589 = vadd.f32 %v3337, %v3588
      %3590 = vmatprep.mubr.f32.mxu0 0.0
      %3591 = vmatmul.mubr.f32.gmra.mrb[0].mxu0 %v95
      %v3592 = vpop.f32.mrb[0].mxu0
      %v3593 = vadd.f32 %v3333, %v3592
      %v3594 = vpop.f32.mrb[0].mxu0
      %v3595 = vadd.f32 %v3337, %v3594
      %3596 = vdwg.mxu0
      %v3597 = vmax.f32 %v3407, 0.0
      %v3598 = vmax.f32 %v3409, 0.0
      %v3599 = vmax.f32 %v3413, 0.0
      %v3600 = vmax.f32 %v3415, 0.0
      %v3601 = vmax.f32 %v3419, 0.0
      %v3602 = vmax.f32 %v3421, 0.0
      %v3603 = vmax.f32 %v3425, 0.0
      %v3604 = vmax.f32 %v3427, 0.0
      %v3605 = vmax.f32 %v3431, 0.0
      %v3606 = vmax.f32 %v3433, 0.0
      %v3607 = vmax.f32 %v3437, 0.0
      %v3608 = vmax.f32 %v3439, 0.0
      %v3609 = vmax.f32 %v3443, 0.0
      %v3610 = vmax.f32 %v3445, 0.0
      %v3611 = vmax.f32 %v3449, 0.0
      %v3612 = vmax.f32 %v3451, 0.0
      %v3613 = vmax.f32 %v3455, 0.0
      %v3614 = vmax.f32 %v3457, 0.0
      %v3615 = vmax.f32 %v3461, 0.0
      %v3616 = vmax.f32 %v3463, 0.0
      %v3617 = vmax.f32 %v3467, 0.0
      %v3618 = vmax.f32 %v3469, 0.0
      %v3619 = vmax.f32 %v3473, 0.0
      %v3620 = vmax.f32 %v3475, 0.0
      %v3621 = vmax.f32 %v3479, 0.0
      %v3622 = vmax.f32 %v3481, 0.0
      %v3623 = vmax.f32 %v3485, 0.0
      %v3624 = vmax.f32 %v3487, 0.0
      %v3625 = vmax.f32 %v3491, 0.0
      %v3626 = vmax.f32 %v3493, 0.0
      %v3627 = vmax.f32 %v3497, 0.0
      %v3628 = vmax.f32 %v3499, 0.0
      %v3629 = vmax.f32 %v3503, 0.0
      %v3630 = vmax.f32 %v3505, 0.0
      %v3631 = vmax.f32 %v3509, 0.0
      %v3632 = vmax.f32 %v3511, 0.0
      %v3633 = vmax.f32 %v3515, 0.0
      %v3634 = vmax.f32 %v3517, 0.0
      %v3635 = vmax.f32 %v3521, 0.0
      %v3636 = vmax.f32 %v3523, 0.0
      %v3637 = vmax.f32 %v3527, 0.0
      %v3638 = vmax.f32 %v3529, 0.0
      %v3639 = vmax.f32 %v3533, 0.0
      %v3640 = vmax.f32 %v3535, 0.0
      %v3641 = vmax.f32 %v3539, 0.0
      %v3642 = vmax.f32 %v3541, 0.0
      %v3643 = vmax.f32 %v3545, 0.0
      %v3644 = vmax.f32 %v3547, 0.0
      %v3645 = vmax.f32 %v3551, 0.0
      %v3646 = vmax.f32 %v3553, 0.0
      %v3647 = vmax.f32 %v3557, 0.0
      %v3648 = vmax.f32 %v3559, 0.0
      %v3649 = vmax.f32 %v3563, 0.0
      %v3650 = vmax.f32 %v3565, 0.0
      %v3651 = vmax.f32 %v3569, 0.0
      %v3652 = vmax.f32 %v3571, 0.0
      %v3653 = vmax.f32 %v3575, 0.0
      %v3654 = vmax.f32 %v3577, 0.0
      %v3655 = vmax.f32 %v3581, 0.0
      %v3656 = vmax.f32 %v3583, 0.0
      %v3657 = vmax.f32 %v3587, 0.0
      %v3658 = vmax.f32 %v3589, 0.0
      %v3659 = vmax.f32 %v3593, 0.0
      %v3660 = vmax.f32 %v3595, 0.0
      %s3661 = smul.u32 %s3124, 256
      %s3662 = scalar_lea.vmem [#allocation5], %s3661
      %v3663 = vld [vmem:[%s3662] sm:$0xff]
      %v3664 = vld [vmem:[%s3662 + $0x8] sm:$0xff]
      %v3665 = vld [vmem:[%s3662 + $0x10] sm:$0xff]
      %v3666 = vld [vmem:[%s3662 + $0x18] sm:$0xff]
      %v3667 = vld [vmem:[%s3662 + $0x20] sm:$0xff]
      %v3668 = vld [vmem:[%s3662 + $0x28] sm:$0xff]
      %v3669 = vld [vmem:[%s3662 + $0x30] sm:$0xff]
      %v3670 = vld [vmem:[%s3662 + $0x38] sm:$0xff]
      %v3671 = vld [vmem:[%s3662 + $0x40] sm:$0xff]
      %v3672 = vld [vmem:[%s3662 + $0x48] sm:$0xff]
      %v3673 = vld [vmem:[%s3662 + $0x50] sm:$0xff]
      %v3674 = vld [vmem:[%s3662 + $0x58] sm:$0xff]
      %v3675 = vld [vmem:[%s3662 + $0x60] sm:$0xff]
      %v3676 = vld [vmem:[%s3662 + $0x68] sm:$0xff]
      %v3677 = vld [vmem:[%s3662 + $0x70] sm:$0xff]
      %v3678 = vld [vmem:[%s3662 + $0x78] sm:$0xff]
      %v3679 = vld [vmem:[%s3662 + $0x80] sm:$0xff]
      %v3680 = vld [vmem:[%s3662 + $0x88] sm:$0xff]
      %v3681 = vld [vmem:[%s3662 + $0x90] sm:$0xff]
      %v3682 = vld [vmem:[%s3662 + $0x98] sm:$0xff]
      %v3683 = vld [vmem:[%s3662 + $0xa0] sm:$0xff]
      %v3684 = vld [vmem:[%s3662 + $0xa8] sm:$0xff]
      %v3685 = vld [vmem:[%s3662 + $0xb0] sm:$0xff]
      %v3686 = vld [vmem:[%s3662 + $0xb8] sm:$0xff]
      %v3687 = vld [vmem:[%s3662 + $0xc0] sm:$0xff]
      %v3688 = vld [vmem:[%s3662 + $0xc8] sm:$0xff]
      %v3689 = vld [vmem:[%s3662 + $0xd0] sm:$0xff]
      %v3690 = vld [vmem:[%s3662 + $0xd8] sm:$0xff]
      %v3691 = vld [vmem:[%s3662 + $0xe0] sm:$0xff]
      %v3692 = vld [vmem:[%s3662 + $0xe8] sm:$0xff]
      %v3693 = vld [vmem:[%s3662 + $0xf0] sm:$0xff]
      %v3694 = vld [vmem:[%s3662 + $0xf8] sm:$0xff]
      %s3695 = scalar_lea.vmem %s9, %s3124
      %v3696 = vld [vmem:[%s3695] sm:$0x1]
      %v3698 = vlaneseq
      %v3699 = vshrl.u32 %v3698, 7
      %v3700 = vsub.s32 0, %v3699
      %v3701 = vrot.slane %v3696, %v3700
      %3703 = vmatprep.subr.mxu0 0.0
      %3704 = vmatpush1.msra.mxu0 %v3663
      %3705 = vmatprep.subr.mxu0 0.0
      %3706 = vmatpush1.msra.mxu0 %v3664
      %3707 = vmatprep.subr.mxu0 0.0
      %3708 = vmatpush1.msra.mxu0 %v3665
      %3709 = vmatprep.subr.mxu0 0.0
      %3710 = vmatpush1.msra.mxu0 %v3666
      %3711 = vmatprep.subr.mxu0 0.0
      %3712 = vmatpush1.msra.mxu0 %v3667
      %3713 = vmatprep.subr.mxu0 0.0
      %3714 = vmatpush1.msra.mxu0 %v3668
      %3715 = vmatprep.subr.mxu0 0.0
      %3716 = vmatpush1.msra.mxu0 %v3669
      %3717 = vmatprep.subr.mxu0 0.0
      %3718 = vmatpush1.msra.mxu0 %v3670
      %3719 = vmatprep.subr.mxu0 0.0
      %3720 = vmatpush1.msra.mxu0 %v3671
      %3721 = vmatprep.subr.mxu0 0.0
      %3722 = vmatpush1.msra.mxu0 %v3672
      %3723 = vmatprep.subr.mxu0 0.0
      %3724 = vmatpush1.msra.mxu0 %v3673
      %3725 = vmatprep.subr.mxu0 0.0
      %3726 = vmatpush1.msra.mxu0 %v3674
      %3727 = vmatprep.subr.mxu0 0.0
      %3728 = vmatpush1.msra.mxu0 %v3675
      %3729 = vmatprep.subr.mxu0 0.0
      %3730 = vmatpush1.msra.mxu0 %v3676
      %3731 = vmatprep.subr.mxu0 0.0
      %3732 = vmatpush1.msra.mxu0 %v3677
      %3733 = vmatprep.subr.mxu0 0.0
      %3734 = vmatpush1.msra.mxu0 %v3678
      %3735 = vmatprep.subr.mxu0 0.0
      %3736 = vmatpush1.msra.mxu0 %v3679
      %3737 = vmatprep.subr.mxu0 0.0
      %3738 = vmatpush1.msra.mxu0 %v3680
      %3739 = vmatprep.subr.mxu0 0.0
      %3740 = vmatpush1.msra.mxu0 %v3681
      %3741 = vmatprep.subr.mxu0 0.0
      %3742 = vmatpush1.msra.mxu0 %v3682
      %3743 = vmatprep.subr.mxu0 0.0
      %3744 = vmatpush1.msra.mxu0 %v3683
      %3745 = vmatprep.subr.mxu0 0.0
      %3746 = vmatpush1.msra.mxu0 %v3684
      %3747 = vmatprep.subr.mxu0 0.0
      %3748 = vmatpush1.msra.mxu0 %v3685
      %3749 = vmatprep.subr.mxu0 0.0
      %3750 = vmatpush1.msra.mxu0 %v3686
      %3751 = vmatprep.subr.mxu0 0.0
      %3752 = vmatpush1.msra.mxu0 %v3687
      %3753 = vmatprep.subr.mxu0 0.0
      %3754 = vmatpush1.msra.mxu0 %v3688
      %3755 = vmatprep.subr.mxu0 0.0
      %3756 = vmatpush1.msra.mxu0 %v3689
      %3757 = vmatprep.subr.mxu0 0.0
      %3758 = vmatpush1.msra.mxu0 %v3690
      %3759 = vmatprep.subr.mxu0 0.0
      %3760 = vmatpush1.msra.mxu0 %v3691
      %3761 = vmatprep.subr.mxu0 0.0
      %3762 = vmatpush1.msra.mxu0 %v3692
      %3763 = vmatprep.subr.mxu0 0.0
      %3764 = vmatpush1.msra.mxu0 %v3693
      %3765 = vmatprep.subr.mxu0 0.0
      %3766 = vmatpush1.msra.mxu0 %v3694
      %3767 = vmatprep.mubr.f32.mxu0 %v3598
      %3768 = vmatmul.mubr.f32.gmra.mrb[0].mxu0 %v3597
      %v3769 = vpop.f32.mrb[0].mxu0
      %v3770 = vadd.f32 %v3701, %v3769
      %v3771 = vpop.f32.mrb[0].mxu0
      %3772 = vmatprep.mubr.f32.mxu0 %v3600
      %3773 = vmatmul.mubr.f32.gmra.mrb[0].mxu0 %v3599
      %v3774 = vpop.f32.mrb[0].mxu0
      %v3775 = vadd.f32 %v3701, %v3774
      %v3776 = vpop.f32.mrb[0].mxu0
      %3777 = vmatprep.mubr.f32.mxu0 %v3602
      %3778 = vmatmul.mubr.f32.gmra.mrb[0].mxu0 %v3601
      %v3779 = vpop.f32.mrb[0].mxu0
      %v3780 = vadd.f32 %v3701, %v3779
      %v3781 = vpop.f32.mrb[0].mxu0
      %3782 = vmatprep.mubr.f32.mxu0 %v3604
      %3783 = vmatmul.mubr.f32.gmra.mrb[0].mxu0 %v3603
      %v3784 = vpop.f32.mrb[0].mxu0
      %v3785 = vadd.f32 %v3701, %v3784
      %v3786 = vpop.f32.mrb[0].mxu0
      %3787 = vmatprep.mubr.f32.mxu0 %v3606
      %3788 = vmatmul.mubr.f32.gmra.mrb[0].mxu0 %v3605
      %v3789 = vpop.f32.mrb[0].mxu0
      %v3790 = vadd.f32 %v3701, %v3789
      %v3791 = vpop.f32.mrb[0].mxu0
      %3792 = vmatprep.mubr.f32.mxu0 %v3608
      %3793 = vmatmul.mubr.f32.gmra.mrb[0].mxu0 %v3607
      %v3794 = vpop.f32.mrb[0].mxu0
      %v3795 = vadd.f32 %v3701, %v3794
      %v3796 = vpop.f32.mrb[0].mxu0
      %3797 = vmatprep.mubr.f32.mxu0 %v3610
      %3798 = vmatmul.mubr.f32.gmra.mrb[0].mxu0 %v3609
      %v3799 = vpop.f32.mrb[0].mxu0
      %v3800 = vadd.f32 %v3701, %v3799
      %v3801 = vpop.f32.mrb[0].mxu0
      %3802 = vmatprep.mubr.f32.mxu0 %v3612
      %3803 = vmatmul.mubr.f32.gmra.mrb[0].mxu0 %v3611
      %v3804 = vpop.f32.mrb[0].mxu0
      %v3805 = vadd.f32 %v3701, %v3804
      %v3806 = vpop.f32.mrb[0].mxu0
      %3807 = vmatprep.mubr.f32.mxu0 %v3614
      %3808 = vmatmul.mubr.f32.gmra.mrb[0].mxu0 %v3613
      %v3809 = vpop.f32.mrb[0].mxu0
      %v3810 = vadd.f32 %v3701, %v3809
      %v3811 = vpop.f32.mrb[0].mxu0
      %3812 = vmatprep.mubr.f32.mxu0 %v3616
      %3813 = vmatmul.mubr.f32.gmra.mrb[0].mxu0 %v3615
      %v3814 = vpop.f32.mrb[0].mxu0
      %v3815 = vadd.f32 %v3701, %v3814
      %v3816 = vpop.f32.mrb[0].mxu0
      %3817 = vmatprep.mubr.f32.mxu0 %v3618
      %3818 = vmatmul.mubr.f32.gmra.mrb[0].mxu0 %v3617
      %v3819 = vpop.f32.mrb[0].mxu0
      %v3820 = vadd.f32 %v3701, %v3819
      %v3821 = vpop.f32.mrb[0].mxu0
      %3822 = vmatprep.mubr.f32.mxu0 %v3620
      %3823 = vmatmul.mubr.f32.gmra.mrb[0].mxu0 %v3619
      %v3824 = vpop.f32.mrb[0].mxu0
      %v3825 = vadd.f32 %v3701, %v3824
      %v3826 = vpop.f32.mrb[0].mxu0
      %3827 = vmatprep.mubr.f32.mxu0 %v3622
      %3828 = vmatmul.mubr.f32.gmra.mrb[0].mxu0 %v3621
      %v3829 = vpop.f32.mrb[0].mxu0
      %v3830 = vadd.f32 %v3701, %v3829
      %v3831 = vpop.f32.mrb[0].mxu0
      %3832 = vmatprep.mubr.f32.mxu0 %v3624
      %3833 = vmatmul.mubr.f32.gmra.mrb[0].mxu0 %v3623
      %v3834 = vpop.f32.mrb[0].mxu0
      %v3835 = vadd.f32 %v3701, %v3834
      %v3836 = vpop.f32.mrb[0].mxu0
      %3837 = vmatprep.mubr.f32.mxu0 %v3626
      %3838 = vmatmul.mubr.f32.gmra.mrb[0].mxu0 %v3625
      %v3839 = vpop.f32.mrb[0].mxu0
      %v3840 = vadd.f32 %v3701, %v3839
      %v3841 = vpop.f32.mrb[0].mxu0
      %3842 = vmatprep.mubr.f32.mxu0 %v3628
      %3843 = vmatmul.mubr.f32.gmra.mrb[0].mxu0 %v3627
      %v3844 = vpop.f32.mrb[0].mxu0
      %v3845 = vadd.f32 %v3701, %v3844
      %v3846 = vpop.f32.mrb[0].mxu0
      %3847 = vmatprep.mubr.f32.mxu0 %v3630
      %3848 = vmatmul.mubr.f32.gmra.mrb[0].mxu0 %v3629
      %v3849 = vpop.f32.mrb[0].mxu0
      %v3850 = vadd.f32 %v3701, %v3849
      %v3851 = vpop.f32.mrb[0].mxu0
      %3852 = vmatprep.mubr.f32.mxu0 %v3632
      %3853 = vmatmul.mubr.f32.gmra.mrb[0].mxu0 %v3631
      %v3854 = vpop.f32.mrb[0].mxu0
      %v3855 = vadd.f32 %v3701, %v3854
      %v3856 = vpop.f32.mrb[0].mxu0
      %3857 = vmatprep.mubr.f32.mxu0 %v3634
      %3858 = vmatmul.mubr.f32.gmra.mrb[0].mxu0 %v3633
      %v3859 = vpop.f32.mrb[0].mxu0
      %v3860 = vadd.f32 %v3701, %v3859
      %v3861 = vpop.f32.mrb[0].mxu0
      %3862 = vmatprep.mubr.f32.mxu0 %v3636
      %3863 = vmatmul.mubr.f32.gmra.mrb[0].mxu0 %v3635
      %v3864 = vpop.f32.mrb[0].mxu0
      %v3865 = vadd.f32 %v3701, %v3864
      %v3866 = vpop.f32.mrb[0].mxu0
      %3867 = vmatprep.mubr.f32.mxu0 %v3638
      %3868 = vmatmul.mubr.f32.gmra.mrb[0].mxu0 %v3637
      %v3869 = vpop.f32.mrb[0].mxu0
      %v3870 = vadd.f32 %v3701, %v3869
      %v3871 = vpop.f32.mrb[0].mxu0
      %3872 = vmatprep.mubr.f32.mxu0 %v3640
      %3873 = vmatmul.mubr.f32.gmra.mrb[0].mxu0 %v3639
      %v3874 = vpop.f32.mrb[0].mxu0
      %v3875 = vadd.f32 %v3701, %v3874
      %v3876 = vpop.f32.mrb[0].mxu0
      %3877 = vmatprep.mubr.f32.mxu0 %v3642
      %3878 = vmatmul.mubr.f32.gmra.mrb[0].mxu0 %v3641
      %v3879 = vpop.f32.mrb[0].mxu0
      %v3880 = vadd.f32 %v3701, %v3879
      %v3881 = vpop.f32.mrb[0].mxu0
      %3882 = vmatprep.mubr.f32.mxu0 %v3644
      %3883 = vmatmul.mubr.f32.gmra.mrb[0].mxu0 %v3643
      %v3884 = vpop.f32.mrb[0].mxu0
      %v3885 = vadd.f32 %v3701, %v3884
      %v3886 = vpop.f32.mrb[0].mxu0
      %3887 = vmatprep.mubr.f32.mxu0 %v3646
      %3888 = vmatmul.mubr.f32.gmra.mrb[0].mxu0 %v3645
      %v3889 = vpop.f32.mrb[0].mxu0
      %v3890 = vadd.f32 %v3701, %v3889
      %v3891 = vpop.f32.mrb[0].mxu0
      %3892 = vmatprep.mubr.f32.mxu0 %v3648
      %3893 = vmatmul.mubr.f32.gmra.mrb[0].mxu0 %v3647
      %v3894 = vpop.f32.mrb[0].mxu0
      %v3895 = vadd.f32 %v3701, %v3894
      %v3896 = vpop.f32.mrb[0].mxu0
      %3897 = vmatprep.mubr.f32.mxu0 %v3650
      %3898 = vmatmul.mubr.f32.gmra.mrb[0].mxu0 %v3649
      %v3899 = vpop.f32.mrb[0].mxu0
      %v3900 = vadd.f32 %v3701, %v3899
      %v3901 = vpop.f32.mrb[0].mxu0
      %3902 = vmatprep.mubr.f32.mxu0 %v3652
      %3903 = vmatmul.mubr.f32.gmra.mrb[0].mxu0 %v3651
      %v3904 = vpop.f32.mrb[0].mxu0
      %v3905 = vadd.f32 %v3701, %v3904
      %v3906 = vpop.f32.mrb[0].mxu0
      %3907 = vmatprep.mubr.f32.mxu0 %v3654
      %3908 = vmatmul.mubr.f32.gmra.mrb[0].mxu0 %v3653
      %v3909 = vpop.f32.mrb[0].mxu0
      %v3910 = vadd.f32 %v3701, %v3909
      %v3911 = vpop.f32.mrb[0].mxu0
      %3912 = vmatprep.mubr.f32.mxu0 %v3656
      %3913 = vmatmul.mubr.f32.gmra.mrb[0].mxu0 %v3655
      %v3914 = vpop.f32.mrb[0].mxu0
      %v3915 = vadd.f32 %v3701, %v3914
      %v3916 = vpop.f32.mrb[0].mxu0
      %3917 = vmatprep.mubr.f32.mxu0 %v3658
      %3918 = vmatmul.mubr.f32.gmra.mrb[0].mxu0 %v3657
      %v3919 = vpop.f32.mrb[0].mxu0
      %v3920 = vadd.f32 %v3701, %v3919
      %v3921 = vpop.f32.mrb[0].mxu0
      %3922 = vmatprep.mubr.f32.mxu0 %v3660
      %3923 = vmatmul.mubr.f32.gmra.mrb[0].mxu0 %v3659
      %v3924 = vpop.f32.mrb[0].mxu0
      %v3925 = vadd.f32 %v3701, %v3924
      %v3926 = vpop.f32.mrb[0].mxu0
      %3927 = vdwg.mxu0
      %v3928 = vmul.f32 %v3197, %v3770
      %v3929 = vmul.f32 %v3200, %v3775
      %v3930 = vmul.f32 %v3203, %v3780
      %v3931 = vmul.f32 %v3206, %v3785
      %v3932 = vmul.f32 %v3209, %v3790
      %v3933 = vmul.f32 %v3212, %v3795
      %v3934 = vmul.f32 %v3215, %v3800
      %v3935 = vmul.f32 %v3218, %v3805
      %v3936 = vmul.f32 %v3221, %v3810
      %v3937 = vmul.f32 %v3224, %v3815
      %v3938 = vmul.f32 %v3227, %v3820
      %v3939 = vmul.f32 %v3230, %v3825
      %v3940 = vmul.f32 %v3233, %v3830
      %v3941 = vmul.f32 %v3236, %v3835
      %v3942 = vmul.f32 %v3239, %v3840
      %v3943 = vmul.f32 %v3242, %v3845
      %v3944 = vmul.f32 %v3245, %v3850
      %v3945 = vmul.f32 %v3248, %v3855
      %v3946 = vmul.f32 %v3251, %v3860
      %v3947 = vmul.f32 %v3254, %v3865
      %v3948 = vmul.f32 %v3257, %v3870
      %v3949 = vmul.f32 %v3260, %v3875
      %v3950 = vmul.f32 %v3263, %v3880
      %v3951 = vmul.f32 %v3266, %v3885
      %v3952 = vmul.f32 %v3269, %v3890
      %v3953 = vmul.f32 %v3272, %v3895
      %v3954 = vmul.f32 %v3275, %v3900
      %v3955 = vmul.f32 %v3278, %v3905
      %v3956 = vmul.f32 %v3281, %v3910
      %v3957 = vmul.f32 %v3284, %v3915
      %v3958 = vmul.f32 %v3287, %v3920
      %v3959 = vmul.f32 %v3290, %v3925
      %v3960 = vadd.f32 %v3129, %v3928
      %v3961 = vadd.f32 %v3130, %v3929
      %v3962 = vadd.f32 %v3131, %v3930
      %v3963 = vadd.f32 %v3132, %v3931
      %v3964 = vadd.f32 %v3133, %v3932
      %v3965 = vadd.f32 %v3134, %v3933
      %v3966 = vadd.f32 %v3135, %v3934
      %v3967 = vadd.f32 %v3136, %v3935
      %v3968 = vadd.f32 %v3137, %v3936
      %v3969 = vadd.f32 %v3138, %v3937
      %v3970 = vadd.f32 %v3139, %v3938
      %v3971 = vadd.f32 %v3140, %v3939
      %v3972 = vadd.f32 %v3141, %v3940
      %v3973 = vadd.f32 %v3142, %v3941
      %v3974 = vadd.f32 %v3143, %v3942
      %v3975 = vadd.f32 %v3144, %v3943
      %v3976 = vadd.f32 %v3145, %v3944
      %v3977 = vadd.f32 %v3146, %v3945
      %v3978 = vadd.f32 %v3147, %v3946
      %v3979 = vadd.f32 %v3148, %v3947
      %v3980 = vadd.f32 %v3149, %v3948
      %v3981 = vadd.f32 %v3150, %v3949
      %v3982 = vadd.f32 %v3151, %v3950
      %v3983 = vadd.f32 %v3152, %v3951
      %v3984 = vadd.f32 %v3153, %v3952
      %v3985 = vadd.f32 %v3154, %v3953
      %v3986 = vadd.f32 %v3155, %v3954
      %v3987 = vadd.f32 %v3156, %v3955
      %v3988 = vadd.f32 %v3157, %v3956
      %v3989 = vadd.f32 %v3158, %v3957
      %v3990 = vadd.f32 %v3159, %v3958
      %v3991 = vadd.f32 %v3160, %v3959
      %3992 = vst [vmem:[#allocation7] sm:$0xff] %v3960
      %3993 = vst [vmem:[#allocation7 + $0x8] sm:$0xff] %v3961
      %3994 = vst [vmem:[#allocation7 + $0x10] sm:$0xff] %v3962
      %3995 = vst [vmem:[#allocation7 + $0x18] sm:$0xff] %v3963
      %3996 = vst [vmem:[#allocation7 + $0x20] sm:$0xff] %v3964
      %3997 = vst [vmem:[#allocation7 + $0x28] sm:$0xff] %v3965
      %3998 = vst [vmem:[#allocation7 + $0x30] sm:$0xff] %v3966
      %3999 = vst [vmem:[#allocation7 + $0x38] sm:$0xff] %v3967
      %4000 = vst [vmem:[#allocation7 + $0x40] sm:$0xff] %v3968
      %4001 = vst [vmem:[#allocation7 + $0x48] sm:$0xff] %v3969
      %4002 = vst [vmem:[#allocation7 + $0x50] sm:$0xff] %v3970
      %4003 = vst [vmem:[#allocation7 + $0x58] sm:$0xff] %v3971
      %4004 = vst [vmem:[#allocation7 + $0x60] sm:$0xff] %v3972
      %4005 = vst [vmem:[#allocation7 + $0x68] sm:$0xff] %v3973
      %4006 = vst [vmem:[#allocation7 + $0x70] sm:$0xff] %v3974
      %4007 = vst [vmem:[#allocation7 + $0x78] sm:$0xff] %v3975
      %4008 = vst [vmem:[#allocation7 + $0x80] sm:$0xff] %v3976
      %4009 = vst [vmem:[#allocation7 + $0x88] sm:$0xff] %v3977
      %4010 = vst [vmem:[#allocation7 + $0x90] sm:$0xff] %v3978
      %4011 = vst [vmem:[#allocation7 + $0x98] sm:$0xff] %v3979
      %4012 = vst [vmem:[#allocation7 + $0xa0] sm:$0xff] %v3980
      %4013 = vst [vmem:[#allocation7 + $0xa8] sm:$0xff] %v3981
      %4014 = vst [vmem:[#allocation7 + $0xb0] sm:$0xff] %v3982
      %4015 = vst [vmem:[#allocation7 + $0xb8] sm:$0xff] %v3983
      %4016 = vst [vmem:[#allocation7 + $0xc0] sm:$0xff] %v3984
      %4017 = vst [vmem:[#allocation7 + $0xc8] sm:$0xff] %v3985
      %4018 = vst [vmem:[#allocation7 + $0xd0] sm:$0xff] %v3986
      %4019 = vst [vmem:[#allocation7 + $0xd8] sm:$0xff] %v3987
      %4020 = vst [vmem:[#allocation7 + $0xe0] sm:$0xff] %v3988
      %4021 = vst [vmem:[#allocation7 + $0xe8] sm:$0xff] %v3989
      %4022 = vst [vmem:[#allocation7 + $0xf0] sm:$0xff] %v3990
      %4023 = vst [vmem:[#allocation7 + $0xf8] sm:$0xff] %v3991
    $region54: #{tpu_custom_call.1} parent=1 // loop_footer
      %s3128 = sadd.s32 1, %s3124
    $region55: #{tpu_custom_call.1} parent=1 // loop_footer_branch
      %3123 = sbr.rel target = $region51
    $region56: #{tpu_custom_call.1} parent=1 // loop_exit
      _
    // Predicated region
    $region57: #{tpu_custom_call.1} parent=1 // pred_check
      _
    $region58: #{tpu_custom_call.1} parent=1 // pred_check_branch
      %4025 = sbr.rel (0) target = $region60
    $region59: #{tpu_custom_call.1} parent=1 // pred_region
      %s4027 = ssub.s32 4096, 4096
      %4028 = vsyncadd [#allocation4], %s4027
      %s4029 = sshll.u32 [#allocation7], 4
      %s4030 = int_to_ptr.vmem [resolvable:$true] %s4029
      %4035 = dma.vmem_to_hbm [thread:$0]  %s4030, 4096, %s10, [#allocation4], 128, 128, 8
    $region60: #{tpu_custom_call.1} parent=1 // pred_fallthru
      _
    // Predicated region
    $region61: #{tpu_custom_call.1} parent=1 // pred_check
      _
    $region62: #{tpu_custom_call.1} parent=1 // pred_check_branch
      %4037 = sbr.rel (0) target = $region64
    $region63: #{tpu_custom_call.1} parent=1 // pred_region
      %4038 = dma.done [#allocation4], 4096
    $region64: #{tpu_custom_call.1} parent=1 // pred_fallthru
      _
    %4039 = vsyncpa [#allocation3], 1
    %4040 = vsyncpa [#allocation6], 1
    %4041 = vsyncpa [#allocation4], 1

</llo_original>
